<compile_context>
chip_gen: v7x
topology: tpu7x:2x2x1
jax: 0.10.0
libtpu: 0.0.40
codegen_flags: <defaults>
</compile_context>

<pallas_src>
import functools
import math

import jax
import jax.numpy as jnp
from jax import lax
from jax.experimental import pallas as pl
from jax.experimental.pallas import tpu as pltpu


def _mha_kernel(q_ref, k_ref, v_ref, wq_ref, wk_ref, wv_ref, wfc_ref,
                gamma_ref, beta_ref, out_ref, *opt_attn_ref,
                n_head, d_k, d_v):
    """Grid = (B//BT, Lq//TQ).  One (batch-fold, q-tile) per invocation.

    q_ref             : (BT, TQ, Dm)   -- q tile (pre-LN residual)
    k_ref / v_ref     : (BT, Lk, Dm)   -- full key/value length
    wq_ref / wk_ref   : (Dm, H*Dk)     -- fused projections (wq pre-scaled)
    wv_ref            : (Dm, H*Dv)
    wfc_ref           : (H*Dv, Dm)
    gamma_ref/beta_ref: (1, Dm)        -- LayerNorm affine params
    out_ref           : (BT, TQ, Dm)
    attn_ref (opt.)   : (BT, H, TQ, Lk)
    """
    attn_ref = opt_attn_ref[0] if opt_attn_ref else None
    in_dtype = q_ref.dtype
    bt = q_ref.shape[0]

    gamma = gamma_ref[...].astype(jnp.float32)     # (1, Dm)
    beta = beta_ref[...].astype(jnp.float32)       # (1, Dm)

    # Static unroll over the batch elements folded into this grid step.
    # bt == 1 for realistic shapes; > 1 only for tiny problems so that grid
    # step overhead does not dominate wall time.
    for b in range(bt):
        q = q_ref[b]          # (TQ, Dm)  pre-LN residual
        k = k_ref[b]          # (Lk, Dm)
        v = v_ref[b]          # (Lk, Dm)

        # --- LayerNorm(q), eps=1e-6, elementwise affine (f32 math) ---------
        qf = q.astype(jnp.float32)
        mean = jnp.mean(qf, axis=-1, keepdims=True)
        var = jnp.mean(jnp.square(qf - mean), axis=-1, keepdims=True)
        q_ln = (qf - mean) * lax.rsqrt(var + 1e-6)
        q_ln = (q_ln * gamma + beta).astype(in_dtype)

        # --- Fused projections (one big MXU matmul each) --------------------
        # f32 accumulation, results cast back to the input dtype so the
        # per-head score / context matmuls also get fast (bf16) MXU operands.
        # The 1/sqrt(d_k) temperature is already folded into wq.
        qp = jnp.dot(q_ln, wq_ref[...],
                     preferred_element_type=jnp.float32).astype(in_dtype)
        kp = jnp.dot(k, wk_ref[...],
                     preferred_element_type=jnp.float32).astype(in_dtype)
        vp = jnp.dot(v, wv_ref[...],
                     preferred_element_type=jnp.float32).astype(in_dtype)

        # --- Per-head attention, folding each head straight into Wfc --------
        # Accumulator starts from the residual, so no separate residual add.
        out_acc = qf                                        # (TQ, Dm) f32
        for h in range(n_head):
            qh = qp[:, h * d_k:(h + 1) * d_k]               # (TQ, Dk)
            kh = kp[:, h * d_k:(h + 1) * d_k]               # (Lk, Dk)
            vh = vp[:, h * d_v:(h + 1) * d_v]               # (Lk, Dv)

            scores = lax.dot_general(qh, kh, (((1,), (1,)), ((), ())),
                                     preferred_element_type=jnp.float32)
            m = jnp.max(scores, axis=-1, keepdims=True)
            e = jnp.exp(scores - m)
            denom = jnp.sum(e, axis=-1, keepdims=True)
            attn = e * pl.reciprocal(denom, approx=True)    # EUP vrcp slot
            if attn_ref is not None:
                attn_ref[b, h] = attn.astype(attn_ref.dtype)

            ctx = jnp.dot(attn.astype(in_dtype), vh,
                          preferred_element_type=jnp.float32)      # (TQ, Dv)
            out_acc = out_acc + jnp.dot(
                ctx.astype(in_dtype), wfc_ref[h * d_v:(h + 1) * d_v, :],
                preferred_element_type=jnp.float32)                # (TQ, Dm)

        out_ref[b] = out_acc.astype(out_ref.dtype)


def _choose_tiles(batch, len_q):
    """Pick (batch-fold BT, q-tile TQ).

    TQ bounds VMEM for long sequences (multiple of 128 so the MXU stays full
    on v5e and 256-tiles stay available on v6e/v7x); BT folds several tiny
    batch elements into one grid step for small shapes.
    """
    if len_q % 256 == 0:
        tq = 256
    elif len_q % 128 == 0:
        tq = 128
    else:
        tq = len_q          # short / odd sequence: take it whole
    bt = 1
    if tq == len_q:         # tiny shapes: fold batch until >= ~256 rows / step
        while bt < batch and batch % (2 * bt) == 0 and bt * tq < 256:
            bt *= 2
    return bt, tq


def multi_head_attention(q, k, v, wq, wk, wv, wfc, gamma, beta, *,
                         n_head, d_k, d_v, return_attn=True, attn_dtype=None):
    """q,k,v: (B, L, Dm). wq/wk: (Dm, H*Dk), wv: (Dm, H*Dv), wfc: (H*Dv, Dm)."""
    B, Lq, Dm = q.shape
    Lk = k.shape[1]
    Lv = v.shape[1]
    assert Lk == Lv, "key/value lengths must match"

    bt, tq = _choose_tiles(B, Lq)
    grid = (B // bt, Lq // tq)

    # Fold the 1/sqrt(d_k) softmax temperature into the query projection weight.
    wq_scaled = (wq * (1.0 / math.sqrt(d_k))).astype(wq.dtype)
    gamma2 = gamma.reshape(1, Dm)
    beta2 = beta.reshape(1, Dm)

    a_dtype = jnp.dtype(attn_dtype) if attn_dtype is not None else q.dtype

    in_specs = [
        pl.BlockSpec((bt, tq, Dm), lambda b, t: (b, t, 0)),            # q tile
        pl.BlockSpec((bt, Lk, Dm), lambda b, t: (b, 0, 0)),            # k (full len)
        pl.BlockSpec((bt, Lv, Dm), lambda b, t: (b, 0, 0)),            # v (full len)
        # Constant-index weights stay resident in VMEM across grid steps.
        pl.BlockSpec((Dm, n_head * d_k), lambda b, t: (0, 0)),         # wq (scaled)
        pl.BlockSpec((Dm, n_head * d_k), lambda b, t: (0, 0)),         # wk
        pl.BlockSpec((Dm, n_head * d_v), lambda b, t: (0, 0)),         # wv
        pl.BlockSpec((n_head * d_v, Dm), lambda b, t: (0, 0)),         # wfc
        pl.BlockSpec((1, Dm), lambda b, t: (0, 0)),                    # ln gamma
        pl.BlockSpec((1, Dm), lambda b, t: (0, 0)),                    # ln beta
    ]
    out_specs = [pl.BlockSpec((bt, tq, Dm), lambda b, t: (b, t, 0))]
    out_shape = [jax.ShapeDtypeStruct((B, Lq, Dm), q.dtype)]
    if return_attn:
        out_specs.append(
            pl.BlockSpec((bt, n_head, tq, Lk), lambda b, t: (b, 0, t, 0)))
        out_shape.append(jax.ShapeDtypeStruct((B, n_head, Lq, Lk), a_dtype))

    # Rough per-step VMEM estimate; only raise the scoped limit when needed.
    itm = jnp.dtype(q.dtype).itemsize
    est = 2 * itm * (2 * bt * tq * Dm + 2 * bt * Lk * Dm            # q/out + k/v (dbl-buf)
                     + 2 * Dm * n_head * d_k + 2 * Dm * n_head * d_v)  # weights (dbl-buf)
    est += itm * bt * (tq + 2 * Lk) * n_head * max(d_k, d_v)        # qp/kp/vp
    est += 4 * bt * tq * (Lk + Dm)                                  # f32 scores + acc
    if return_attn:
        est += 2 * jnp.dtype(a_dtype).itemsize * bt * n_head * tq * Lk
    cp_kwargs = dict(dimension_semantics=("parallel", "parallel"))
    if est > 30 * 1024 * 1024:
        cp_kwargs["vmem_limit_bytes"] = min(int(est * 1.25), 100 * 1024 * 1024)

    kernel = functools.partial(_mha_kernel, n_head=n_head, d_k=d_k, d_v=d_v)

    results = pl.pallas_call(
        kernel,
        out_shape=tuple(out_shape),
        grid_spec=pltpu.PrefetchScalarGridSpec(
            num_scalar_prefetch=0,
            grid=grid,
            in_specs=in_specs,
            out_specs=tuple(out_specs),
        ),
        compiler_params=pltpu.CompilerParams(**cp_kwargs),
    )(q, k, v, wq_scaled, wk, wv, wfc, gamma2, beta2)

    if return_attn:
        out, attn = results
        return out, attn
    (out,) = results
    return out


def _reference(q, k, v, wq, wk, wv, wfc, gamma, beta, *, n_head, d_k, d_v):
    """Pure-JAX reference mirroring the (intended) PyTorch forward."""
    B, Lq, Dm = q.shape
    residual = q
    mean = q.mean(-1, keepdims=True)
    var = ((q - mean) ** 2).mean(-1, keepdims=True)
    qn = (q - mean) / jnp.sqrt(var + 1e-6) * gamma + beta
    qp = (qn @ wq).reshape(B, Lq, n_head, d_k).transpose(0, 2, 1, 3)
    kp = (k @ wk).reshape(B, -1, n_head, d_k).transpose(0, 2, 1, 3)
    vp = (v @ wv).reshape(B, -1, n_head, d_v).transpose(0, 2, 1, 3)
    scores = jnp.einsum('bhqd,bhkd->bhqk', qp / (d_k ** 0.5), kp)
    attn = jax.nn.softmax(scores, axis=-1)
    ctx = jnp.einsum('bhqk,bhkd->bhqd', attn, vp)
    ctx = ctx.transpose(0, 2, 1, 3).reshape(B, Lq, n_head * d_v)
    out = ctx @ wfc + residual
    return out, attn


if __name__ == "__main__":
    # Small, module-consistent shapes.
    B, L, Dm = 2, 8, 32
    n_head, d_k, d_v = 4, 8, 8

    key = jax.random.PRNGKey(0)
    kq, kk, kv, k1, k2, k3, k4, k5, k6 = jax.random.split(key, 9)

    q = jax.random.normal(kq, (B, L, Dm), jnp.float32)
    k = jax.random.normal(kk, (B, L, Dm), jnp.float32)
    v = jax.random.normal(kv, (B, L, Dm), jnp.float32)

    # Deterministic parameter init (shapes follow nn.Linear(..., bias=False),
    # stored already transposed for x @ W use).
    wq = 0.1 * jax.random.normal(k1, (Dm, n_head * d_k), jnp.float32)
    wk = 0.1 * jax.random.normal(k2, (Dm, n_head * d_k), jnp.float32)
    wv = 0.1 * jax.random.normal(k3, (Dm, n_head * d_v), jnp.float32)
    wfc = 0.1 * jax.random.normal(k4, (n_head * d_v, Dm), jnp.float32)
    gamma = 1.0 + 0.05 * jax.random.normal(k5, (Dm,), jnp.float32)
    beta = 0.05 * jax.random.normal(k6, (Dm,), jnp.float32)

    out, attn = multi_head_attention(q, k, v, wq, wk, wv, wfc, gamma, beta,
                                     n_head=n_head, d_k=d_k, d_v=d_v)
    jax.block_until_ready((out, attn))

    out_ref, attn_ref = _reference(q, k, v, wq, wk, wv, wfc, gamma, beta,
                                   n_head=n_head, d_k=d_k, d_v=d_v)
    # Tolerances cover the approximate (EUP) reciprocal used in the softmax
    # normalization; structural bugs would produce O(0.1..1) errors.
    assert jnp.allclose(out, out_ref, atol=2e-2, rtol=2e-2), "output mismatch"
    assert jnp.allclose(attn, attn_ref.astype(attn.dtype),
                        atol=2e-2, rtol=2e-2), "attn mismatch"

    # Attention-map-free path (skips the B*H*Lq*Lk HBM writeback entirely).
    out_only = multi_head_attention(q, k, v, wq, wk, wv, wfc, gamma, beta,
                                    n_head=n_head, d_k=d_k, d_v=d_v,
                                    return_attn=False)
    jax.block_until_ready(out_only)
    assert jnp.allclose(out_only, out_ref, atol=2e-2, rtol=2e-2), \
        "output mismatch (return_attn=False)"

    print("KERNEL_OK")
</pallas_src>

<mosaic_0001>
module attributes {stable_mosaic.version = 11 : i64} {
  func.func @_mha_kernel(%arg0: i32, %arg1: i32, %arg2: memref<2x8x32xf32, #tpu.memory_space<vmem>>, %arg3: memref<2x8x32xf32, #tpu.memory_space<vmem>>, %arg4: memref<2x8x32xf32, #tpu.memory_space<vmem>>, %arg5: memref<32x32xf32, #tpu.memory_space<vmem>>, %arg6: memref<32x32xf32, #tpu.memory_space<vmem>>, %arg7: memref<32x32xf32, #tpu.memory_space<vmem>>, %arg8: memref<32x32xf32, #tpu.memory_space<vmem>>, %arg9: memref<1x32xf32, #tpu.memory_space<vmem>>, %arg10: memref<1x32xf32, #tpu.memory_space<vmem>>, %arg11: memref<2x8x32xf32, #tpu.memory_space<vmem>>, %arg12: memref<2x4x8x8xf32, #tpu.memory_space<vmem>>) attributes {dimension_semantics = [#tpu.dimension_semantics<parallel>, #tpu.dimension_semantics<parallel>], iteration_bounds = array<i64: 1, 1>, scalar_prefetch = 0 : i64, scratch_operands = 0 : i64, tpu.core_type = #tpu.core_type<tc>, window_params = [{transform_indices = @transform_0, window_bounds = array<i64: 2, 8, 32>}, {transform_indices = @transform_1, window_bounds = array<i64: 2, 8, 32>}, {transform_indices = @transform_2, window_bounds = array<i64: 2, 8, 32>}, {pipeline_mode = #tpu.pipeline_mode<synchronous>, transform_indices = @transform_3, window_bounds = array<i64: 32, 32>}, {pipeline_mode = #tpu.pipeline_mode<synchronous>, transform_indices = @transform_4, window_bounds = array<i64: 32, 32>}, {pipeline_mode = #tpu.pipeline_mode<synchronous>, transform_indices = @transform_5, window_bounds = array<i64: 32, 32>}, {pipeline_mode = #tpu.pipeline_mode<synchronous>, transform_indices = @transform_6, window_bounds = array<i64: 32, 32>}, {pipeline_mode = #tpu.pipeline_mode<synchronous>, transform_indices = @transform_7, window_bounds = array<i64: 1, 32>}, {pipeline_mode = #tpu.pipeline_mode<synchronous>, transform_indices = @transform_8, window_bounds = array<i64: 1, 32>}, {transform_indices = @transform_9, window_bounds = array<i64: 2, 8, 32>}, {transform_indices = @transform_10, window_bounds = array<i64: 2, 4, 8, 8>}]} {
    %c0 = arith.constant 0 : index
    %c0_0 = arith.constant 0 : index
    %0 = vector.load %arg9[%c0, %c0_0] : memref<1x32xf32, #tpu.memory_space<vmem>>, vector<1x32xf32>
    %c0_1 = arith.constant 0 : index
    %c0_2 = arith.constant 0 : index
    %1 = vector.load %arg10[%c0_1, %c0_2] : memref<1x32xf32, #tpu.memory_space<vmem>>, vector<1x32xf32>
    %c0_3 = arith.constant 0 : index
    %c0_4 = arith.constant 0 : index
    %c0_5 = arith.constant 0 : index
    %2 = vector.load %arg2[%c0_3, %c0_4, %c0_5] : memref<2x8x32xf32, #tpu.memory_space<vmem>>, vector<1x8x32xf32>
    %3 = vector.shape_cast %2 : vector<1x8x32xf32> to vector<8x32xf32>
    %c0_6 = arith.constant 0 : index
    %c0_7 = arith.constant 0 : index
    %c0_8 = arith.constant 0 : index
    %4 = vector.load %arg3[%c0_6, %c0_7, %c0_8] : memref<2x8x32xf32, #tpu.memory_space<vmem>>, vector<1x8x32xf32>
    %5 = vector.shape_cast %4 : vector<1x8x32xf32> to vector<8x32xf32>
    %c0_9 = arith.constant 0 : index
    %c0_10 = arith.constant 0 : index
    %c0_11 = arith.constant 0 : index
    %6 = vector.load %arg4[%c0_9, %c0_10, %c0_11] : memref<2x8x32xf32, #tpu.memory_space<vmem>>, vector<1x8x32xf32>
    %7 = vector.shape_cast %6 : vector<1x8x32xf32> to vector<8x32xf32>
    %cst = arith.constant dense<0.000000e+00> : vector<8xf32>
    %8 = vector.multi_reduction <add>, %3, %cst [1] : vector<8x32xf32> to vector<8xf32>
    %9 = vector.shape_cast %8 : vector<8xf32> to vector<8x1xf32>
    %cst_12 = arith.constant 3.200000e+01 : f32
    %10 = vector.broadcast %cst_12 : f32 to vector<8x1xf32>
    %11 = arith.divf %9, %10 : vector<8x1xf32>
    %12 = vector.broadcast %11 : vector<8x1xf32> to vector<8x32xf32>
    %13 = arith.subf %3, %12 : vector<8x32xf32>
    %14 = arith.mulf %13, %13 : vector<8x32xf32>
    %cst_13 = arith.constant dense<0.000000e+00> : vector<8xf32>
    %15 = vector.multi_reduction <add>, %14, %cst_13 [1] : vector<8x32xf32> to vector<8xf32>
    %16 = vector.shape_cast %15 : vector<8xf32> to vector<8x1xf32>
    %cst_14 = arith.constant 3.200000e+01 : f32
    %17 = vector.broadcast %cst_14 : f32 to vector<8x1xf32>
    %18 = arith.divf %16, %17 : vector<8x1xf32>
    %19 = vector.broadcast %11 : vector<8x1xf32> to vector<8x32xf32>
    %20 = arith.subf %3, %19 : vector<8x32xf32>
    %cst_15 = arith.constant 9.99999997E-7 : f32
    %21 = vector.broadcast %cst_15 : f32 to vector<8x1xf32>
    %22 = arith.addf %18, %21 : vector<8x1xf32>
    %23 = math.rsqrt %22 : vector<8x1xf32>
    %24 = vector.broadcast %23 : vector<8x1xf32> to vector<8x32xf32>
    %25 = arith.mulf %20, %24 : vector<8x32xf32>
    %26 = vector.broadcast %0 : vector<1x32xf32> to vector<8x32xf32>
    %27 = arith.mulf %25, %26 : vector<8x32xf32>
    %28 = vector.broadcast %1 : vector<1x32xf32> to vector<8x32xf32>
    %29 = arith.addf %27, %28 : vector<8x32xf32>
    %c0_16 = arith.constant 0 : index
    %c0_17 = arith.constant 0 : index
    %30 = vector.load %arg5[%c0_16, %c0_17] : memref<32x32xf32, #tpu.memory_space<vmem>>, vector<32x32xf32>
    %cst_18 = arith.constant dense<0.000000e+00> : vector<8x32xf32>
    %31 = tpu.matmul %29, %30, %cst_18 {dimension_numbers = #tpu.dot_dimension_numbers<[1], [0], [0], [1], [0, 0, 1, 1], [], []>} : vector<8x32xf32>, vector<32x32xf32>, vector<8x32xf32> -> vector<8x32xf32>
    %c0_19 = arith.constant 0 : index
    %c0_20 = arith.constant 0 : index
    %32 = vector.load %arg6[%c0_19, %c0_20] : memref<32x32xf32, #tpu.memory_space<vmem>>, vector<32x32xf32>
    %cst_21 = arith.constant dense<0.000000e+00> : vector<8x32xf32>
    %33 = tpu.matmul %5, %32, %cst_21 {dimension_numbers = #tpu.dot_dimension_numbers<[1], [0], [0], [1], [0, 0, 1, 1], [], []>} : vector<8x32xf32>, vector<32x32xf32>, vector<8x32xf32> -> vector<8x32xf32>
    %c0_22 = arith.constant 0 : index
    %c0_23 = arith.constant 0 : index
    %34 = vector.load %arg7[%c0_22, %c0_23] : memref<32x32xf32, #tpu.memory_space<vmem>>, vector<32x32xf32>
    %cst_24 = arith.constant dense<0.000000e+00> : vector<8x32xf32>
    %35 = tpu.matmul %7, %34, %cst_24 {dimension_numbers = #tpu.dot_dimension_numbers<[1], [0], [0], [1], [0, 0, 1, 1], [], []>} : vector<8x32xf32>, vector<32x32xf32>, vector<8x32xf32> -> vector<8x32xf32>
    %36 = vector.extract_strided_slice %31 {offsets = [0, 0], sizes = [8, 8], strides = [1, 1]} : vector<8x32xf32> to vector<8x8xf32>
    %37 = vector.extract_strided_slice %33 {offsets = [0, 0], sizes = [8, 8], strides = [1, 1]} : vector<8x32xf32> to vector<8x8xf32>
    %38 = vector.extract_strided_slice %35 {offsets = [0, 0], sizes = [8, 8], strides = [1, 1]} : vector<8x32xf32> to vector<8x8xf32>
    %cst_25 = arith.constant dense<0.000000e+00> : vector<8x8xf32>
    %39 = tpu.matmul %36, %37, %cst_25 {dimension_numbers = #tpu.dot_dimension_numbers<[1], [1], [0], [0], [0, 0, 1, 0], [], []>} : vector<8x8xf32>, vector<8x8xf32>, vector<8x8xf32> -> vector<8x8xf32>
    %cst_26 = arith.constant dense<0xFF800000> : vector<8xf32>
    %40 = vector.multi_reduction <maximumf>, %39, %cst_26 [1] : vector<8x8xf32> to vector<8xf32>
    %41 = vector.shape_cast %40 : vector<8xf32> to vector<8x1xf32>
    %42 = vector.broadcast %41 : vector<8x1xf32> to vector<8x8xf32>
    %43 = arith.subf %39, %42 : vector<8x8xf32>
    %44 = math.exp %43 : vector<8x8xf32>
    %cst_27 = arith.constant dense<0.000000e+00> : vector<8xf32>
    %45 = vector.multi_reduction <add>, %44, %cst_27 [1] : vector<8x8xf32> to vector<8xf32>
    %46 = vector.shape_cast %45 : vector<8xf32> to vector<8x1xf32>
    %47 = tpu.reciprocal %46 {approx = true} : vector<8x1xf32> -> vector<8x1xf32>
    %48 = vector.broadcast %47 : vector<8x1xf32> to vector<8x8xf32>
    %49 = arith.mulf %44, %48 : vector<8x8xf32>
    %c0_28 = arith.constant 0 : index
    %c0_29 = arith.constant 0 : index
    %c0_30 = arith.constant 0 : index
    %c0_31 = arith.constant 0 : index
    %50 = vector.load %arg12[%c0_28, %c0_29, %c0_30, %c0_31] : memref<2x4x8x8xf32, #tpu.memory_space<vmem>>, vector<1x1x8x8xf32>
    %51 = vector.shape_cast %50 : vector<1x1x8x8xf32> to vector<8x8xf32>
    %52 = vector.shape_cast %49 : vector<8x8xf32> to vector<1x1x8x8xf32>
    tpu.vector_store %arg12[%c0_28, %c0_29, %c0_30, %c0_31], %52 {strides = array<i32>} : memref<2x4x8x8xf32, #tpu.memory_space<vmem>>, vector<1x1x8x8xf32>,
    %cst_32 = arith.constant dense<0.000000e+00> : vector<8x8xf32>
    %53 = tpu.matmul %49, %38, %cst_32 {dimension_numbers = #tpu.dot_dimension_numbers<[1], [0], [0], [1], [0, 0, 1, 1], [], []>} : vector<8x8xf32>, vector<8x8xf32>, vector<8x8xf32> -> vector<8x8xf32>
    %c0_33 = arith.constant 0 : index
    %c0_34 = arith.constant 0 : index
    %54 = vector.load %arg8[%c0_33, %c0_34] : memref<32x32xf32, #tpu.memory_space<vmem>>, vector<8x32xf32>
    %cst_35 = arith.constant dense<0.000000e+00> : vector<8x32xf32>
    %55 = tpu.matmul %53, %54, %cst_35 {dimension_numbers = #tpu.dot_dimension_numbers<[1], [0], [0], [1], [0, 0, 1, 1], [], []>} : vector<8x8xf32>, vector<8x32xf32>, vector<8x32xf32> -> vector<8x32xf32>
    %56 = arith.addf %3, %55 : vector<8x32xf32>
    %57 = vector.extract_strided_slice %31 {offsets = [0, 8], sizes = [8, 8], strides = [1, 1]} : vector<8x32xf32> to vector<8x8xf32>
    %58 = vector.extract_strided_slice %33 {offsets = [0, 8], sizes = [8, 8], strides = [1, 1]} : vector<8x32xf32> to vector<8x8xf32>
    %59 = vector.extract_strided_slice %35 {offsets = [0, 8], sizes = [8, 8], strides = [1, 1]} : vector<8x32xf32> to vector<8x8xf32>
    %cst_36 = arith.constant dense<0.000000e+00> : vector<8x8xf32>
    %60 = tpu.matmul %57, %58, %cst_36 {dimension_numbers = #tpu.dot_dimension_numbers<[1], [1], [0], [0], [0, 0, 1, 0], [], []>} : vector<8x8xf32>, vector<8x8xf32>, vector<8x8xf32> -> vector<8x8xf32>
    %cst_37 = arith.constant dense<0xFF800000> : vector<8xf32>
    %61 = vector.multi_reduction <maximumf>, %60, %cst_37 [1] : vector<8x8xf32> to vector<8xf32>
    %62 = vector.shape_cast %61 : vector<8xf32> to vector<8x1xf32>
    %63 = vector.broadcast %62 : vector<8x1xf32> to vector<8x8xf32>
    %64 = arith.subf %60, %63 : vector<8x8xf32>
    %65 = math.exp %64 : vector<8x8xf32>
    %cst_38 = arith.constant dense<0.000000e+00> : vector<8xf32>
    %66 = vector.multi_reduction <add>, %65, %cst_38 [1] : vector<8x8xf32> to vector<8xf32>
    %67 = vector.shape_cast %66 : vector<8xf32> to vector<8x1xf32>
    %68 = tpu.reciprocal %67 {approx = true} : vector<8x1xf32> -> vector<8x1xf32>
    %69 = vector.broadcast %68 : vector<8x1xf32> to vector<8x8xf32>
    %70 = arith.mulf %65, %69 : vector<8x8xf32>
    %c0_39 = arith.constant 0 : index
    %c1 = arith.constant 1 : index
    %c0_40 = arith.constant 0 : index
    %c0_41 = arith.constant 0 : index
    %71 = vector.load %arg12[%c0_39, %c1, %c0_40, %c0_41] : memref<2x4x8x8xf32, #tpu.memory_space<vmem>>, vector<1x1x8x8xf32>
    %72 = vector.shape_cast %71 : vector<1x1x8x8xf32> to vector<8x8xf32>
    %73 = vector.shape_cast %70 : vector<8x8xf32> to vector<1x1x8x8xf32>
    tpu.vector_store %arg12[%c0_39, %c1, %c0_40, %c0_41], %73 {strides = array<i32>} : memref<2x4x8x8xf32, #tpu.memory_space<vmem>>, vector<1x1x8x8xf32>,
    %cst_42 = arith.constant dense<0.000000e+00> : vector<8x8xf32>
    %74 = tpu.matmul %70, %59, %cst_42 {dimension_numbers = #tpu.dot_dimension_numbers<[1], [0], [0], [1], [0, 0, 1, 1], [], []>} : vector<8x8xf32>, vector<8x8xf32>, vector<8x8xf32> -> vector<8x8xf32>
    %c8 = arith.constant 8 : index
    %c0_43 = arith.constant 0 : index
    %75 = vector.load %arg8[%c8, %c0_43] : memref<32x32xf32, #tpu.memory_space<vmem>>, vector<8x32xf32>
    %cst_44 = arith.constant dense<0.000000e+00> : vector<8x32xf32>
    %76 = tpu.matmul %74, %75, %cst_44 {dimension_numbers = #tpu.dot_dimension_numbers<[1], [0], [0], [1], [0, 0, 1, 1], [], []>} : vector<8x8xf32>, vector<8x32xf32>, vector<8x32xf32> -> vector<8x32xf32>
    %77 = arith.addf %56, %76 : vector<8x32xf32>
    %78 = vector.extract_strided_slice %31 {offsets = [0, 16], sizes = [8, 8], strides = [1, 1]} : vector<8x32xf32> to vector<8x8xf32>
    %79 = vector.extract_strided_slice %33 {offsets = [0, 16], sizes = [8, 8], strides = [1, 1]} : vector<8x32xf32> to vector<8x8xf32>
    %80 = vector.extract_strided_slice %35 {offsets = [0, 16], sizes = [8, 8], strides = [1, 1]} : vector<8x32xf32> to vector<8x8xf32>
    %cst_45 = arith.constant dense<0.000000e+00> : vector<8x8xf32>
    %81 = tpu.matmul %78, %79, %cst_45 {dimension_numbers = #tpu.dot_dimension_numbers<[1], [1], [0], [0], [0, 0, 1, 0], [], []>} : vector<8x8xf32>, vector<8x8xf32>, vector<8x8xf32> -> vector<8x8xf32>
    %cst_46 = arith.constant dense<0xFF800000> : vector<8xf32>
    %82 = vector.multi_reduction <maximumf>, %81, %cst_46 [1] : vector<8x8xf32> to vector<8xf32>
    %83 = vector.shape_cast %82 : vector<8xf32> to vector<8x1xf32>
    %84 = vector.broadcast %83 : vector<8x1xf32> to vector<8x8xf32>
    %85 = arith.subf %81, %84 : vector<8x8xf32>
    %86 = math.exp %85 : vector<8x8xf32>
    %cst_47 = arith.constant dense<0.000000e+00> : vector<8xf32>
    %87 = vector.multi_reduction <add>, %86, %cst_47 [1] : vector<8x8xf32> to vector<8xf32>
    %88 = vector.shape_cast %87 : vector<8xf32> to vector<8x1xf32>
    %89 = tpu.reciprocal %88 {approx = true} : vector<8x1xf32> -> vector<8x1xf32>
    %90 = vector.broadcast %89 : vector<8x1xf32> to vector<8x8xf32>
    %91 = arith.mulf %86, %90 : vector<8x8xf32>
    %c0_48 = arith.constant 0 : index
    %c2 = arith.constant 2 : index
    %c0_49 = arith.constant 0 : index
    %c0_50 = arith.constant 0 : index
    %92 = vector.load %arg12[%c0_48, %c2, %c0_49, %c0_50] : memref<2x4x8x8xf32, #tpu.memory_space<vmem>>, vector<1x1x8x8xf32>
    %93 = vector.shape_cast %92 : vector<1x1x8x8xf32> to vector<8x8xf32>
    %94 = vector.shape_cast %91 : vector<8x8xf32> to vector<1x1x8x8xf32>
    tpu.vector_store %arg12[%c0_48, %c2, %c0_49, %c0_50], %94 {strides = array<i32>} : memref<2x4x8x8xf32, #tpu.memory_space<vmem>>, vector<1x1x8x8xf32>,
    %cst_51 = arith.constant dense<0.000000e+00> : vector<8x8xf32>
    %95 = tpu.matmul %91, %80, %cst_51 {dimension_numbers = #tpu.dot_dimension_numbers<[1], [0], [0], [1], [0, 0, 1, 1], [], []>} : vector<8x8xf32>, vector<8x8xf32>, vector<8x8xf32> -> vector<8x8xf32>
    %c16 = arith.constant 16 : index
    %c0_52 = arith.constant 0 : index
    %96 = vector.load %arg8[%c16, %c0_52] : memref<32x32xf32, #tpu.memory_space<vmem>>, vector<8x32xf32>
    %cst_53 = arith.constant dense<0.000000e+00> : vector<8x32xf32>
    %97 = tpu.matmul %95, %96, %cst_53 {dimension_numbers = #tpu.dot_dimension_numbers<[1], [0], [0], [1], [0, 0, 1, 1], [], []>} : vector<8x8xf32>, vector<8x32xf32>, vector<8x32xf32> -> vector<8x32xf32>
    %98 = arith.addf %77, %97 : vector<8x32xf32>
    %99 = vector.extract_strided_slice %31 {offsets = [0, 24], sizes = [8, 8], strides = [1, 1]} : vector<8x32xf32> to vector<8x8xf32>
    %100 = vector.extract_strided_slice %33 {offsets = [0, 24], sizes = [8, 8], strides = [1, 1]} : vector<8x32xf32> to vector<8x8xf32>
    %101 = vector.extract_strided_slice %35 {offsets = [0, 24], sizes = [8, 8], strides = [1, 1]} : vector<8x32xf32> to vector<8x8xf32>
    %cst_54 = arith.constant dense<0.000000e+00> : vector<8x8xf32>
    %102 = tpu.matmul %99, %100, %cst_54 {dimension_numbers = #tpu.dot_dimension_numbers<[1], [1], [0], [0], [0, 0, 1, 0], [], []>} : vector<8x8xf32>, vector<8x8xf32>, vector<8x8xf32> -> vector<8x8xf32>
    %cst_55 = arith.constant dense<0xFF800000> : vector<8xf32>
    %103 = vector.multi_reduction <maximumf>, %102, %cst_55 [1] : vector<8x8xf32> to vector<8xf32>
    %104 = vector.shape_cast %103 : vector<8xf32> to vector<8x1xf32>
    %105 = vector.broadcast %104 : vector<8x1xf32> to vector<8x8xf32>
    %106 = arith.subf %102, %105 : vector<8x8xf32>
    %107 = math.exp %106 : vector<8x8xf32>
    %cst_56 = arith.constant dense<0.000000e+00> : vector<8xf32>
    %108 = vector.multi_reduction <add>, %107, %cst_56 [1] : vector<8x8xf32> to vector<8xf32>
    %109 = vector.shape_cast %108 : vector<8xf32> to vector<8x1xf32>
    %110 = tpu.reciprocal %109 {approx = true} : vector<8x1xf32> -> vector<8x1xf32>
    %111 = vector.broadcast %110 : vector<8x1xf32> to vector<8x8xf32>
    %112 = arith.mulf %107, %111 : vector<8x8xf32>
    %c0_57 = arith.constant 0 : index
    %c3 = arith.constant 3 : index
    %c0_58 = arith.constant 0 : index
    %c0_59 = arith.constant 0 : index
    %113 = vector.load %arg12[%c0_57, %c3, %c0_58, %c0_59] : memref<2x4x8x8xf32, #tpu.memory_space<vmem>>, vector<1x1x8x8xf32>
    %114 = vector.shape_cast %113 : vector<1x1x8x8xf32> to vector<8x8xf32>
    %115 = vector.shape_cast %112 : vector<8x8xf32> to vector<1x1x8x8xf32>
    tpu.vector_store %arg12[%c0_57, %c3, %c0_58, %c0_59], %115 {strides = array<i32>} : memref<2x4x8x8xf32, #tpu.memory_space<vmem>>, vector<1x1x8x8xf32>,
    %cst_60 = arith.constant dense<0.000000e+00> : vector<8x8xf32>
    %116 = tpu.matmul %112, %101, %cst_60 {dimension_numbers = #tpu.dot_dimension_numbers<[1], [0], [0], [1], [0, 0, 1, 1], [], []>} : vector<8x8xf32>, vector<8x8xf32>, vector<8x8xf32> -> vector<8x8xf32>
    %c24 = arith.constant 24 : index
    %c0_61 = arith.constant 0 : index
    %117 = vector.load %arg8[%c24, %c0_61] : memref<32x32xf32, #tpu.memory_space<vmem>>, vector<8x32xf32>
    %cst_62 = arith.constant dense<0.000000e+00> : vector<8x32xf32>
    %118 = tpu.matmul %116, %117, %cst_62 {dimension_numbers = #tpu.dot_dimension_numbers<[1], [0], [0], [1], [0, 0, 1, 1], [], []>} : vector<8x8xf32>, vector<8x32xf32>, vector<8x32xf32> -> vector<8x32xf32>
    %119 = arith.addf %98, %118 : vector<8x32xf32>
    %c0_63 = arith.constant 0 : index
    %c0_64 = arith.constant 0 : index
    %c0_65 = arith.constant 0 : index
    %120 = vector.load %arg11[%c0_63, %c0_64, %c0_65] : memref<2x8x32xf32, #tpu.memory_space<vmem>>, vector<1x8x32xf32>
    %121 = vector.shape_cast %120 : vector<1x8x32xf32> to vector<8x32xf32>
    %122 = vector.shape_cast %119 : vector<8x32xf32> to vector<1x8x32xf32>
    tpu.vector_store %arg11[%c0_63, %c0_64, %c0_65], %122 {strides = array<i32>} : memref<2x8x32xf32, #tpu.memory_space<vmem>>, vector<1x8x32xf32>,
    %c1_66 = arith.constant 1 : index
    %c0_67 = arith.constant 0 : index
    %c0_68 = arith.constant 0 : index
    %123 = vector.load %arg2[%c1_66, %c0_67, %c0_68] : memref<2x8x32xf32, #tpu.memory_space<vmem>>, vector<1x8x32xf32>
    %124 = vector.shape_cast %123 : vector<1x8x32xf32> to vector<8x32xf32>
    %c1_69 = arith.constant 1 : index
    %c0_70 = arith.constant 0 : index
    %c0_71 = arith.constant 0 : index
    %125 = vector.load %arg3[%c1_69, %c0_70, %c0_71] : memref<2x8x32xf32, #tpu.memory_space<vmem>>, vector<1x8x32xf32>
    %126 = vector.shape_cast %125 : vector<1x8x32xf32> to vector<8x32xf32>
    %c1_72 = arith.constant 1 : index
    %c0_73 = arith.constant 0 : index
    %c0_74 = arith.constant 0 : index
    %127 = vector.load %arg4[%c1_72, %c0_73, %c0_74] : memref<2x8x32xf32, #tpu.memory_space<vmem>>, vector<1x8x32xf32>
    %128 = vector.shape_cast %127 : vector<1x8x32xf32> to vector<8x32xf32>
    %cst_75 = arith.constant dense<0.000000e+00> : vector<8xf32>
    %129 = vector.multi_reduction <add>, %124, %cst_75 [1] : vector<8x32xf32> to vector<8xf32>
    %130 = vector.shape_cast %129 : vector<8xf32> to vector<8x1xf32>
    %cst_76 = arith.constant 3.200000e+01 : f32
    %131 = vector.broadcast %cst_76 : f32 to vector<8x1xf32>
    %132 = arith.divf %130, %131 : vector<8x1xf32>
    %133 = vector.broadcast %132 : vector<8x1xf32> to vector<8x32xf32>
    %134 = arith.subf %124, %133 : vector<8x32xf32>
    %135 = arith.mulf %134, %134 : vector<8x32xf32>
    %cst_77 = arith.constant dense<0.000000e+00> : vector<8xf32>
    %136 = vector.multi_reduction <add>, %135, %cst_77 [1] : vector<8x32xf32> to vector<8xf32>
    %137 = vector.shape_cast %136 : vector<8xf32> to vector<8x1xf32>
    %cst_78 = arith.constant 3.200000e+01 : f32
    %138 = vector.broadcast %cst_78 : f32 to vector<8x1xf32>
    %139 = arith.divf %137, %138 : vector<8x1xf32>
    %140 = vector.broadcast %132 : vector<8x1xf32> to vector<8x32xf32>
    %141 = arith.subf %124, %140 : vector<8x32xf32>
    %cst_79 = arith.constant 9.99999997E-7 : f32
    %142 = vector.broadcast %cst_79 : f32 to vector<8x1xf32>
    %143 = arith.addf %139, %142 : vector<8x1xf32>
    %144 = math.rsqrt %143 : vector<8x1xf32>
    %145 = vector.broadcast %144 : vector<8x1xf32> to vector<8x32xf32>
    %146 = arith.mulf %141, %145 : vector<8x32xf32>
    %147 = vector.broadcast %0 : vector<1x32xf32> to vector<8x32xf32>
    %148 = arith.mulf %146, %147 : vector<8x32xf32>
    %149 = vector.broadcast %1 : vector<1x32xf32> to vector<8x32xf32>
    %150 = arith.addf %148, %149 : vector<8x32xf32>
    %c0_80 = arith.constant 0 : index
    %c0_81 = arith.constant 0 : index
    %151 = vector.load %arg5[%c0_80, %c0_81] : memref<32x32xf32, #tpu.memory_space<vmem>>, vector<32x32xf32>
    %cst_82 = arith.constant dense<0.000000e+00> : vector<8x32xf32>
    %152 = tpu.matmul %150, %151, %cst_82 {dimension_numbers = #tpu.dot_dimension_numbers<[1], [0], [0], [1], [0, 0, 1, 1], [], []>} : vector<8x32xf32>, vector<32x32xf32>, vector<8x32xf32> -> vector<8x32xf32>
    %c0_83 = arith.constant 0 : index
    %c0_84 = arith.constant 0 : index
    %153 = vector.load %arg6[%c0_83, %c0_84] : memref<32x32xf32, #tpu.memory_space<vmem>>, vector<32x32xf32>
    %cst_85 = arith.constant dense<0.000000e+00> : vector<8x32xf32>
    %154 = tpu.matmul %126, %153, %cst_85 {dimension_numbers = #tpu.dot_dimension_numbers<[1], [0], [0], [1], [0, 0, 1, 1], [], []>} : vector<8x32xf32>, vector<32x32xf32>, vector<8x32xf32> -> vector<8x32xf32>
    %c0_86 = arith.constant 0 : index
    %c0_87 = arith.constant 0 : index
    %155 = vector.load %arg7[%c0_86, %c0_87] : memref<32x32xf32, #tpu.memory_space<vmem>>, vector<32x32xf32>
    %cst_88 = arith.constant dense<0.000000e+00> : vector<8x32xf32>
    %156 = tpu.matmul %128, %155, %cst_88 {dimension_numbers = #tpu.dot_dimension_numbers<[1], [0], [0], [1], [0, 0, 1, 1], [], []>} : vector<8x32xf32>, vector<32x32xf32>, vector<8x32xf32> -> vector<8x32xf32>
    %157 = vector.extract_strided_slice %152 {offsets = [0, 0], sizes = [8, 8], strides = [1, 1]} : vector<8x32xf32> to vector<8x8xf32>
    %158 = vector.extract_strided_slice %154 {offsets = [0, 0], sizes = [8, 8], strides = [1, 1]} : vector<8x32xf32> to vector<8x8xf32>
    %159 = vector.extract_strided_slice %156 {offsets = [0, 0], sizes = [8, 8], strides = [1, 1]} : vector<8x32xf32> to vector<8x8xf32>
    %cst_89 = arith.constant dense<0.000000e+00> : vector<8x8xf32>
    %160 = tpu.matmul %157, %158, %cst_89 {dimension_numbers = #tpu.dot_dimension_numbers<[1], [1], [0], [0], [0, 0, 1, 0], [], []>} : vector<8x8xf32>, vector<8x8xf32>, vector<8x8xf32> -> vector<8x8xf32>
    %cst_90 = arith.constant dense<0xFF800000> : vector<8xf32>
    %161 = vector.multi_reduction <maximumf>, %160, %cst_90 [1] : vector<8x8xf32> to vector<8xf32>
    %162 = vector.shape_cast %161 : vector<8xf32> to vector<8x1xf32>
    %163 = vector.broadcast %162 : vector<8x1xf32> to vector<8x8xf32>
    %164 = arith.subf %160, %163 : vector<8x8xf32>
    %165 = math.exp %164 : vector<8x8xf32>
    %cst_91 = arith.constant dense<0.000000e+00> : vector<8xf32>
    %166 = vector.multi_reduction <add>, %165, %cst_91 [1] : vector<8x8xf32> to vector<8xf32>
    %167 = vector.shape_cast %166 : vector<8xf32> to vector<8x1xf32>
    %168 = tpu.reciprocal %167 {approx = true} : vector<8x1xf32> -> vector<8x1xf32>
    %169 = vector.broadcast %168 : vector<8x1xf32> to vector<8x8xf32>
    %170 = arith.mulf %165, %169 : vector<8x8xf32>
    %c1_92 = arith.constant 1 : index
    %c0_93 = arith.constant 0 : index
    %c0_94 = arith.constant 0 : index
    %c0_95 = arith.constant 0 : index
    %171 = vector.load %arg12[%c1_92, %c0_93, %c0_94, %c0_95] : memref<2x4x8x8xf32, #tpu.memory_space<vmem>>, vector<1x1x8x8xf32>
    %172 = vector.shape_cast %171 : vector<1x1x8x8xf32> to vector<8x8xf32>
    %173 = vector.shape_cast %170 : vector<8x8xf32> to vector<1x1x8x8xf32>
    tpu.vector_store %arg12[%c1_92, %c0_93, %c0_94, %c0_95], %173 {strides = array<i32>} : memref<2x4x8x8xf32, #tpu.memory_space<vmem>>, vector<1x1x8x8xf32>,
    %cst_96 = arith.constant dense<0.000000e+00> : vector<8x8xf32>
    %174 = tpu.matmul %170, %159, %cst_96 {dimension_numbers = #tpu.dot_dimension_numbers<[1], [0], [0], [1], [0, 0, 1, 1], [], []>} : vector<8x8xf32>, vector<8x8xf32>, vector<8x8xf32> -> vector<8x8xf32>
    %c0_97 = arith.constant 0 : index
    %c0_98 = arith.constant 0 : index
    %175 = vector.load %arg8[%c0_97, %c0_98] : memref<32x32xf32, #tpu.memory_space<vmem>>, vector<8x32xf32>
    %cst_99 = arith.constant dense<0.000000e+00> : vector<8x32xf32>
    %176 = tpu.matmul %174, %175, %cst_99 {dimension_numbers = #tpu.dot_dimension_numbers<[1], [0], [0], [1], [0, 0, 1, 1], [], []>} : vector<8x8xf32>, vector<8x32xf32>, vector<8x32xf32> -> vector<8x32xf32>
    %177 = arith.addf %124, %176 : vector<8x32xf32>
    %178 = vector.extract_strided_slice %152 {offsets = [0, 8], sizes = [8, 8], strides = [1, 1]} : vector<8x32xf32> to vector<8x8xf32>
    %179 = vector.extract_strided_slice %154 {offsets = [0, 8], sizes = [8, 8], strides = [1, 1]} : vector<8x32xf32> to vector<8x8xf32>
    %180 = vector.extract_strided_slice %156 {offsets = [0, 8], sizes = [8, 8], strides = [1, 1]} : vector<8x32xf32> to vector<8x8xf32>
    %cst_100 = arith.constant dense<0.000000e+00> : vector<8x8xf32>
    %181 = tpu.matmul %178, %179, %cst_100 {dimension_numbers = #tpu.dot_dimension_numbers<[1], [1], [0], [0], [0, 0, 1, 0], [], []>} : vector<8x8xf32>, vector<8x8xf32>, vector<8x8xf32> -> vector<8x8xf32>
    %cst_101 = arith.constant dense<0xFF800000> : vector<8xf32>
    %182 = vector.multi_reduction <maximumf>, %181, %cst_101 [1] : vector<8x8xf32> to vector<8xf32>
    %183 = vector.shape_cast %182 : vector<8xf32> to vector<8x1xf32>
    %184 = vector.broadcast %183 : vector<8x1xf32> to vector<8x8xf32>
    %185 = arith.subf %181, %184 : vector<8x8xf32>
    %186 = math.exp %185 : vector<8x8xf32>
    %cst_102 = arith.constant dense<0.000000e+00> : vector<8xf32>
    %187 = vector.multi_reduction <add>, %186, %cst_102 [1] : vector<8x8xf32> to vector<8xf32>
    %188 = vector.shape_cast %187 : vector<8xf32> to vector<8x1xf32>
    %189 = tpu.reciprocal %188 {approx = true} : vector<8x1xf32> -> vector<8x1xf32>
    %190 = vector.broadcast %189 : vector<8x1xf32> to vector<8x8xf32>
    %191 = arith.mulf %186, %190 : vector<8x8xf32>
    %c1_103 = arith.constant 1 : index
    %c1_104 = arith.constant 1 : index
    %c0_105 = arith.constant 0 : index
    %c0_106 = arith.constant 0 : index
    %192 = vector.load %arg12[%c1_103, %c1_104, %c0_105, %c0_106] : memref<2x4x8x8xf32, #tpu.memory_space<vmem>>, vector<1x1x8x8xf32>
    %193 = vector.shape_cast %192 : vector<1x1x8x8xf32> to vector<8x8xf32>
    %194 = vector.shape_cast %191 : vector<8x8xf32> to vector<1x1x8x8xf32>
    tpu.vector_store %arg12[%c1_103, %c1_104, %c0_105, %c0_106], %194 {strides = array<i32>} : memref<2x4x8x8xf32, #tpu.memory_space<vmem>>, vector<1x1x8x8xf32>,
    %cst_107 = arith.constant dense<0.000000e+00> : vector<8x8xf32>
    %195 = tpu.matmul %191, %180, %cst_107 {dimension_numbers = #tpu.dot_dimension_numbers<[1], [0], [0], [1], [0, 0, 1, 1], [], []>} : vector<8x8xf32>, vector<8x8xf32>, vector<8x8xf32> -> vector<8x8xf32>
    %c8_108 = arith.constant 8 : index
    %c0_109 = arith.constant 0 : index
    %196 = vector.load %arg8[%c8_108, %c0_109] : memref<32x32xf32, #tpu.memory_space<vmem>>, vector<8x32xf32>
    %cst_110 = arith.constant dense<0.000000e+00> : vector<8x32xf32>
    %197 = tpu.matmul %195, %196, %cst_110 {dimension_numbers = #tpu.dot_dimension_numbers<[1], [0], [0], [1], [0, 0, 1, 1], [], []>} : vector<8x8xf32>, vector<8x32xf32>, vector<8x32xf32> -> vector<8x32xf32>
    %198 = arith.addf %177, %197 : vector<8x32xf32>
    %199 = vector.extract_strided_slice %152 {offsets = [0, 16], sizes = [8, 8], strides = [1, 1]} : vector<8x32xf32> to vector<8x8xf32>
    %200 = vector.extract_strided_slice %154 {offsets = [0, 16], sizes = [8, 8], strides = [1, 1]} : vector<8x32xf32> to vector<8x8xf32>
    %201 = vector.extract_strided_slice %156 {offsets = [0, 16], sizes = [8, 8], strides = [1, 1]} : vector<8x32xf32> to vector<8x8xf32>
    %cst_111 = arith.constant dense<0.000000e+00> : vector<8x8xf32>
    %202 = tpu.matmul %199, %200, %cst_111 {dimension_numbers = #tpu.dot_dimension_numbers<[1], [1], [0], [0], [0, 0, 1, 0], [], []>} : vector<8x8xf32>, vector<8x8xf32>, vector<8x8xf32> -> vector<8x8xf32>
    %cst_112 = arith.constant dense<0xFF800000> : vector<8xf32>
    %203 = vector.multi_reduction <maximumf>, %202, %cst_112 [1] : vector<8x8xf32> to vector<8xf32>
    %204 = vector.shape_cast %203 : vector<8xf32> to vector<8x1xf32>
    %205 = vector.broadcast %204 : vector<8x1xf32> to vector<8x8xf32>
    %206 = arith.subf %202, %205 : vector<8x8xf32>
    %207 = math.exp %206 : vector<8x8xf32>
    %cst_113 = arith.constant dense<0.000000e+00> : vector<8xf32>
    %208 = vector.multi_reduction <add>, %207, %cst_113 [1] : vector<8x8xf32> to vector<8xf32>
    %209 = vector.shape_cast %208 : vector<8xf32> to vector<8x1xf32>
    %210 = tpu.reciprocal %209 {approx = true} : vector<8x1xf32> -> vector<8x1xf32>
    %211 = vector.broadcast %210 : vector<8x1xf32> to vector<8x8xf32>
    %212 = arith.mulf %207, %211 : vector<8x8xf32>
    %c1_114 = arith.constant 1 : index
    %c2_115 = arith.constant 2 : index
    %c0_116 = arith.constant 0 : index
    %c0_117 = arith.constant 0 : index
    %213 = vector.load %arg12[%c1_114, %c2_115, %c0_116, %c0_117] : memref<2x4x8x8xf32, #tpu.memory_space<vmem>>, vector<1x1x8x8xf32>
    %214 = vector.shape_cast %213 : vector<1x1x8x8xf32> to vector<8x8xf32>
    %215 = vector.shape_cast %212 : vector<8x8xf32> to vector<1x1x8x8xf32>
    tpu.vector_store %arg12[%c1_114, %c2_115, %c0_116, %c0_117], %215 {strides = array<i32>} : memref<2x4x8x8xf32, #tpu.memory_space<vmem>>, vector<1x1x8x8xf32>,
    %cst_118 = arith.constant dense<0.000000e+00> : vector<8x8xf32>
    %216 = tpu.matmul %212, %201, %cst_118 {dimension_numbers = #tpu.dot_dimension_numbers<[1], [0], [0], [1], [0, 0, 1, 1], [], []>} : vector<8x8xf32>, vector<8x8xf32>, vector<8x8xf32> -> vector<8x8xf32>
    %c16_119 = arith.constant 16 : index
    %c0_120 = arith.constant 0 : index
    %217 = vector.load %arg8[%c16_119, %c0_120] : memref<32x32xf32, #tpu.memory_space<vmem>>, vector<8x32xf32>
    %cst_121 = arith.constant dense<0.000000e+00> : vector<8x32xf32>
    %218 = tpu.matmul %216, %217, %cst_121 {dimension_numbers = #tpu.dot_dimension_numbers<[1], [0], [0], [1], [0, 0, 1, 1], [], []>} : vector<8x8xf32>, vector<8x32xf32>, vector<8x32xf32> -> vector<8x32xf32>
    %219 = arith.addf %198, %218 : vector<8x32xf32>
    %220 = vector.extract_strided_slice %152 {offsets = [0, 24], sizes = [8, 8], strides = [1, 1]} : vector<8x32xf32> to vector<8x8xf32>
    %221 = vector.extract_strided_slice %154 {offsets = [0, 24], sizes = [8, 8], strides = [1, 1]} : vector<8x32xf32> to vector<8x8xf32>
    %222 = vector.extract_strided_slice %156 {offsets = [0, 24], sizes = [8, 8], strides = [1, 1]} : vector<8x32xf32> to vector<8x8xf32>
    %cst_122 = arith.constant dense<0.000000e+00> : vector<8x8xf32>
    %223 = tpu.matmul %220, %221, %cst_122 {dimension_numbers = #tpu.dot_dimension_numbers<[1], [1], [0], [0], [0, 0, 1, 0], [], []>} : vector<8x8xf32>, vector<8x8xf32>, vector<8x8xf32> -> vector<8x8xf32>
    %cst_123 = arith.constant dense<0xFF800000> : vector<8xf32>
    %224 = vector.multi_reduction <maximumf>, %223, %cst_123 [1] : vector<8x8xf32> to vector<8xf32>
    %225 = vector.shape_cast %224 : vector<8xf32> to vector<8x1xf32>
    %226 = vector.broadcast %225 : vector<8x1xf32> to vector<8x8xf32>
    %227 = arith.subf %223, %226 : vector<8x8xf32>
    %228 = math.exp %227 : vector<8x8xf32>
    %cst_124 = arith.constant dense<0.000000e+00> : vector<8xf32>
    %229 = vector.multi_reduction <add>, %228, %cst_124 [1] : vector<8x8xf32> to vector<8xf32>
    %230 = vector.shape_cast %229 : vector<8xf32> to vector<8x1xf32>
    %231 = tpu.reciprocal %230 {approx = true} : vector<8x1xf32> -> vector<8x1xf32>
    %232 = vector.broadcast %231 : vector<8x1xf32> to vector<8x8xf32>
    %233 = arith.mulf %228, %232 : vector<8x8xf32>
    %c1_125 = arith.constant 1 : index
    %c3_126 = arith.constant 3 : index
    %c0_127 = arith.constant 0 : index
    %c0_128 = arith.constant 0 : index
    %234 = vector.load %arg12[%c1_125, %c3_126, %c0_127, %c0_128] : memref<2x4x8x8xf32, #tpu.memory_space<vmem>>, vector<1x1x8x8xf32>
    %235 = vector.shape_cast %234 : vector<1x1x8x8xf32> to vector<8x8xf32>
    %236 = vector.shape_cast %233 : vector<8x8xf32> to vector<1x1x8x8xf32>
    tpu.vector_store %arg12[%c1_125, %c3_126, %c0_127, %c0_128], %236 {strides = array<i32>} : memref<2x4x8x8xf32, #tpu.memory_space<vmem>>, vector<1x1x8x8xf32>,
    %cst_129 = arith.constant dense<0.000000e+00> : vector<8x8xf32>
    %237 = tpu.matmul %233, %222, %cst_129 {dimension_numbers = #tpu.dot_dimension_numbers<[1], [0], [0], [1], [0, 0, 1, 1], [], []>} : vector<8x8xf32>, vector<8x8xf32>, vector<8x8xf32> -> vector<8x8xf32>
    %c24_130 = arith.constant 24 : index
    %c0_131 = arith.constant 0 : index
    %238 = vector.load %arg8[%c24_130, %c0_131] : memref<32x32xf32, #tpu.memory_space<vmem>>, vector<8x32xf32>
    %cst_132 = arith.constant dense<0.000000e+00> : vector<8x32xf32>
    %239 = tpu.matmul %237, %238, %cst_132 {dimension_numbers = #tpu.dot_dimension_numbers<[1], [0], [0], [1], [0, 0, 1, 1], [], []>} : vector<8x8xf32>, vector<8x32xf32>, vector<8x32xf32> -> vector<8x32xf32>
    %240 = arith.addf %219, %239 : vector<8x32xf32>
    %c1_133 = arith.constant 1 : index
    %c0_134 = arith.constant 0 : index
    %c0_135 = arith.constant 0 : index
    %241 = vector.load %arg11[%c1_133, %c0_134, %c0_135] : memref<2x8x32xf32, #tpu.memory_space<vmem>>, vector<1x8x32xf32>
    %242 = vector.shape_cast %241 : vector<1x8x32xf32> to vector<8x32xf32>
    %243 = vector.shape_cast %240 : vector<8x32xf32> to vector<1x8x32xf32>
    tpu.vector_store %arg11[%c1_133, %c0_134, %c0_135], %243 {strides = array<i32>} : memref<2x8x32xf32, #tpu.memory_space<vmem>>, vector<1x8x32xf32>,
    return
  }
  func.func @transform_0(%arg0: i32, %arg1: i32) -> (i32, i32, i32) {
    %c0_i32 = arith.constant 0 : i32
    %c0_i32_0 = arith.constant 0 : i32
    return %arg0, %arg1, %c0_i32 : i32, i32, i32
  }
  func.func @transform_1(%arg0: i32, %arg1: i32) -> (i32, i32, i32) {
    %c0_i32 = arith.constant 0 : i32
    %c0_i32_0 = arith.constant 0 : i32
    %c0_i32_1 = arith.constant 0 : i32
    return %arg0, %c0_i32, %c0_i32_0 : i32, i32, i32
  }
  func.func @transform_2(%arg0: i32, %arg1: i32) -> (i32, i32, i32) {
    %c0_i32 = arith.constant 0 : i32
    %c0_i32_0 = arith.constant 0 : i32
    %c0_i32_1 = arith.constant 0 : i32
    return %arg0, %c0_i32, %c0_i32_0 : i32, i32, i32
  }
  func.func @transform_3(%arg0: i32, %arg1: i32) -> (i32, i32) {
    %c0_i32 = arith.constant 0 : i32
    %c0_i32_0 = arith.constant 0 : i32
    %c0_i32_1 = arith.constant 0 : i32
    return %c0_i32, %c0_i32_0 : i32, i32
  }
  func.func @transform_4(%arg0: i32, %arg1: i32) -> (i32, i32) {
    %c0_i32 = arith.constant 0 : i32
    %c0_i32_0 = arith.constant 0 : i32
    %c0_i32_1 = arith.constant 0 : i32
    return %c0_i32, %c0_i32_0 : i32, i32
  }
  func.func @transform_5(%arg0: i32, %arg1: i32) -> (i32, i32) {
    %c0_i32 = arith.constant 0 : i32
    %c0_i32_0 = arith.constant 0 : i32
    %c0_i32_1 = arith.constant 0 : i32
    return %c0_i32, %c0_i32_0 : i32, i32
  }
  func.func @transform_6(%arg0: i32, %arg1: i32) -> (i32, i32) {
    %c0_i32 = arith.constant 0 : i32
    %c0_i32_0 = arith.constant 0 : i32
    %c0_i32_1 = arith.constant 0 : i32
    return %c0_i32, %c0_i32_0 : i32, i32
  }
  func.func @transform_7(%arg0: i32, %arg1: i32) -> (i32, i32) {
    %c0_i32 = arith.constant 0 : i32
    %c0_i32_0 = arith.constant 0 : i32
    %c0_i32_1 = arith.constant 0 : i32
    return %c0_i32, %c0_i32_0 : i32, i32
  }
  func.func @transform_8(%arg0: i32, %arg1: i32) -> (i32, i32) {
    %c0_i32 = arith.constant 0 : i32
    %c0_i32_0 = arith.constant 0 : i32
    %c0_i32_1 = arith.constant 0 : i32
    return %c0_i32, %c0_i32_0 : i32, i32
  }
  func.func @transform_9(%arg0: i32, %arg1: i32) -> (i32, i32, i32) {
    %c0_i32 = arith.constant 0 : i32
    %c0_i32_0 = arith.constant 0 : i32
    return %arg0, %arg1, %c0_i32 : i32, i32, i32
  }
  func.func @transform_10(%arg0: i32, %arg1: i32) -> (i32, i32, i32, i32) {
    %c0_i32 = arith.constant 0 : i32
    %c0_i32_0 = arith.constant 0 : i32
    %c0_i32_1 = arith.constant 0 : i32
    return %arg0, %c0_i32, %arg1, %c0_i32_0 : i32, i32, i32, i32
  }
}

</mosaic_0001>

<llo_original>
// kernel: tpu_custom_call.1
$region0: #{tpu_custom_call.1}
  #allocation0 [shape = 'u32[]', space=smem, size = 0x4, offset = 0x4, fixed_abs, tag = 'smem constant byte address 0x4 - core index']
  #allocation1 [shape = 'u32[144,128]{1,0:T(1,128)}', space=vmem, size = 0x12000, scoped, tag = 'internal scratch']
  %s0 = inlined_call_operand.hbm [shape: f32[2,8,32], index: 0, kind: input, shape index: {}]
  %s1 = inlined_call_operand.hbm [shape: f32[2,8,32], index: 1, kind: input, shape index: {}]
  %s2 = inlined_call_operand.hbm [shape: f32[2,8,32], index: 2, kind: input, shape index: {}]
  %s3 = inlined_call_operand.hbm [shape: f32[32,32], index: 3, kind: input, shape index: {}]
  %s4 = inlined_call_operand.hbm [shape: f32[32,32], index: 4, kind: input, shape index: {}]
  %s5 = inlined_call_operand.hbm [shape: f32[32,32], index: 5, kind: input, shape index: {}]
  %s6 = inlined_call_operand.hbm [shape: f32[32,32], index: 6, kind: input, shape index: {}]
  %s7 = inlined_call_operand.vmem [shape: f32[1,32], index: 7, kind: input, shape index: {}]
  %s8 = inlined_call_operand.vmem [shape: f32[1,32], index: 8, kind: input, shape index: {}]
  %s9 = inlined_call_operand.hbm [shape: f32[2,8,32], index: 9, kind: output, shape index: {0}]
  %s10 = inlined_call_operand.hbm [shape: f32[2,4,8,8], index: 10, kind: output, shape index: {1}]
  %11 = xla_tuple %s9, %s10
  %s12 = sld [smem:[#allocation0]]
  $region82: #{tpu_custom_call.1} parent=0
    _
  %s14 = ssub.s32 1, %s12
  %s15 = scalar_select 0, %s14, %s12
  $region1: #{tpu_custom_call.1} parent=0
    #allocation2 [shape = 'u8[8192]{0}', space=vmem, size = 0x2000, scoped, tag = 'input window, operand 0, single buffered']
    #allocation3 [shape = 's32[1]{0}', space=sflag, size = 0x4, scoped, tag = 'scoped memory for tpu_custom_call.1']
    #allocation4 [shape = 's32[1]{0}', space=sflag, size = 0x4, scoped, tag = 'scoped memory for tpu_custom_call.1']
    #allocation5 [shape = 'u8[8192]{0}', space=vmem, size = 0x2000, scoped, tag = 'input window, operand 1, single buffered']
    #allocation6 [shape = 's32[1]{0}', space=sflag, size = 0x4, scoped, tag = 'scoped memory for tpu_custom_call.1']
    #allocation7 [shape = 'u8[8192]{0}', space=vmem, size = 0x2000, scoped, tag = 'input window, operand 2, single buffered']
    #allocation8 [shape = 'u8[16384]{0}', space=vmem, size = 0x4000, scoped, tag = 'input window, operand 3, single buffered']
    #allocation9 [shape = 's32[1]{0}', space=sflag, size = 0x4, scoped, tag = 'scoped memory for tpu_custom_call.1']
    #allocation10 [shape = 'u8[16384]{0}', space=vmem, size = 0x4000, scoped, tag = 'input window, operand 4, single buffered']
    #allocation11 [shape = 'u8[16384]{0}', space=vmem, size = 0x4000, scoped, tag = 'input window, operand 5, single buffered']
    #allocation12 [shape = 's32[1]{0}', space=sflag, size = 0x4, scoped, tag = 'scoped memory for tpu_custom_call.1']
    #allocation13 [shape = 'u8[16384]{0}', space=vmem, size = 0x4000, scoped, tag = 'input window, operand 6, single buffered']
    #allocation14 [shape = 'u8[8192]{0}', space=vmem, size = 0x2000, scoped, tag = 'output window, operand 0, single buffered']
    #allocation15 [shape = 'u8[32768]{0}', space=vmem, size = 0x8000, scoped, tag = 'output window, operand 1, single buffered']
    #allocation16 [shape = 's32[1]{0}', space=sflag, size = 0x4, scoped, tag = 'scoped memory for tpu_custom_call.1']
    %16 = vsyncpa [#allocation3], 0
    %17 = vsyncpa [#allocation6], 0
    %18 = vsyncpa [#allocation9], 0
    %19 = vsyncpa [#allocation12], 0
    %20 = vsyncpa [#allocation4], 0
    %21 = vsyncpa [#allocation16], 0
    // Predicated region
    $region2: #{tpu_custom_call.1} parent=1 // pred_check
      _
    $region3: #{tpu_custom_call.1} parent=1 // pred_check_branch
      %23 = sbr.rel (0) target = $region5
    $region4: #{tpu_custom_call.1} parent=1 // pred_region
      %s25 = ssub.s32 256, 256
      %26 = vsyncadd [#allocation3], %s25
      %s27 = sshll.u32 [#allocation2], 4
      %s28 = int_to_ptr.vmem [resolvable:$true] %s27
      %33 = dma.hbm_to_vmem [thread:$0]  %s0, 256, %s28, [#allocation3], 128, 128, 8
    $region5: #{tpu_custom_call.1} parent=1 // pred_fallthru
      _
    // Predicated region
    $region6: #{tpu_custom_call.1} parent=1 // pred_check
      _
    $region7: #{tpu_custom_call.1} parent=1 // pred_check_branch
      %35 = sbr.rel (0) target = $region9
    $region8: #{tpu_custom_call.1} parent=1 // pred_region
      %s37 = ssub.s32 256, 256
      %38 = vsyncadd [#allocation6], %s37
      %s39 = sshll.u32 [#allocation5], 4
      %s40 = int_to_ptr.vmem [resolvable:$true] %s39
      %45 = dma.hbm_to_vmem [thread:$0]  %s1, 256, %s40, [#allocation6], 128, 128, 8
    $region9: #{tpu_custom_call.1} parent=1 // pred_fallthru
      _
    // Predicated region
    $region10: #{tpu_custom_call.1} parent=1 // pred_check
      _
    $region11: #{tpu_custom_call.1} parent=1 // pred_check_branch
      %47 = sbr.rel (0) target = $region13
    $region12: #{tpu_custom_call.1} parent=1 // pred_region
      %s49 = ssub.s32 256, 256
      %50 = vsyncadd [#allocation6], %s49
      %s51 = sshll.u32 [#allocation7], 4
      %s52 = int_to_ptr.vmem [resolvable:$true] %s51
      %57 = dma.hbm_to_vmem [thread:$0]  %s2, 256, %s52, [#allocation6], 128, 128, 8
    $region13: #{tpu_custom_call.1} parent=1 // pred_fallthru
      _
    // Predicated region
    $region14: #{tpu_custom_call.1} parent=1 // pred_check
      _
    $region15: #{tpu_custom_call.1} parent=1 // pred_check_branch
      %59 = sbr.rel (0) target = $region17
    $region16: #{tpu_custom_call.1} parent=1 // pred_region
      %s61 = ssub.s32 512, 512
      %62 = vsyncadd [#allocation9], %s61
      %s63 = sshll.u32 [#allocation8], 4
      %s64 = int_to_ptr.vmem [resolvable:$true] %s63
      %69 = dma.hbm_to_vmem [thread:$0]  %s3, 512, %s64, [#allocation9], 128, 128, 8
    $region17: #{tpu_custom_call.1} parent=1 // pred_fallthru
      _
    // Predicated region
    $region18: #{tpu_custom_call.1} parent=1 // pred_check
      _
    $region19: #{tpu_custom_call.1} parent=1 // pred_check_branch
      %71 = sbr.rel (0) target = $region21
    $region20: #{tpu_custom_call.1} parent=1 // pred_region
      %s73 = ssub.s32 512, 512
      %74 = vsyncadd [#allocation9], %s73
      %s75 = sshll.u32 [#allocation10], 4
      %s76 = int_to_ptr.vmem [resolvable:$true] %s75
      %81 = dma.hbm_to_vmem [thread:$0]  %s4, 512, %s76, [#allocation9], 128, 128, 8
    $region21: #{tpu_custom_call.1} parent=1 // pred_fallthru
      _
    // Predicated region
    $region22: #{tpu_custom_call.1} parent=1 // pred_check
      _
    $region23: #{tpu_custom_call.1} parent=1 // pred_check_branch
      %83 = sbr.rel (0) target = $region25
    $region24: #{tpu_custom_call.1} parent=1 // pred_region
      %s85 = ssub.s32 512, 512
      %86 = vsyncadd [#allocation12], %s85
      %s87 = sshll.u32 [#allocation11], 4
      %s88 = int_to_ptr.vmem [resolvable:$true] %s87
      %93 = dma.hbm_to_vmem [thread:$0]  %s5, 512, %s88, [#allocation12], 128, 128, 8
    $region25: #{tpu_custom_call.1} parent=1 // pred_fallthru
      _
    // Predicated region
    $region26: #{tpu_custom_call.1} parent=1 // pred_check
      _
    $region27: #{tpu_custom_call.1} parent=1 // pred_check_branch
      %95 = sbr.rel (0) target = $region29
    $region28: #{tpu_custom_call.1} parent=1 // pred_region
      %s97 = ssub.s32 512, 512
      %98 = vsyncadd [#allocation12], %s97
      %s99 = sshll.u32 [#allocation13], 4
      %s100 = int_to_ptr.vmem [resolvable:$true] %s99
      %105 = dma.hbm_to_vmem [thread:$0]  %s6, 512, %s100, [#allocation12], 128, 128, 8
    $region29: #{tpu_custom_call.1} parent=1 // pred_fallthru
      _
    // Predicated region
    $region30: #{tpu_custom_call.1} parent=1 // pred_check
      _
    $region31: #{tpu_custom_call.1} parent=1 // pred_check_branch
      %107 = sbr.rel (0) target = $region33
    $region32: #{tpu_custom_call.1} parent=1 // pred_region
      _
    $region33: #{tpu_custom_call.1} parent=1 // pred_fallthru
      _
    // Predicated region
    $region34: #{tpu_custom_call.1} parent=1 // pred_check
      _
    $region35: #{tpu_custom_call.1} parent=1 // pred_check_branch
      %109 = sbr.rel (0) target = $region37
    $region36: #{tpu_custom_call.1} parent=1 // pred_region
      _
    $region37: #{tpu_custom_call.1} parent=1 // pred_fallthru
      _
    // Predicated region
    $region38: #{tpu_custom_call.1} parent=1 // pred_check
      _
    $region39: #{tpu_custom_call.1} parent=1 // pred_check_branch
      %111 = sbr.rel (0) target = $region41
    $region40: #{tpu_custom_call.1} parent=1 // pred_region
      %112 = dma.done [#allocation3], 256
    $region41: #{tpu_custom_call.1} parent=1 // pred_fallthru
      _
    // Predicated region
    $region42: #{tpu_custom_call.1} parent=1 // pred_check
      _
    $region43: #{tpu_custom_call.1} parent=1 // pred_check_branch
      %114 = sbr.rel (0) target = $region45
    $region44: #{tpu_custom_call.1} parent=1 // pred_region
      %115 = dma.done [#allocation6], 256
    $region45: #{tpu_custom_call.1} parent=1 // pred_fallthru
      _
    // Predicated region
    $region46: #{tpu_custom_call.1} parent=1 // pred_check
      _
    $region47: #{tpu_custom_call.1} parent=1 // pred_check_branch
      %117 = sbr.rel (0) target = $region49
    $region48: #{tpu_custom_call.1} parent=1 // pred_region
      %118 = dma.done [#allocation6], 256
    $region49: #{tpu_custom_call.1} parent=1 // pred_fallthru
      _
    // Predicated region
    $region50: #{tpu_custom_call.1} parent=1 // pred_check
      _
    $region51: #{tpu_custom_call.1} parent=1 // pred_check_branch
      %120 = sbr.rel (0) target = $region53
    $region52: #{tpu_custom_call.1} parent=1 // pred_region
      %121 = dma.done [#allocation9], 512
    $region53: #{tpu_custom_call.1} parent=1 // pred_fallthru
      _
    // Predicated region
    $region54: #{tpu_custom_call.1} parent=1 // pred_check
      _
    $region55: #{tpu_custom_call.1} parent=1 // pred_check_branch
      %123 = sbr.rel (0) target = $region57
    $region56: #{tpu_custom_call.1} parent=1 // pred_region
      %124 = dma.done [#allocation9], 512
    $region57: #{tpu_custom_call.1} parent=1 // pred_fallthru
      _
    // Predicated region
    $region58: #{tpu_custom_call.1} parent=1 // pred_check
      _
    $region59: #{tpu_custom_call.1} parent=1 // pred_check_branch
      %126 = sbr.rel (0) target = $region61
    $region60: #{tpu_custom_call.1} parent=1 // pred_region
      %127 = dma.done [#allocation12], 512
    $region61: #{tpu_custom_call.1} parent=1 // pred_fallthru
      _
    // Predicated region
    $region62: #{tpu_custom_call.1} parent=1 // pred_check
      _
    $region63: #{tpu_custom_call.1} parent=1 // pred_check_branch
      %129 = sbr.rel (0) target = $region65
    $region64: #{tpu_custom_call.1} parent=1 // pred_region
      %130 = dma.done [#allocation12], 512
    $region65: #{tpu_custom_call.1} parent=1 // pred_fallthru
      _
    %v131 = vld [vmem:[%s7] sm:$0x1]
    %v132 = vld [vmem:[%s8] sm:$0x1]
    %v133 = vld [vmem:[#allocation2] sm:$0xff]
    %v134 = vld [vmem:[#allocation5] sm:$0xff]
    %v135 = vld [vmem:[#allocation7] sm:$0xff]
    %vm136 = vcmask 261120
    %v137 = vsel %vm136, %v133, 0.0
    %138 = vadd.xlane.f32.xlu0 %v137
    %v139 = vpop.xlane.xlu0 %138
    %v140 = vrcp.pop 32.0
    %v141 = vmul.f32 %v139, %v140
    %v142 = vsub.f32 %v133, %v141
    %v143 = vmul.f32 %v142, %v142
    %v144 = vsel %vm136, %v143, 0.0
    %145 = vadd.xlane.f32.xlu0 %v144
    %v146 = vpop.xlane.xlu0 %145
    %v147 = vmul.f32 %v146, %v140
    %v148 = vadd.f32 %v147, 1e-06
    %v149 = vrsqrt.pop %v148
    %v150 = vmul.f32 %v142, %v149
    %v152 = vlaneseq
    %v153 = vshrl.u32 %v152, 7
    %v154 = vsub.s32 0, %v153
    %v155 = vrot.slane %v131, %v154
    %v157 = vmul.f32 %v150, %v155
    %v159 = vlaneseq
    %v160 = vshrl.u32 %v159, 7
    %v161 = vsub.s32 0, %v160
    %v162 = vrot.slane %v132, %v161
    %v164 = vadd.f32 %v157, %v162
    %v165 = vld [vmem:[#allocation8] sm:$0xff]
    %v166 = vld [vmem:[#allocation8 + $0x8] sm:$0xff]
    %v167 = vld [vmem:[#allocation8 + $0x10] sm:$0xff]
    %v168 = vld [vmem:[#allocation8 + $0x18] sm:$0xff]
    %v170 = vsel %vm136, %v164, 0
    %172 = vmatprep.subr.mxu0 0.0
    %173 = vmatpush1.msra.mxu0 %v165
    %174 = vmatprep.subr.mxu0 0.0
    %175 = vmatpush1.msra.mxu0 %v166
    %176 = vmatprep.subr.mxu0 0.0
    %177 = vmatpush1.msra.mxu0 %v167
    %178 = vmatprep.subr.mxu0 0.0
    %179 = vmatpush1.msra.mxu0 %v168
    %180 = vmatprep.subr.mxu0 0.0
    %181 = vmatpush1.msra.mxu0 0.0
    %182 = vmatprep.subr.mxu0 0.0
    %183 = vmatpush1.msra.mxu0 0.0
    %184 = vmatprep.subr.mxu0 0.0
    %185 = vmatpush1.msra.mxu0 0.0
    %186 = vmatprep.subr.mxu0 0.0
    %187 = vmatpush1.msra.mxu0 0.0
    %188 = vmatprep.subr.mxu0 0.0
    %189 = vmatpush1.msra.mxu0 0.0
    %190 = vmatprep.subr.mxu0 0.0
    %191 = vmatpush1.msra.mxu0 0.0
    %192 = vmatprep.subr.mxu0 0.0
    %193 = vmatpush1.msra.mxu0 0.0
    %194 = vmatprep.subr.mxu0 0.0
    %195 = vmatpush1.msra.mxu0 0.0
    %196 = vmatprep.subr.mxu0 0.0
    %197 = vmatpush1.msra.mxu0 0.0
    %198 = vmatprep.subr.mxu0 0.0
    %199 = vmatpush1.msra.mxu0 0.0
    %200 = vmatprep.subr.mxu0 0.0
    %201 = vmatpush1.msra.mxu0 0.0
    %202 = vmatprep.subr.mxu0 0.0
    %203 = vmatpush1.msra.mxu0 0.0
    %204 = vmatprep.subr.mxu0 0.0
    %205 = vmatpush1.msra.mxu0 0.0
    %206 = vmatprep.subr.mxu0 0.0
    %207 = vmatpush1.msra.mxu0 0.0
    %208 = vmatprep.subr.mxu0 0.0
    %209 = vmatpush1.msra.mxu0 0.0
    %210 = vmatprep.subr.mxu0 0.0
    %211 = vmatpush1.msra.mxu0 0.0
    %212 = vmatprep.subr.mxu0 0.0
    %213 = vmatpush1.msra.mxu0 0.0
    %214 = vmatprep.subr.mxu0 0.0
    %215 = vmatpush1.msra.mxu0 0.0
    %216 = vmatprep.subr.mxu0 0.0
    %217 = vmatpush1.msra.mxu0 0.0
    %218 = vmatprep.subr.mxu0 0.0
    %219 = vmatpush1.msra.mxu0 0.0
    %220 = vmatprep.subr.mxu0 0.0
    %221 = vmatpush1.msra.mxu0 0.0
    %222 = vmatprep.subr.mxu0 0.0
    %223 = vmatpush1.msra.mxu0 0.0
    %224 = vmatprep.subr.mxu0 0.0
    %225 = vmatpush1.msra.mxu0 0.0
    %226 = vmatprep.subr.mxu0 0.0
    %227 = vmatpush1.msra.mxu0 0.0
    %228 = vmatprep.subr.mxu0 0.0
    %229 = vmatpush1.msra.mxu0 0.0
    %230 = vmatprep.subr.mxu0 0.0
    %231 = vmatpush1.msra.mxu0 0.0
    %232 = vmatprep.subr.mxu0 0.0
    %233 = vmatpush1.msra.mxu0 0.0
    %234 = vmatprep.subr.mxu0 0.0
    %235 = vmatpush1.msra.mxu0 0.0
    %236 = vmatprep.mubr.f32.mxu0 0.0
    %237 = vmatmul.mubr.f32.gmra.mrb[0].mxu0 %v170
    %v238 = vpop.f32.mrb[0].mxu0
    %v239 = vadd.f32 0.0, %v238
    %v240 = vpop.f32.mrb[0].mxu0
    %241 = vdwg.mxu0
    %v242 = vld [vmem:[#allocation10] sm:$0xff]
    %v243 = vld [vmem:[#allocation10 + $0x8] sm:$0xff]
    %v244 = vld [vmem:[#allocation10 + $0x10] sm:$0xff]
    %v245 = vld [vmem:[#allocation10 + $0x18] sm:$0xff]
    %v247 = vsel %vm136, %v134, 0
    %249 = vmatprep.subr.mxu0 0.0
    %250 = vmatpush1.msra.mxu0 %v242
    %251 = vmatprep.subr.mxu0 0.0
    %252 = vmatpush1.msra.mxu0 %v243
    %253 = vmatprep.subr.mxu0 0.0
    %254 = vmatpush1.msra.mxu0 %v244
    %255 = vmatprep.subr.mxu0 0.0
    %256 = vmatpush1.msra.mxu0 %v245
    %257 = vmatprep.subr.mxu0 0.0
    %258 = vmatpush1.msra.mxu0 0.0
    %259 = vmatprep.subr.mxu0 0.0
    %260 = vmatpush1.msra.mxu0 0.0
    %261 = vmatprep.subr.mxu0 0.0
    %262 = vmatpush1.msra.mxu0 0.0
    %263 = vmatprep.subr.mxu0 0.0
    %264 = vmatpush1.msra.mxu0 0.0
    %265 = vmatprep.subr.mxu0 0.0
    %266 = vmatpush1.msra.mxu0 0.0
    %267 = vmatprep.subr.mxu0 0.0
    %268 = vmatpush1.msra.mxu0 0.0
    %269 = vmatprep.subr.mxu0 0.0
    %270 = vmatpush1.msra.mxu0 0.0
    %271 = vmatprep.subr.mxu0 0.0
    %272 = vmatpush1.msra.mxu0 0.0
    %273 = vmatprep.subr.mxu0 0.0
    %274 = vmatpush1.msra.mxu0 0.0
    %275 = vmatprep.subr.mxu0 0.0
    %276 = vmatpush1.msra.mxu0 0.0
    %277 = vmatprep.subr.mxu0 0.0
    %278 = vmatpush1.msra.mxu0 0.0
    %279 = vmatprep.subr.mxu0 0.0
    %280 = vmatpush1.msra.mxu0 0.0
    %281 = vmatprep.subr.mxu0 0.0
    %282 = vmatpush1.msra.mxu0 0.0
    %283 = vmatprep.subr.mxu0 0.0
    %284 = vmatpush1.msra.mxu0 0.0
    %285 = vmatprep.subr.mxu0 0.0
    %286 = vmatpush1.msra.mxu0 0.0
    %287 = vmatprep.subr.mxu0 0.0
    %288 = vmatpush1.msra.mxu0 0.0
    %289 = vmatprep.subr.mxu0 0.0
    %290 = vmatpush1.msra.mxu0 0.0
    %291 = vmatprep.subr.mxu0 0.0
    %292 = vmatpush1.msra.mxu0 0.0
    %293 = vmatprep.subr.mxu0 0.0
    %294 = vmatpush1.msra.mxu0 0.0
    %295 = vmatprep.subr.mxu0 0.0
    %296 = vmatpush1.msra.mxu0 0.0
    %297 = vmatprep.subr.mxu0 0.0
    %298 = vmatpush1.msra.mxu0 0.0
    %299 = vmatprep.subr.mxu0 0.0
    %300 = vmatpush1.msra.mxu0 0.0
    %301 = vmatprep.subr.mxu0 0.0
    %302 = vmatpush1.msra.mxu0 0.0
    %303 = vmatprep.subr.mxu0 0.0
    %304 = vmatpush1.msra.mxu0 0.0
    %305 = vmatprep.subr.mxu0 0.0
    %306 = vmatpush1.msra.mxu0 0.0
    %307 = vmatprep.subr.mxu0 0.0
    %308 = vmatpush1.msra.mxu0 0.0
    %309 = vmatprep.subr.mxu0 0.0
    %310 = vmatpush1.msra.mxu0 0.0
    %311 = vmatprep.subr.mxu0 0.0
    %312 = vmatpush1.msra.mxu0 0.0
    %313 = vmatprep.mubr.f32.mxu0 0.0
    %314 = vmatmul.mubr.f32.gmra.mrb[0].mxu0 %v247
    %v315 = vpop.f32.mrb[0].mxu0
    %v316 = vadd.f32 0.0, %v315
    %v317 = vpop.f32.mrb[0].mxu0
    %318 = vdwg.mxu0
    %v319 = vld [vmem:[#allocation11] sm:$0xff]
    %v320 = vld [vmem:[#allocation11 + $0x8] sm:$0xff]
    %v321 = vld [vmem:[#allocation11 + $0x10] sm:$0xff]
    %v322 = vld [vmem:[#allocation11 + $0x18] sm:$0xff]
    %v324 = vsel %vm136, %v135, 0
    %326 = vmatprep.subr.mxu0 0.0
    %327 = vmatpush1.msra.mxu0 %v319
    %328 = vmatprep.subr.mxu0 0.0
    %329 = vmatpush1.msra.mxu0 %v320
    %330 = vmatprep.subr.mxu0 0.0
    %331 = vmatpush1.msra.mxu0 %v321
    %332 = vmatprep.subr.mxu0 0.0
    %333 = vmatpush1.msra.mxu0 %v322
    %334 = vmatprep.subr.mxu0 0.0
    %335 = vmatpush1.msra.mxu0 0.0
    %336 = vmatprep.subr.mxu0 0.0
    %337 = vmatpush1.msra.mxu0 0.0
    %338 = vmatprep.subr.mxu0 0.0
    %339 = vmatpush1.msra.mxu0 0.0
    %340 = vmatprep.subr.mxu0 0.0
    %341 = vmatpush1.msra.mxu0 0.0
    %342 = vmatprep.subr.mxu0 0.0
    %343 = vmatpush1.msra.mxu0 0.0
    %344 = vmatprep.subr.mxu0 0.0
    %345 = vmatpush1.msra.mxu0 0.0
    %346 = vmatprep.subr.mxu0 0.0
    %347 = vmatpush1.msra.mxu0 0.0
    %348 = vmatprep.subr.mxu0 0.0
    %349 = vmatpush1.msra.mxu0 0.0
    %350 = vmatprep.subr.mxu0 0.0
    %351 = vmatpush1.msra.mxu0 0.0
    %352 = vmatprep.subr.mxu0 0.0
    %353 = vmatpush1.msra.mxu0 0.0
    %354 = vmatprep.subr.mxu0 0.0
    %355 = vmatpush1.msra.mxu0 0.0
    %356 = vmatprep.subr.mxu0 0.0
    %357 = vmatpush1.msra.mxu0 0.0
    %358 = vmatprep.subr.mxu0 0.0
    %359 = vmatpush1.msra.mxu0 0.0
    %360 = vmatprep.subr.mxu0 0.0
    %361 = vmatpush1.msra.mxu0 0.0
    %362 = vmatprep.subr.mxu0 0.0
    %363 = vmatpush1.msra.mxu0 0.0
    %364 = vmatprep.subr.mxu0 0.0
    %365 = vmatpush1.msra.mxu0 0.0
    %366 = vmatprep.subr.mxu0 0.0
    %367 = vmatpush1.msra.mxu0 0.0
    %368 = vmatprep.subr.mxu0 0.0
    %369 = vmatpush1.msra.mxu0 0.0
    %370 = vmatprep.subr.mxu0 0.0
    %371 = vmatpush1.msra.mxu0 0.0
    %372 = vmatprep.subr.mxu0 0.0
    %373 = vmatpush1.msra.mxu0 0.0
    %374 = vmatprep.subr.mxu0 0.0
    %375 = vmatpush1.msra.mxu0 0.0
    %376 = vmatprep.subr.mxu0 0.0
    %377 = vmatpush1.msra.mxu0 0.0
    %378 = vmatprep.subr.mxu0 0.0
    %379 = vmatpush1.msra.mxu0 0.0
    %380 = vmatprep.subr.mxu0 0.0
    %381 = vmatpush1.msra.mxu0 0.0
    %382 = vmatprep.subr.mxu0 0.0
    %383 = vmatpush1.msra.mxu0 0.0
    %384 = vmatprep.subr.mxu0 0.0
    %385 = vmatpush1.msra.mxu0 0.0
    %386 = vmatprep.subr.mxu0 0.0
    %387 = vmatpush1.msra.mxu0 0.0
    %388 = vmatprep.subr.mxu0 0.0
    %389 = vmatpush1.msra.mxu0 0.0
    %390 = vmatprep.mubr.f32.mxu0 0.0
    %391 = vmatmul.mubr.f32.gmra.mrb[0].mxu0 %v324
    %v392 = vpop.f32.mrb[0].mxu0
    %v393 = vadd.f32 0.0, %v392
    %v394 = vpop.f32.mrb[0].mxu0
    %395 = vdwg.mxu0
    %vm396 = vcmask 64512
    %v398 = vsel %vm396, %v239, 0
    %v401 = vsel %vm396, %v316, 0
    %403 = vmatprep.subr.mxu0 0.0
    %404 = vmatpush1.xpose.msra.mxu0 %v401
    %405 = vmatprep.subr.mxu0 0.0
    %406 = vmatpush1.xpose.msra.mxu0 0.0
    %407 = vmatprep.subr.mxu0 0.0
    %408 = vmatpush1.xpose.msra.mxu0 0.0
    %409 = vmatprep.subr.mxu0 0.0
    %410 = vmatpush1.xpose.msra.mxu0 0.0
    %411 = vmatprep.subr.mxu0 0.0
    %412 = vmatpush1.xpose.msra.mxu0 0.0
    %413 = vmatprep.subr.mxu0 0.0
    %414 = vmatpush1.xpose.msra.mxu0 0.0
    %415 = vmatprep.subr.mxu0 0.0
    %416 = vmatpush1.xpose.msra.mxu0 0.0
    %417 = vmatprep.subr.mxu0 0.0
    %418 = vmatpush1.xpose.msra.mxu0 0.0
    %419 = vmatprep.subr.mxu0 0.0
    %420 = vmatpush1.xpose.msra.mxu0 0.0
    %421 = vmatprep.subr.mxu0 0.0
    %422 = vmatpush1.xpose.msra.mxu0 0.0
    %423 = vmatprep.subr.mxu0 0.0
    %424 = vmatpush1.xpose.msra.mxu0 0.0
    %425 = vmatprep.subr.mxu0 0.0
    %426 = vmatpush1.xpose.msra.mxu0 0.0
    %427 = vmatprep.subr.mxu0 0.0
    %428 = vmatpush1.xpose.msra.mxu0 0.0
    %429 = vmatprep.subr.mxu0 0.0
    %430 = vmatpush1.xpose.msra.mxu0 0.0
    %431 = vmatprep.subr.mxu0 0.0
    %432 = vmatpush1.xpose.msra.mxu0 0.0
    %433 = vmatprep.subr.mxu0 0.0
    %434 = vmatpush1.xpose.msra.mxu0 0.0
    %435 = vmatprep.subr.mxu0 0.0
    %436 = vmatpush1.xpose.msra.mxu0 0.0
    %437 = vmatprep.subr.mxu0 0.0
    %438 = vmatpush1.xpose.msra.mxu0 0.0
    %439 = vmatprep.subr.mxu0 0.0
    %440 = vmatpush1.xpose.msra.mxu0 0.0
    %441 = vmatprep.subr.mxu0 0.0
    %442 = vmatpush1.xpose.msra.mxu0 0.0
    %443 = vmatprep.subr.mxu0 0.0
    %444 = vmatpush1.xpose.msra.mxu0 0.0
    %445 = vmatprep.subr.mxu0 0.0
    %446 = vmatpush1.xpose.msra.mxu0 0.0
    %447 = vmatprep.subr.mxu0 0.0
    %448 = vmatpush1.xpose.msra.mxu0 0.0
    %449 = vmatprep.subr.mxu0 0.0
    %450 = vmatpush1.xpose.msra.mxu0 0.0
    %451 = vmatprep.subr.mxu0 0.0
    %452 = vmatpush1.xpose.msra.mxu0 0.0
    %453 = vmatprep.subr.mxu0 0.0
    %454 = vmatpush1.xpose.msra.mxu0 0.0
    %455 = vmatprep.subr.mxu0 0.0
    %456 = vmatpush1.xpose.msra.mxu0 0.0
    %457 = vmatprep.subr.mxu0 0.0
    %458 = vmatpush1.xpose.msra.mxu0 0.0
    %459 = vmatprep.subr.mxu0 0.0
    %460 = vmatpush1.xpose.msra.mxu0 0.0
    %461 = vmatprep.subr.mxu0 0.0
    %462 = vmatpush1.xpose.msra.mxu0 0.0
    %463 = vmatprep.subr.mxu0 0.0
    %464 = vmatpush1.xpose.msra.mxu0 0.0
    %465 = vmatprep.subr.mxu0 0.0
    %466 = vmatpush1.xpose.msra.mxu0 0.0
    %467 = vmatprep.mubr.f32.mxu0 0.0
    %468 = vmatmul.mubr.f32.gmra.mrb[0].mxu0 %v398
    %v469 = vpop.f32.mrb[0].mxu0
    %v470 = vadd.f32 0.0, %v469
    %v471 = vpop.f32.mrb[0].mxu0
    %472 = vdwg.mxu0
    %v473 = vsel %vm396, %v470, -inf
    %474 = vmax.xlane.f32.xlu0 %v473
    %v475 = vpop.xlane.xlu0 %474
    %v476 = vsub.f32 %v470, %v475
    %v477 = vmul.f32 %v476, 1.442695
    %v478 = vpow.pop %v477
    %v479 = vsel %vm396, %v478, 0.0
    %480 = vadd.xlane.f32.xlu0 %v479
    %v481 = vpop.xlane.xlu0 %480
    %v482 = vrcp.pop %v481
    %v483 = vmul.f32 %v478, %v482
    %484 = vst.msk [vmem:[#allocation15] sm:$0xff] %vm396, %v483
    %v486 = vsel %vm396, %v483, 0
    %488 = vmatprep.subr.mxu0 0.0
    %489 = vmatpush1.msra.mxu0 %v393
    %490 = vmatprep.subr.mxu0 0.0
    %491 = vmatpush1.msra.mxu0 0.0
    %492 = vmatprep.subr.mxu0 0.0
    %493 = vmatpush1.msra.mxu0 0.0
    %494 = vmatprep.subr.mxu0 0.0
    %495 = vmatpush1.msra.mxu0 0.0
    %496 = vmatprep.subr.mxu0 0.0
    %497 = vmatpush1.msra.mxu0 0.0
    %498 = vmatprep.subr.mxu0 0.0
    %499 = vmatpush1.msra.mxu0 0.0
    %500 = vmatprep.subr.mxu0 0.0
    %501 = vmatpush1.msra.mxu0 0.0
    %502 = vmatprep.subr.mxu0 0.0
    %503 = vmatpush1.msra.mxu0 0.0
    %504 = vmatprep.subr.mxu0 0.0
    %505 = vmatpush1.msra.mxu0 0.0
    %506 = vmatprep.subr.mxu0 0.0
    %507 = vmatpush1.msra.mxu0 0.0
    %508 = vmatprep.subr.mxu0 0.0
    %509 = vmatpush1.msra.mxu0 0.0
    %510 = vmatprep.subr.mxu0 0.0
    %511 = vmatpush1.msra.mxu0 0.0
    %512 = vmatprep.subr.mxu0 0.0
    %513 = vmatpush1.msra.mxu0 0.0
    %514 = vmatprep.subr.mxu0 0.0
    %515 = vmatpush1.msra.mxu0 0.0
    %516 = vmatprep.subr.mxu0 0.0
    %517 = vmatpush1.msra.mxu0 0.0
    %518 = vmatprep.subr.mxu0 0.0
    %519 = vmatpush1.msra.mxu0 0.0
    %520 = vmatprep.subr.mxu0 0.0
    %521 = vmatpush1.msra.mxu0 0.0
    %522 = vmatprep.subr.mxu0 0.0
    %523 = vmatpush1.msra.mxu0 0.0
    %524 = vmatprep.subr.mxu0 0.0
    %525 = vmatpush1.msra.mxu0 0.0
    %526 = vmatprep.subr.mxu0 0.0
    %527 = vmatpush1.msra.mxu0 0.0
    %528 = vmatprep.subr.mxu0 0.0
    %529 = vmatpush1.msra.mxu0 0.0
    %530 = vmatprep.subr.mxu0 0.0
    %531 = vmatpush1.msra.mxu0 0.0
    %532 = vmatprep.subr.mxu0 0.0
    %533 = vmatpush1.msra.mxu0 0.0
    %534 = vmatprep.subr.mxu0 0.0
    %535 = vmatpush1.msra.mxu0 0.0
    %536 = vmatprep.subr.mxu0 0.0
    %537 = vmatpush1.msra.mxu0 0.0
    %538 = vmatprep.subr.mxu0 0.0
    %539 = vmatpush1.msra.mxu0 0.0
    %540 = vmatprep.subr.mxu0 0.0
    %541 = vmatpush1.msra.mxu0 0.0
    %542 = vmatprep.subr.mxu0 0.0
    %543 = vmatpush1.msra.mxu0 0.0
    %544 = vmatprep.subr.mxu0 0.0
    %545 = vmatpush1.msra.mxu0 0.0
    %546 = vmatprep.subr.mxu0 0.0
    %547 = vmatpush1.msra.mxu0 0.0
    %548 = vmatprep.subr.mxu0 0.0
    %549 = vmatpush1.msra.mxu0 0.0
    %550 = vmatprep.subr.mxu0 0.0
    %551 = vmatpush1.msra.mxu0 0.0
    %552 = vmatprep.mubr.f32.mxu0 0.0
    %553 = vmatmul.mubr.f32.gmra.mrb[0].mxu0 %v486
    %v554 = vpop.f32.mrb[0].mxu0
    %v555 = vadd.f32 0.0, %v554
    %v556 = vpop.f32.mrb[0].mxu0
    %557 = vdwg.mxu0
    %v558 = vld [vmem:[#allocation13] sm:$0xff]
    %v560 = vsel %vm396, %v555, 0
    %562 = vmatprep.subr.mxu0 0.0
    %563 = vmatpush1.msra.mxu0 %v558
    %564 = vmatprep.subr.mxu0 0.0
    %565 = vmatpush1.msra.mxu0 0.0
    %566 = vmatprep.subr.mxu0 0.0
    %567 = vmatpush1.msra.mxu0 0.0
    %568 = vmatprep.subr.mxu0 0.0
    %569 = vmatpush1.msra.mxu0 0.0
    %570 = vmatprep.subr.mxu0 0.0
    %571 = vmatpush1.msra.mxu0 0.0
    %572 = vmatprep.subr.mxu0 0.0
    %573 = vmatpush1.msra.mxu0 0.0
    %574 = vmatprep.subr.mxu0 0.0
    %575 = vmatpush1.msra.mxu0 0.0
    %576 = vmatprep.subr.mxu0 0.0
    %577 = vmatpush1.msra.mxu0 0.0
    %578 = vmatprep.subr.mxu0 0.0
    %579 = vmatpush1.msra.mxu0 0.0
    %580 = vmatprep.subr.mxu0 0.0
    %581 = vmatpush1.msra.mxu0 0.0
    %582 = vmatprep.subr.mxu0 0.0
    %583 = vmatpush1.msra.mxu0 0.0
    %584 = vmatprep.subr.mxu0 0.0
    %585 = vmatpush1.msra.mxu0 0.0
    %586 = vmatprep.subr.mxu0 0.0
    %587 = vmatpush1.msra.mxu0 0.0
    %588 = vmatprep.subr.mxu0 0.0
    %589 = vmatpush1.msra.mxu0 0.0
    %590 = vmatprep.subr.mxu0 0.0
    %591 = vmatpush1.msra.mxu0 0.0
    %592 = vmatprep.subr.mxu0 0.0
    %593 = vmatpush1.msra.mxu0 0.0
    %594 = vmatprep.subr.mxu0 0.0
    %595 = vmatpush1.msra.mxu0 0.0
    %596 = vmatprep.subr.mxu0 0.0
    %597 = vmatpush1.msra.mxu0 0.0
    %598 = vmatprep.subr.mxu0 0.0
    %599 = vmatpush1.msra.mxu0 0.0
    %600 = vmatprep.subr.mxu0 0.0
    %601 = vmatpush1.msra.mxu0 0.0
    %602 = vmatprep.subr.mxu0 0.0
    %603 = vmatpush1.msra.mxu0 0.0
    %604 = vmatprep.subr.mxu0 0.0
    %605 = vmatpush1.msra.mxu0 0.0
    %606 = vmatprep.subr.mxu0 0.0
    %607 = vmatpush1.msra.mxu0 0.0
    %608 = vmatprep.subr.mxu0 0.0
    %609 = vmatpush1.msra.mxu0 0.0
    %610 = vmatprep.subr.mxu0 0.0
    %611 = vmatpush1.msra.mxu0 0.0
    %612 = vmatprep.subr.mxu0 0.0
    %613 = vmatpush1.msra.mxu0 0.0
    %614 = vmatprep.subr.mxu0 0.0
    %615 = vmatpush1.msra.mxu0 0.0
    %616 = vmatprep.subr.mxu0 0.0
    %617 = vmatpush1.msra.mxu0 0.0
    %618 = vmatprep.subr.mxu0 0.0
    %619 = vmatpush1.msra.mxu0 0.0
    %620 = vmatprep.subr.mxu0 0.0
    %621 = vmatpush1.msra.mxu0 0.0
    %622 = vmatprep.subr.mxu0 0.0
    %623 = vmatpush1.msra.mxu0 0.0
    %624 = vmatprep.subr.mxu0 0.0
    %625 = vmatpush1.msra.mxu0 0.0
    %626 = vmatprep.mubr.f32.mxu0 0.0
    %627 = vmatmul.mubr.f32.gmra.mrb[0].mxu0 %v560
    %v628 = vpop.f32.mrb[0].mxu0
    %v629 = vadd.f32 0.0, %v628
    %v630 = vpop.f32.mrb[0].mxu0
    %631 = vdwg.mxu0
    %v632 = vadd.f32 %v133, %v629
    %633 = vrot.lane.b32.xlu0 %v239, 120
    %v634 = vpop.permute.xlu0 %633
    %635 = vrot.lane.b32.xlu0 %v316, 120
    %v636 = vpop.permute.xlu0 %635
    %v637 = vsel %vm396, %v634, 0
    %v639 = vsel %vm396, %v636, 0
    %641 = vmatprep.subr.mxu0 0.0
    %642 = vmatpush1.xpose.msra.mxu0 %v639
    %643 = vmatprep.subr.mxu0 0.0
    %644 = vmatpush1.xpose.msra.mxu0 0.0
    %645 = vmatprep.subr.mxu0 0.0
    %646 = vmatpush1.xpose.msra.mxu0 0.0
    %647 = vmatprep.subr.mxu0 0.0
    %648 = vmatpush1.xpose.msra.mxu0 0.0
    %649 = vmatprep.subr.mxu0 0.0
    %650 = vmatpush1.xpose.msra.mxu0 0.0
    %651 = vmatprep.subr.mxu0 0.0
    %652 = vmatpush1.xpose.msra.mxu0 0.0
    %653 = vmatprep.subr.mxu0 0.0
    %654 = vmatpush1.xpose.msra.mxu0 0.0
    %655 = vmatprep.subr.mxu0 0.0
    %656 = vmatpush1.xpose.msra.mxu0 0.0
    %657 = vmatprep.subr.mxu0 0.0
    %658 = vmatpush1.xpose.msra.mxu0 0.0
    %659 = vmatprep.subr.mxu0 0.0
    %660 = vmatpush1.xpose.msra.mxu0 0.0
    %661 = vmatprep.subr.mxu0 0.0
    %662 = vmatpush1.xpose.msra.mxu0 0.0
    %663 = vmatprep.subr.mxu0 0.0
    %664 = vmatpush1.xpose.msra.mxu0 0.0
    %665 = vmatprep.subr.mxu0 0.0
    %666 = vmatpush1.xpose.msra.mxu0 0.0
    %667 = vmatprep.subr.mxu0 0.0
    %668 = vmatpush1.xpose.msra.mxu0 0.0
    %669 = vmatprep.subr.mxu0 0.0
    %670 = vmatpush1.xpose.msra.mxu0 0.0
    %671 = vmatprep.subr.mxu0 0.0
    %672 = vmatpush1.xpose.msra.mxu0 0.0
    %673 = vmatprep.subr.mxu0 0.0
    %674 = vmatpush1.xpose.msra.mxu0 0.0
    %675 = vmatprep.subr.mxu0 0.0
    %676 = vmatpush1.xpose.msra.mxu0 0.0
    %677 = vmatprep.subr.mxu0 0.0
    %678 = vmatpush1.xpose.msra.mxu0 0.0
    %679 = vmatprep.subr.mxu0 0.0
    %680 = vmatpush1.xpose.msra.mxu0 0.0
    %681 = vmatprep.subr.mxu0 0.0
    %682 = vmatpush1.xpose.msra.mxu0 0.0
    %683 = vmatprep.subr.mxu0 0.0
    %684 = vmatpush1.xpose.msra.mxu0 0.0
    %685 = vmatprep.subr.mxu0 0.0
    %686 = vmatpush1.xpose.msra.mxu0 0.0
    %687 = vmatprep.subr.mxu0 0.0
    %688 = vmatpush1.xpose.msra.mxu0 0.0
    %689 = vmatprep.subr.mxu0 0.0
    %690 = vmatpush1.xpose.msra.mxu0 0.0
    %691 = vmatprep.subr.mxu0 0.0
    %692 = vmatpush1.xpose.msra.mxu0 0.0
    %693 = vmatprep.subr.mxu0 0.0
    %694 = vmatpush1.xpose.msra.mxu0 0.0
    %695 = vmatprep.subr.mxu0 0.0
    %696 = vmatpush1.xpose.msra.mxu0 0.0
    %697 = vmatprep.subr.mxu0 0.0
    %698 = vmatpush1.xpose.msra.mxu0 0.0
    %699 = vmatprep.subr.mxu0 0.0
    %700 = vmatpush1.xpose.msra.mxu0 0.0
    %701 = vmatprep.subr.mxu0 0.0
    %702 = vmatpush1.xpose.msra.mxu0 0.0
    %703 = vmatprep.subr.mxu0 0.0
    %704 = vmatpush1.xpose.msra.mxu0 0.0
    %705 = vmatprep.mubr.f32.mxu0 0.0
    %706 = vmatmul.mubr.f32.gmra.mrb[0].mxu0 %v637
    %v707 = vpop.f32.mrb[0].mxu0
    %v708 = vadd.f32 0.0, %v707
    %v709 = vpop.f32.mrb[0].mxu0
    %710 = vdwg.mxu0
    %v711 = vsel %vm396, %v708, -inf
    %712 = vmax.xlane.f32.xlu0 %v711
    %v713 = vpop.xlane.xlu0 %712
    %v714 = vsub.f32 %v708, %v713
    %v715 = vmul.f32 %v714, 1.442695
    %v716 = vpow.pop %v715
    %v717 = vsel %vm396, %v716, 0.0
    %718 = vadd.xlane.f32.xlu0 %v717
    %v719 = vpop.xlane.xlu0 %718
    %v720 = vrcp.pop %v719
    %v721 = vmul.f32 %v716, %v720
    %s722 = scalar_lea.vmem [#allocation15], 8
    %723 = vst.msk [vmem:[%s722] sm:$0xff] %vm396, %v721
    %725 = vrot.lane.b32.xlu0 %v393, 120
    %v726 = vpop.permute.xlu0 %725
    %v729 = vsel %vm396, %v721, 0
    %731 = vmatprep.subr.mxu0 0.0
    %732 = vmatpush1.msra.mxu0 %v726
    %733 = vmatprep.subr.mxu0 0.0
    %734 = vmatpush1.msra.mxu0 0.0
    %735 = vmatprep.subr.mxu0 0.0
    %736 = vmatpush1.msra.mxu0 0.0
    %737 = vmatprep.subr.mxu0 0.0
    %738 = vmatpush1.msra.mxu0 0.0
    %739 = vmatprep.subr.mxu0 0.0
    %740 = vmatpush1.msra.mxu0 0.0
    %741 = vmatprep.subr.mxu0 0.0
    %742 = vmatpush1.msra.mxu0 0.0
    %743 = vmatprep.subr.mxu0 0.0
    %744 = vmatpush1.msra.mxu0 0.0
    %745 = vmatprep.subr.mxu0 0.0
    %746 = vmatpush1.msra.mxu0 0.0
    %747 = vmatprep.subr.mxu0 0.0
    %748 = vmatpush1.msra.mxu0 0.0
    %749 = vmatprep.subr.mxu0 0.0
    %750 = vmatpush1.msra.mxu0 0.0
    %751 = vmatprep.subr.mxu0 0.0
    %752 = vmatpush1.msra.mxu0 0.0
    %753 = vmatprep.subr.mxu0 0.0
    %754 = vmatpush1.msra.mxu0 0.0
    %755 = vmatprep.subr.mxu0 0.0
    %756 = vmatpush1.msra.mxu0 0.0
    %757 = vmatprep.subr.mxu0 0.0
    %758 = vmatpush1.msra.mxu0 0.0
    %759 = vmatprep.subr.mxu0 0.0
    %760 = vmatpush1.msra.mxu0 0.0
    %761 = vmatprep.subr.mxu0 0.0
    %762 = vmatpush1.msra.mxu0 0.0
    %763 = vmatprep.subr.mxu0 0.0
    %764 = vmatpush1.msra.mxu0 0.0
    %765 = vmatprep.subr.mxu0 0.0
    %766 = vmatpush1.msra.mxu0 0.0
    %767 = vmatprep.subr.mxu0 0.0
    %768 = vmatpush1.msra.mxu0 0.0
    %769 = vmatprep.subr.mxu0 0.0
    %770 = vmatpush1.msra.mxu0 0.0
    %771 = vmatprep.subr.mxu0 0.0
    %772 = vmatpush1.msra.mxu0 0.0
    %773 = vmatprep.subr.mxu0 0.0
    %774 = vmatpush1.msra.mxu0 0.0
    %775 = vmatprep.subr.mxu0 0.0
    %776 = vmatpush1.msra.mxu0 0.0
    %777 = vmatprep.subr.mxu0 0.0
    %778 = vmatpush1.msra.mxu0 0.0
    %779 = vmatprep.subr.mxu0 0.0
    %780 = vmatpush1.msra.mxu0 0.0
    %781 = vmatprep.subr.mxu0 0.0
    %782 = vmatpush1.msra.mxu0 0.0
    %783 = vmatprep.subr.mxu0 0.0
    %784 = vmatpush1.msra.mxu0 0.0
    %785 = vmatprep.subr.mxu0 0.0
    %786 = vmatpush1.msra.mxu0 0.0
    %787 = vmatprep.subr.mxu0 0.0
    %788 = vmatpush1.msra.mxu0 0.0
    %789 = vmatprep.subr.mxu0 0.0
    %790 = vmatpush1.msra.mxu0 0.0
    %791 = vmatprep.subr.mxu0 0.0
    %792 = vmatpush1.msra.mxu0 0.0
    %793 = vmatprep.subr.mxu0 0.0
    %794 = vmatpush1.msra.mxu0 0.0
    %795 = vmatprep.mubr.f32.mxu0 0.0
    %796 = vmatmul.mubr.f32.gmra.mrb[0].mxu0 %v729
    %v797 = vpop.f32.mrb[0].mxu0
    %v798 = vadd.f32 0.0, %v797
    %v799 = vpop.f32.mrb[0].mxu0
    %800 = vdwg.mxu0
    %v801 = vld [vmem:[#allocation13 + $0x8] sm:$0xff]
    %v803 = vsel %vm396, %v798, 0
    %805 = vmatprep.subr.mxu0 0.0
    %806 = vmatpush1.msra.mxu0 %v801
    %807 = vmatprep.subr.mxu0 0.0
    %808 = vmatpush1.msra.mxu0 0.0
    %809 = vmatprep.subr.mxu0 0.0
    %810 = vmatpush1.msra.mxu0 0.0
    %811 = vmatprep.subr.mxu0 0.0
    %812 = vmatpush1.msra.mxu0 0.0
    %813 = vmatprep.subr.mxu0 0.0
    %814 = vmatpush1.msra.mxu0 0.0
    %815 = vmatprep.subr.mxu0 0.0
    %816 = vmatpush1.msra.mxu0 0.0
    %817 = vmatprep.subr.mxu0 0.0
    %818 = vmatpush1.msra.mxu0 0.0
    %819 = vmatprep.subr.mxu0 0.0
    %820 = vmatpush1.msra.mxu0 0.0
    %821 = vmatprep.subr.mxu0 0.0
    %822 = vmatpush1.msra.mxu0 0.0
    %823 = vmatprep.subr.mxu0 0.0
    %824 = vmatpush1.msra.mxu0 0.0
    %825 = vmatprep.subr.mxu0 0.0
    %826 = vmatpush1.msra.mxu0 0.0
    %827 = vmatprep.subr.mxu0 0.0
    %828 = vmatpush1.msra.mxu0 0.0
    %829 = vmatprep.subr.mxu0 0.0
    %830 = vmatpush1.msra.mxu0 0.0
    %831 = vmatprep.subr.mxu0 0.0
    %832 = vmatpush1.msra.mxu0 0.0
    %833 = vmatprep.subr.mxu0 0.0
    %834 = vmatpush1.msra.mxu0 0.0
    %835 = vmatprep.subr.mxu0 0.0
    %836 = vmatpush1.msra.mxu0 0.0
    %837 = vmatprep.subr.mxu0 0.0
    %838 = vmatpush1.msra.mxu0 0.0
    %839 = vmatprep.subr.mxu0 0.0
    %840 = vmatpush1.msra.mxu0 0.0
    %841 = vmatprep.subr.mxu0 0.0
    %842 = vmatpush1.msra.mxu0 0.0
    %843 = vmatprep.subr.mxu0 0.0
    %844 = vmatpush1.msra.mxu0 0.0
    %845 = vmatprep.subr.mxu0 0.0
    %846 = vmatpush1.msra.mxu0 0.0
    %847 = vmatprep.subr.mxu0 0.0
    %848 = vmatpush1.msra.mxu0 0.0
    %849 = vmatprep.subr.mxu0 0.0
    %850 = vmatpush1.msra.mxu0 0.0
    %851 = vmatprep.subr.mxu0 0.0
    %852 = vmatpush1.msra.mxu0 0.0
    %853 = vmatprep.subr.mxu0 0.0
    %854 = vmatpush1.msra.mxu0 0.0
    %855 = vmatprep.subr.mxu0 0.0
    %856 = vmatpush1.msra.mxu0 0.0
    %857 = vmatprep.subr.mxu0 0.0
    %858 = vmatpush1.msra.mxu0 0.0
    %859 = vmatprep.subr.mxu0 0.0
    %860 = vmatpush1.msra.mxu0 0.0
    %861 = vmatprep.subr.mxu0 0.0
    %862 = vmatpush1.msra.mxu0 0.0
    %863 = vmatprep.subr.mxu0 0.0
    %864 = vmatpush1.msra.mxu0 0.0
    %865 = vmatprep.subr.mxu0 0.0
    %866 = vmatpush1.msra.mxu0 0.0
    %867 = vmatprep.subr.mxu0 0.0
    %868 = vmatpush1.msra.mxu0 0.0
    %869 = vmatprep.mubr.f32.mxu0 0.0
    %870 = vmatmul.mubr.f32.gmra.mrb[0].mxu0 %v803
    %v871 = vpop.f32.mrb[0].mxu0
    %v872 = vadd.f32 0.0, %v871
    %v873 = vpop.f32.mrb[0].mxu0
    %874 = vdwg.mxu0
    %v875 = vadd.f32 %v632, %v872
    %876 = vrot.lane.b32.xlu0 %v239, 112
    %v877 = vpop.permute.xlu0 %876
    %878 = vrot.lane.b32.xlu0 %v316, 112
    %v879 = vpop.permute.xlu0 %878
    %v880 = vsel %vm396, %v877, 0
    %v882 = vsel %vm396, %v879, 0
    %884 = vmatprep.subr.mxu0 0.0
    %885 = vmatpush1.xpose.msra.mxu0 %v882
    %886 = vmatprep.subr.mxu0 0.0
    %887 = vmatpush1.xpose.msra.mxu0 0.0
    %888 = vmatprep.subr.mxu0 0.0
    %889 = vmatpush1.xpose.msra.mxu0 0.0
    %890 = vmatprep.subr.mxu0 0.0
    %891 = vmatpush1.xpose.msra.mxu0 0.0
    %892 = vmatprep.subr.mxu0 0.0
    %893 = vmatpush1.xpose.msra.mxu0 0.0
    %894 = vmatprep.subr.mxu0 0.0
    %895 = vmatpush1.xpose.msra.mxu0 0.0
    %896 = vmatprep.subr.mxu0 0.0
    %897 = vmatpush1.xpose.msra.mxu0 0.0
    %898 = vmatprep.subr.mxu0 0.0
    %899 = vmatpush1.xpose.msra.mxu0 0.0
    %900 = vmatprep.subr.mxu0 0.0
    %901 = vmatpush1.xpose.msra.mxu0 0.0
    %902 = vmatprep.subr.mxu0 0.0
    %903 = vmatpush1.xpose.msra.mxu0 0.0
    %904 = vmatprep.subr.mxu0 0.0
    %905 = vmatpush1.xpose.msra.mxu0 0.0
    %906 = vmatprep.subr.mxu0 0.0
    %907 = vmatpush1.xpose.msra.mxu0 0.0
    %908 = vmatprep.subr.mxu0 0.0
    %909 = vmatpush1.xpose.msra.mxu0 0.0
    %910 = vmatprep.subr.mxu0 0.0
    %911 = vmatpush1.xpose.msra.mxu0 0.0
    %912 = vmatprep.subr.mxu0 0.0
    %913 = vmatpush1.xpose.msra.mxu0 0.0
    %914 = vmatprep.subr.mxu0 0.0
    %915 = vmatpush1.xpose.msra.mxu0 0.0
    %916 = vmatprep.subr.mxu0 0.0
    %917 = vmatpush1.xpose.msra.mxu0 0.0
    %918 = vmatprep.subr.mxu0 0.0
    %919 = vmatpush1.xpose.msra.mxu0 0.0
    %920 = vmatprep.subr.mxu0 0.0
    %921 = vmatpush1.xpose.msra.mxu0 0.0
    %922 = vmatprep.subr.mxu0 0.0
    %923 = vmatpush1.xpose.msra.mxu0 0.0
    %924 = vmatprep.subr.mxu0 0.0
    %925 = vmatpush1.xpose.msra.mxu0 0.0
    %926 = vmatprep.subr.mxu0 0.0
    %927 = vmatpush1.xpose.msra.mxu0 0.0
    %928 = vmatprep.subr.mxu0 0.0
    %929 = vmatpush1.xpose.msra.mxu0 0.0
    %930 = vmatprep.subr.mxu0 0.0
    %931 = vmatpush1.xpose.msra.mxu0 0.0
    %932 = vmatprep.subr.mxu0 0.0
    %933 = vmatpush1.xpose.msra.mxu0 0.0
    %934 = vmatprep.subr.mxu0 0.0
    %935 = vmatpush1.xpose.msra.mxu0 0.0
    %936 = vmatprep.subr.mxu0 0.0
    %937 = vmatpush1.xpose.msra.mxu0 0.0
    %938 = vmatprep.subr.mxu0 0.0
    %939 = vmatpush1.xpose.msra.mxu0 0.0
    %940 = vmatprep.subr.mxu0 0.0
    %941 = vmatpush1.xpose.msra.mxu0 0.0
    %942 = vmatprep.subr.mxu0 0.0
    %943 = vmatpush1.xpose.msra.mxu0 0.0
    %944 = vmatprep.subr.mxu0 0.0
    %945 = vmatpush1.xpose.msra.mxu0 0.0
    %946 = vmatprep.subr.mxu0 0.0
    %947 = vmatpush1.xpose.msra.mxu0 0.0
    %948 = vmatprep.mubr.f32.mxu0 0.0
    %949 = vmatmul.mubr.f32.gmra.mrb[0].mxu0 %v880
    %v950 = vpop.f32.mrb[0].mxu0
    %v951 = vadd.f32 0.0, %v950
    %v952 = vpop.f32.mrb[0].mxu0
    %953 = vdwg.mxu0
    %v954 = vsel %vm396, %v951, -inf
    %955 = vmax.xlane.f32.xlu0 %v954
    %v956 = vpop.xlane.xlu0 %955
    %v957 = vsub.f32 %v951, %v956
    %v958 = vmul.f32 %v957, 1.442695
    %v959 = vpow.pop %v958
    %v960 = vsel %vm396, %v959, 0.0
    %961 = vadd.xlane.f32.xlu0 %v960
    %v962 = vpop.xlane.xlu0 %961
    %v963 = vrcp.pop %v962
    %v964 = vmul.f32 %v959, %v963
    %s965 = scalar_lea.vmem [#allocation15], 16
    %966 = vst.msk [vmem:[%s965] sm:$0xff] %vm396, %v964
    %967 = vrot.lane.b32.xlu0 %v393, 112
    %v968 = vpop.permute.xlu0 %967
    %v971 = vsel %vm396, %v964, 0
    %973 = vmatprep.subr.mxu0 0.0
    %974 = vmatpush1.msra.mxu0 %v968
    %975 = vmatprep.subr.mxu0 0.0
    %976 = vmatpush1.msra.mxu0 0.0
    %977 = vmatprep.subr.mxu0 0.0
    %978 = vmatpush1.msra.mxu0 0.0
    %979 = vmatprep.subr.mxu0 0.0
    %980 = vmatpush1.msra.mxu0 0.0
    %981 = vmatprep.subr.mxu0 0.0
    %982 = vmatpush1.msra.mxu0 0.0
    %983 = vmatprep.subr.mxu0 0.0
    %984 = vmatpush1.msra.mxu0 0.0
    %985 = vmatprep.subr.mxu0 0.0
    %986 = vmatpush1.msra.mxu0 0.0
    %987 = vmatprep.subr.mxu0 0.0
    %988 = vmatpush1.msra.mxu0 0.0
    %989 = vmatprep.subr.mxu0 0.0
    %990 = vmatpush1.msra.mxu0 0.0
    %991 = vmatprep.subr.mxu0 0.0
    %992 = vmatpush1.msra.mxu0 0.0
    %993 = vmatprep.subr.mxu0 0.0
    %994 = vmatpush1.msra.mxu0 0.0
    %995 = vmatprep.subr.mxu0 0.0
    %996 = vmatpush1.msra.mxu0 0.0
    %997 = vmatprep.subr.mxu0 0.0
    %998 = vmatpush1.msra.mxu0 0.0
    %999 = vmatprep.subr.mxu0 0.0
    %1000 = vmatpush1.msra.mxu0 0.0
    %1001 = vmatprep.subr.mxu0 0.0
    %1002 = vmatpush1.msra.mxu0 0.0
    %1003 = vmatprep.subr.mxu0 0.0
    %1004 = vmatpush1.msra.mxu0 0.0
    %1005 = vmatprep.subr.mxu0 0.0
    %1006 = vmatpush1.msra.mxu0 0.0
    %1007 = vmatprep.subr.mxu0 0.0
    %1008 = vmatpush1.msra.mxu0 0.0
    %1009 = vmatprep.subr.mxu0 0.0
    %1010 = vmatpush1.msra.mxu0 0.0
    %1011 = vmatprep.subr.mxu0 0.0
    %1012 = vmatpush1.msra.mxu0 0.0
    %1013 = vmatprep.subr.mxu0 0.0
    %1014 = vmatpush1.msra.mxu0 0.0
    %1015 = vmatprep.subr.mxu0 0.0
    %1016 = vmatpush1.msra.mxu0 0.0
    %1017 = vmatprep.subr.mxu0 0.0
    %1018 = vmatpush1.msra.mxu0 0.0
    %1019 = vmatprep.subr.mxu0 0.0
    %1020 = vmatpush1.msra.mxu0 0.0
    %1021 = vmatprep.subr.mxu0 0.0
    %1022 = vmatpush1.msra.mxu0 0.0
    %1023 = vmatprep.subr.mxu0 0.0
    %1024 = vmatpush1.msra.mxu0 0.0
    %1025 = vmatprep.subr.mxu0 0.0
    %1026 = vmatpush1.msra.mxu0 0.0
    %1027 = vmatprep.subr.mxu0 0.0
    %1028 = vmatpush1.msra.mxu0 0.0
    %1029 = vmatprep.subr.mxu0 0.0
    %1030 = vmatpush1.msra.mxu0 0.0
    %1031 = vmatprep.subr.mxu0 0.0
    %1032 = vmatpush1.msra.mxu0 0.0
    %1033 = vmatprep.subr.mxu0 0.0
    %1034 = vmatpush1.msra.mxu0 0.0
    %1035 = vmatprep.subr.mxu0 0.0
    %1036 = vmatpush1.msra.mxu0 0.0
    %1037 = vmatprep.mubr.f32.mxu0 0.0
    %1038 = vmatmul.mubr.f32.gmra.mrb[0].mxu0 %v971
    %v1039 = vpop.f32.mrb[0].mxu0
    %v1040 = vadd.f32 0.0, %v1039
    %v1041 = vpop.f32.mrb[0].mxu0
    %1042 = vdwg.mxu0
    %v1043 = vld [vmem:[#allocation13 + $0x10] sm:$0xff]
    %v1045 = vsel %vm396, %v1040, 0
    %1047 = vmatprep.subr.mxu0 0.0
    %1048 = vmatpush1.msra.mxu0 %v1043
    %1049 = vmatprep.subr.mxu0 0.0
    %1050 = vmatpush1.msra.mxu0 0.0
    %1051 = vmatprep.subr.mxu0 0.0
    %1052 = vmatpush1.msra.mxu0 0.0
    %1053 = vmatprep.subr.mxu0 0.0
    %1054 = vmatpush1.msra.mxu0 0.0
    %1055 = vmatprep.subr.mxu0 0.0
    %1056 = vmatpush1.msra.mxu0 0.0
    %1057 = vmatprep.subr.mxu0 0.0
    %1058 = vmatpush1.msra.mxu0 0.0
    %1059 = vmatprep.subr.mxu0 0.0
    %1060 = vmatpush1.msra.mxu0 0.0
    %1061 = vmatprep.subr.mxu0 0.0
    %1062 = vmatpush1.msra.mxu0 0.0
    %1063 = vmatprep.subr.mxu0 0.0
    %1064 = vmatpush1.msra.mxu0 0.0
    %1065 = vmatprep.subr.mxu0 0.0
    %1066 = vmatpush1.msra.mxu0 0.0
    %1067 = vmatprep.subr.mxu0 0.0
    %1068 = vmatpush1.msra.mxu0 0.0
    %1069 = vmatprep.subr.mxu0 0.0
    %1070 = vmatpush1.msra.mxu0 0.0
    %1071 = vmatprep.subr.mxu0 0.0
    %1072 = vmatpush1.msra.mxu0 0.0
    %1073 = vmatprep.subr.mxu0 0.0
    %1074 = vmatpush1.msra.mxu0 0.0
    %1075 = vmatprep.subr.mxu0 0.0
    %1076 = vmatpush1.msra.mxu0 0.0
    %1077 = vmatprep.subr.mxu0 0.0
    %1078 = vmatpush1.msra.mxu0 0.0
    %1079 = vmatprep.subr.mxu0 0.0
    %1080 = vmatpush1.msra.mxu0 0.0
    %1081 = vmatprep.subr.mxu0 0.0
    %1082 = vmatpush1.msra.mxu0 0.0
    %1083 = vmatprep.subr.mxu0 0.0
    %1084 = vmatpush1.msra.mxu0 0.0
    %1085 = vmatprep.subr.mxu0 0.0
    %1086 = vmatpush1.msra.mxu0 0.0
    %1087 = vmatprep.subr.mxu0 0.0
    %1088 = vmatpush1.msra.mxu0 0.0
    %1089 = vmatprep.subr.mxu0 0.0
    %1090 = vmatpush1.msra.mxu0 0.0
    %1091 = vmatprep.subr.mxu0 0.0
    %1092 = vmatpush1.msra.mxu0 0.0
    %1093 = vmatprep.subr.mxu0 0.0
    %1094 = vmatpush1.msra.mxu0 0.0
    %1095 = vmatprep.subr.mxu0 0.0
    %1096 = vmatpush1.msra.mxu0 0.0
    %1097 = vmatprep.subr.mxu0 0.0
    %1098 = vmatpush1.msra.mxu0 0.0
    %1099 = vmatprep.subr.mxu0 0.0
    %1100 = vmatpush1.msra.mxu0 0.0
    %1101 = vmatprep.subr.mxu0 0.0
    %1102 = vmatpush1.msra.mxu0 0.0
    %1103 = vmatprep.subr.mxu0 0.0
    %1104 = vmatpush1.msra.mxu0 0.0
    %1105 = vmatprep.subr.mxu0 0.0
    %1106 = vmatpush1.msra.mxu0 0.0
    %1107 = vmatprep.subr.mxu0 0.0
    %1108 = vmatpush1.msra.mxu0 0.0
    %1109 = vmatprep.subr.mxu0 0.0
    %1110 = vmatpush1.msra.mxu0 0.0
    %1111 = vmatprep.mubr.f32.mxu0 0.0
    %1112 = vmatmul.mubr.f32.gmra.mrb[0].mxu0 %v1045
    %v1113 = vpop.f32.mrb[0].mxu0
    %v1114 = vadd.f32 0.0, %v1113
    %v1115 = vpop.f32.mrb[0].mxu0
    %1116 = vdwg.mxu0
    %v1117 = vadd.f32 %v875, %v1114
    %1118 = vrot.lane.b32.xlu0 %v239, 104
    %v1119 = vpop.permute.xlu0 %1118
    %1120 = vrot.lane.b32.xlu0 %v316, 104
    %v1121 = vpop.permute.xlu0 %1120
    %v1122 = vsel %vm396, %v1119, 0
    %v1124 = vsel %vm396, %v1121, 0
    %1126 = vmatprep.subr.mxu0 0.0
    %1127 = vmatpush1.xpose.msra.mxu0 %v1124
    %1128 = vmatprep.subr.mxu0 0.0
    %1129 = vmatpush1.xpose.msra.mxu0 0.0
    %1130 = vmatprep.subr.mxu0 0.0
    %1131 = vmatpush1.xpose.msra.mxu0 0.0
    %1132 = vmatprep.subr.mxu0 0.0
    %1133 = vmatpush1.xpose.msra.mxu0 0.0
    %1134 = vmatprep.subr.mxu0 0.0
    %1135 = vmatpush1.xpose.msra.mxu0 0.0
    %1136 = vmatprep.subr.mxu0 0.0
    %1137 = vmatpush1.xpose.msra.mxu0 0.0
    %1138 = vmatprep.subr.mxu0 0.0
    %1139 = vmatpush1.xpose.msra.mxu0 0.0
    %1140 = vmatprep.subr.mxu0 0.0
    %1141 = vmatpush1.xpose.msra.mxu0 0.0
    %1142 = vmatprep.subr.mxu0 0.0
    %1143 = vmatpush1.xpose.msra.mxu0 0.0
    %1144 = vmatprep.subr.mxu0 0.0
    %1145 = vmatpush1.xpose.msra.mxu0 0.0
    %1146 = vmatprep.subr.mxu0 0.0
    %1147 = vmatpush1.xpose.msra.mxu0 0.0
    %1148 = vmatprep.subr.mxu0 0.0
    %1149 = vmatpush1.xpose.msra.mxu0 0.0
    %1150 = vmatprep.subr.mxu0 0.0
    %1151 = vmatpush1.xpose.msra.mxu0 0.0
    %1152 = vmatprep.subr.mxu0 0.0
    %1153 = vmatpush1.xpose.msra.mxu0 0.0
    %1154 = vmatprep.subr.mxu0 0.0
    %1155 = vmatpush1.xpose.msra.mxu0 0.0
    %1156 = vmatprep.subr.mxu0 0.0
    %1157 = vmatpush1.xpose.msra.mxu0 0.0
    %1158 = vmatprep.subr.mxu0 0.0
    %1159 = vmatpush1.xpose.msra.mxu0 0.0
    %1160 = vmatprep.subr.mxu0 0.0
    %1161 = vmatpush1.xpose.msra.mxu0 0.0
    %1162 = vmatprep.subr.mxu0 0.0
    %1163 = vmatpush1.xpose.msra.mxu0 0.0
    %1164 = vmatprep.subr.mxu0 0.0
    %1165 = vmatpush1.xpose.msra.mxu0 0.0
    %1166 = vmatprep.subr.mxu0 0.0
    %1167 = vmatpush1.xpose.msra.mxu0 0.0
    %1168 = vmatprep.subr.mxu0 0.0
    %1169 = vmatpush1.xpose.msra.mxu0 0.0
    %1170 = vmatprep.subr.mxu0 0.0
    %1171 = vmatpush1.xpose.msra.mxu0 0.0
    %1172 = vmatprep.subr.mxu0 0.0
    %1173 = vmatpush1.xpose.msra.mxu0 0.0
    %1174 = vmatprep.subr.mxu0 0.0
    %1175 = vmatpush1.xpose.msra.mxu0 0.0
    %1176 = vmatprep.subr.mxu0 0.0
    %1177 = vmatpush1.xpose.msra.mxu0 0.0
    %1178 = vmatprep.subr.mxu0 0.0
    %1179 = vmatpush1.xpose.msra.mxu0 0.0
    %1180 = vmatprep.subr.mxu0 0.0
    %1181 = vmatpush1.xpose.msra.mxu0 0.0
    %1182 = vmatprep.subr.mxu0 0.0
    %1183 = vmatpush1.xpose.msra.mxu0 0.0
    %1184 = vmatprep.subr.mxu0 0.0
    %1185 = vmatpush1.xpose.msra.mxu0 0.0
    %1186 = vmatprep.subr.mxu0 0.0
    %1187 = vmatpush1.xpose.msra.mxu0 0.0
    %1188 = vmatprep.subr.mxu0 0.0
    %1189 = vmatpush1.xpose.msra.mxu0 0.0
    %1190 = vmatprep.mubr.f32.mxu0 0.0
    %1191 = vmatmul.mubr.f32.gmra.mrb[0].mxu0 %v1122
    %v1192 = vpop.f32.mrb[0].mxu0
    %v1193 = vadd.f32 0.0, %v1192
    %v1194 = vpop.f32.mrb[0].mxu0
    %1195 = vdwg.mxu0
    %v1196 = vsel %vm396, %v1193, -inf
    %1197 = vmax.xlane.f32.xlu0 %v1196
    %v1198 = vpop.xlane.xlu0 %1197
    %v1199 = vsub.f32 %v1193, %v1198
    %v1200 = vmul.f32 %v1199, 1.442695
    %v1201 = vpow.pop %v1200
    %v1202 = vsel %vm396, %v1201, 0.0
    %1203 = vadd.xlane.f32.xlu0 %v1202
    %v1204 = vpop.xlane.xlu0 %1203
    %v1205 = vrcp.pop %v1204
    %v1206 = vmul.f32 %v1201, %v1205
    %s1207 = scalar_lea.vmem [#allocation15], 24
    %1208 = vst.msk [vmem:[%s1207] sm:$0xff] %vm396, %v1206
    %1209 = vrot.lane.b32.xlu0 %v393, 104
    %v1210 = vpop.permute.xlu0 %1209
    %v1213 = vsel %vm396, %v1206, 0
    %1215 = vmatprep.subr.mxu0 0.0
    %1216 = vmatpush1.msra.mxu0 %v1210
    %1217 = vmatprep.subr.mxu0 0.0
    %1218 = vmatpush1.msra.mxu0 0.0
    %1219 = vmatprep.subr.mxu0 0.0
    %1220 = vmatpush1.msra.mxu0 0.0
    %1221 = vmatprep.subr.mxu0 0.0
    %1222 = vmatpush1.msra.mxu0 0.0
    %1223 = vmatprep.subr.mxu0 0.0
    %1224 = vmatpush1.msra.mxu0 0.0
    %1225 = vmatprep.subr.mxu0 0.0
    %1226 = vmatpush1.msra.mxu0 0.0
    %1227 = vmatprep.subr.mxu0 0.0
    %1228 = vmatpush1.msra.mxu0 0.0
    %1229 = vmatprep.subr.mxu0 0.0
    %1230 = vmatpush1.msra.mxu0 0.0
    %1231 = vmatprep.subr.mxu0 0.0
    %1232 = vmatpush1.msra.mxu0 0.0
    %1233 = vmatprep.subr.mxu0 0.0
    %1234 = vmatpush1.msra.mxu0 0.0
    %1235 = vmatprep.subr.mxu0 0.0
    %1236 = vmatpush1.msra.mxu0 0.0
    %1237 = vmatprep.subr.mxu0 0.0
    %1238 = vmatpush1.msra.mxu0 0.0
    %1239 = vmatprep.subr.mxu0 0.0
    %1240 = vmatpush1.msra.mxu0 0.0
    %1241 = vmatprep.subr.mxu0 0.0
    %1242 = vmatpush1.msra.mxu0 0.0
    %1243 = vmatprep.subr.mxu0 0.0
    %1244 = vmatpush1.msra.mxu0 0.0
    %1245 = vmatprep.subr.mxu0 0.0
    %1246 = vmatpush1.msra.mxu0 0.0
    %1247 = vmatprep.subr.mxu0 0.0
    %1248 = vmatpush1.msra.mxu0 0.0
    %1249 = vmatprep.subr.mxu0 0.0
    %1250 = vmatpush1.msra.mxu0 0.0
    %1251 = vmatprep.subr.mxu0 0.0
    %1252 = vmatpush1.msra.mxu0 0.0
    %1253 = vmatprep.subr.mxu0 0.0
    %1254 = vmatpush1.msra.mxu0 0.0
    %1255 = vmatprep.subr.mxu0 0.0
    %1256 = vmatpush1.msra.mxu0 0.0
    %1257 = vmatprep.subr.mxu0 0.0
    %1258 = vmatpush1.msra.mxu0 0.0
    %1259 = vmatprep.subr.mxu0 0.0
    %1260 = vmatpush1.msra.mxu0 0.0
    %1261 = vmatprep.subr.mxu0 0.0
    %1262 = vmatpush1.msra.mxu0 0.0
    %1263 = vmatprep.subr.mxu0 0.0
    %1264 = vmatpush1.msra.mxu0 0.0
    %1265 = vmatprep.subr.mxu0 0.0
    %1266 = vmatpush1.msra.mxu0 0.0
    %1267 = vmatprep.subr.mxu0 0.0
    %1268 = vmatpush1.msra.mxu0 0.0
    %1269 = vmatprep.subr.mxu0 0.0
    %1270 = vmatpush1.msra.mxu0 0.0
    %1271 = vmatprep.subr.mxu0 0.0
    %1272 = vmatpush1.msra.mxu0 0.0
    %1273 = vmatprep.subr.mxu0 0.0
    %1274 = vmatpush1.msra.mxu0 0.0
    %1275 = vmatprep.subr.mxu0 0.0
    %1276 = vmatpush1.msra.mxu0 0.0
    %1277 = vmatprep.subr.mxu0 0.0
    %1278 = vmatpush1.msra.mxu0 0.0
    %1279 = vmatprep.mubr.f32.mxu0 0.0
    %1280 = vmatmul.mubr.f32.gmra.mrb[0].mxu0 %v1213
    %v1281 = vpop.f32.mrb[0].mxu0
    %v1282 = vadd.f32 0.0, %v1281
    %v1283 = vpop.f32.mrb[0].mxu0
    %1284 = vdwg.mxu0
    %v1285 = vld [vmem:[#allocation13 + $0x18] sm:$0xff]
    %v1287 = vsel %vm396, %v1282, 0
    %1289 = vmatprep.subr.mxu0 0.0
    %1290 = vmatpush1.msra.mxu0 %v1285
    %1291 = vmatprep.subr.mxu0 0.0
    %1292 = vmatpush1.msra.mxu0 0.0
    %1293 = vmatprep.subr.mxu0 0.0
    %1294 = vmatpush1.msra.mxu0 0.0
    %1295 = vmatprep.subr.mxu0 0.0
    %1296 = vmatpush1.msra.mxu0 0.0
    %1297 = vmatprep.subr.mxu0 0.0
    %1298 = vmatpush1.msra.mxu0 0.0
    %1299 = vmatprep.subr.mxu0 0.0
    %1300 = vmatpush1.msra.mxu0 0.0
    %1301 = vmatprep.subr.mxu0 0.0
    %1302 = vmatpush1.msra.mxu0 0.0
    %1303 = vmatprep.subr.mxu0 0.0
    %1304 = vmatpush1.msra.mxu0 0.0
    %1305 = vmatprep.subr.mxu0 0.0
    %1306 = vmatpush1.msra.mxu0 0.0
    %1307 = vmatprep.subr.mxu0 0.0
    %1308 = vmatpush1.msra.mxu0 0.0
    %1309 = vmatprep.subr.mxu0 0.0
    %1310 = vmatpush1.msra.mxu0 0.0
    %1311 = vmatprep.subr.mxu0 0.0
    %1312 = vmatpush1.msra.mxu0 0.0
    %1313 = vmatprep.subr.mxu0 0.0
    %1314 = vmatpush1.msra.mxu0 0.0
    %1315 = vmatprep.subr.mxu0 0.0
    %1316 = vmatpush1.msra.mxu0 0.0
    %1317 = vmatprep.subr.mxu0 0.0
    %1318 = vmatpush1.msra.mxu0 0.0
    %1319 = vmatprep.subr.mxu0 0.0
    %1320 = vmatpush1.msra.mxu0 0.0
    %1321 = vmatprep.subr.mxu0 0.0
    %1322 = vmatpush1.msra.mxu0 0.0
    %1323 = vmatprep.subr.mxu0 0.0
    %1324 = vmatpush1.msra.mxu0 0.0
    %1325 = vmatprep.subr.mxu0 0.0
    %1326 = vmatpush1.msra.mxu0 0.0
    %1327 = vmatprep.subr.mxu0 0.0
    %1328 = vmatpush1.msra.mxu0 0.0
    %1329 = vmatprep.subr.mxu0 0.0
    %1330 = vmatpush1.msra.mxu0 0.0
    %1331 = vmatprep.subr.mxu0 0.0
    %1332 = vmatpush1.msra.mxu0 0.0
    %1333 = vmatprep.subr.mxu0 0.0
    %1334 = vmatpush1.msra.mxu0 0.0
    %1335 = vmatprep.subr.mxu0 0.0
    %1336 = vmatpush1.msra.mxu0 0.0
    %1337 = vmatprep.subr.mxu0 0.0
    %1338 = vmatpush1.msra.mxu0 0.0
    %1339 = vmatprep.subr.mxu0 0.0
    %1340 = vmatpush1.msra.mxu0 0.0
    %1341 = vmatprep.subr.mxu0 0.0
    %1342 = vmatpush1.msra.mxu0 0.0
    %1343 = vmatprep.subr.mxu0 0.0
    %1344 = vmatpush1.msra.mxu0 0.0
    %1345 = vmatprep.subr.mxu0 0.0
    %1346 = vmatpush1.msra.mxu0 0.0
    %1347 = vmatprep.subr.mxu0 0.0
    %1348 = vmatpush1.msra.mxu0 0.0
    %1349 = vmatprep.subr.mxu0 0.0
    %1350 = vmatpush1.msra.mxu0 0.0
    %1351 = vmatprep.subr.mxu0 0.0
    %1352 = vmatpush1.msra.mxu0 0.0
    %1353 = vmatprep.mubr.f32.mxu0 0.0
    %1354 = vmatmul.mubr.f32.gmra.mrb[0].mxu0 %v1287
    %v1355 = vpop.f32.mrb[0].mxu0
    %v1356 = vadd.f32 0.0, %v1355
    %v1357 = vpop.f32.mrb[0].mxu0
    %1358 = vdwg.mxu0
    %v1359 = vadd.f32 %v1117, %v1356
    %1360 = vst.msk [vmem:[#allocation14] sm:$0xff] %vm136, %v1359
    %s1361 = scalar_lea.vmem [#allocation2], 8
    %v1362 = vld [vmem:[%s1361] sm:$0xff]
    %s1363 = scalar_lea.vmem [#allocation5], 8
    %v1364 = vld [vmem:[%s1363] sm:$0xff]
    %s1365 = scalar_lea.vmem [#allocation7], 8
    %v1366 = vld [vmem:[%s1365] sm:$0xff]
    %v1367 = vsel %vm136, %v1362, 0.0
    %1368 = vadd.xlane.f32.xlu0 %v1367
    %v1369 = vpop.xlane.xlu0 %1368
    %v1370 = vmul.f32 %v1369, %v140
    %v1371 = vsub.f32 %v1362, %v1370
    %v1372 = vmul.f32 %v1371, %v1371
    %v1373 = vsel %vm136, %v1372, 0.0
    %1374 = vadd.xlane.f32.xlu0 %v1373
    %v1375 = vpop.xlane.xlu0 %1374
    %v1376 = vmul.f32 %v1375, %v140
    %v1377 = vadd.f32 %v1376, 1e-06
    %v1378 = vrsqrt.pop %v1377
    %v1379 = vmul.f32 %v1371, %v1378
    %v1380 = vmul.f32 %v1379, %v155
    %v1381 = vadd.f32 %v1380, %v162
    %v1382 = vld [vmem:[#allocation8] sm:$0xff]
    %v1383 = vld [vmem:[#allocation8 + $0x8] sm:$0xff]
    %v1384 = vld [vmem:[#allocation8 + $0x10] sm:$0xff]
    %v1385 = vld [vmem:[#allocation8 + $0x18] sm:$0xff]
    %v1387 = vsel %vm136, %v1381, 0
    %1389 = vmatprep.subr.mxu0 0.0
    %1390 = vmatpush1.msra.mxu0 %v1382
    %1391 = vmatprep.subr.mxu0 0.0
    %1392 = vmatpush1.msra.mxu0 %v1383
    %1393 = vmatprep.subr.mxu0 0.0
    %1394 = vmatpush1.msra.mxu0 %v1384
    %1395 = vmatprep.subr.mxu0 0.0
    %1396 = vmatpush1.msra.mxu0 %v1385
    %1397 = vmatprep.subr.mxu0 0.0
    %1398 = vmatpush1.msra.mxu0 0.0
    %1399 = vmatprep.subr.mxu0 0.0
    %1400 = vmatpush1.msra.mxu0 0.0
    %1401 = vmatprep.subr.mxu0 0.0
    %1402 = vmatpush1.msra.mxu0 0.0
    %1403 = vmatprep.subr.mxu0 0.0
    %1404 = vmatpush1.msra.mxu0 0.0
    %1405 = vmatprep.subr.mxu0 0.0
    %1406 = vmatpush1.msra.mxu0 0.0
    %1407 = vmatprep.subr.mxu0 0.0
    %1408 = vmatpush1.msra.mxu0 0.0
    %1409 = vmatprep.subr.mxu0 0.0
    %1410 = vmatpush1.msra.mxu0 0.0
    %1411 = vmatprep.subr.mxu0 0.0
    %1412 = vmatpush1.msra.mxu0 0.0
    %1413 = vmatprep.subr.mxu0 0.0
    %1414 = vmatpush1.msra.mxu0 0.0
    %1415 = vmatprep.subr.mxu0 0.0
    %1416 = vmatpush1.msra.mxu0 0.0
    %1417 = vmatprep.subr.mxu0 0.0
    %1418 = vmatpush1.msra.mxu0 0.0
    %1419 = vmatprep.subr.mxu0 0.0
    %1420 = vmatpush1.msra.mxu0 0.0
    %1421 = vmatprep.subr.mxu0 0.0
    %1422 = vmatpush1.msra.mxu0 0.0
    %1423 = vmatprep.subr.mxu0 0.0
    %1424 = vmatpush1.msra.mxu0 0.0
    %1425 = vmatprep.subr.mxu0 0.0
    %1426 = vmatpush1.msra.mxu0 0.0
    %1427 = vmatprep.subr.mxu0 0.0
    %1428 = vmatpush1.msra.mxu0 0.0
    %1429 = vmatprep.subr.mxu0 0.0
    %1430 = vmatpush1.msra.mxu0 0.0
    %1431 = vmatprep.subr.mxu0 0.0
    %1432 = vmatpush1.msra.mxu0 0.0
    %1433 = vmatprep.subr.mxu0 0.0
    %1434 = vmatpush1.msra.mxu0 0.0
    %1435 = vmatprep.subr.mxu0 0.0
    %1436 = vmatpush1.msra.mxu0 0.0
    %1437 = vmatprep.subr.mxu0 0.0
    %1438 = vmatpush1.msra.mxu0 0.0
    %1439 = vmatprep.subr.mxu0 0.0
    %1440 = vmatpush1.msra.mxu0 0.0
    %1441 = vmatprep.subr.mxu0 0.0
    %1442 = vmatpush1.msra.mxu0 0.0
    %1443 = vmatprep.subr.mxu0 0.0
    %1444 = vmatpush1.msra.mxu0 0.0
    %1445 = vmatprep.subr.mxu0 0.0
    %1446 = vmatpush1.msra.mxu0 0.0
    %1447 = vmatprep.subr.mxu0 0.0
    %1448 = vmatpush1.msra.mxu0 0.0
    %1449 = vmatprep.subr.mxu0 0.0
    %1450 = vmatpush1.msra.mxu0 0.0
    %1451 = vmatprep.subr.mxu0 0.0
    %1452 = vmatpush1.msra.mxu0 0.0
    %1453 = vmatprep.mubr.f32.mxu0 0.0
    %1454 = vmatmul.mubr.f32.gmra.mrb[0].mxu0 %v1387
    %v1455 = vpop.f32.mrb[0].mxu0
    %v1456 = vadd.f32 0.0, %v1455
    %v1457 = vpop.f32.mrb[0].mxu0
    %1458 = vdwg.mxu0
    %v1459 = vld [vmem:[#allocation10] sm:$0xff]
    %v1460 = vld [vmem:[#allocation10 + $0x8] sm:$0xff]
    %v1461 = vld [vmem:[#allocation10 + $0x10] sm:$0xff]
    %v1462 = vld [vmem:[#allocation10 + $0x18] sm:$0xff]
    %v1464 = vsel %vm136, %v1364, 0
    %1466 = vmatprep.subr.mxu0 0.0
    %1467 = vmatpush1.msra.mxu0 %v1459
    %1468 = vmatprep.subr.mxu0 0.0
    %1469 = vmatpush1.msra.mxu0 %v1460
    %1470 = vmatprep.subr.mxu0 0.0
    %1471 = vmatpush1.msra.mxu0 %v1461
    %1472 = vmatprep.subr.mxu0 0.0
    %1473 = vmatpush1.msra.mxu0 %v1462
    %1474 = vmatprep.subr.mxu0 0.0
    %1475 = vmatpush1.msra.mxu0 0.0
    %1476 = vmatprep.subr.mxu0 0.0
    %1477 = vmatpush1.msra.mxu0 0.0
    %1478 = vmatprep.subr.mxu0 0.0
    %1479 = vmatpush1.msra.mxu0 0.0
    %1480 = vmatprep.subr.mxu0 0.0
    %1481 = vmatpush1.msra.mxu0 0.0
    %1482 = vmatprep.subr.mxu0 0.0
    %1483 = vmatpush1.msra.mxu0 0.0
    %1484 = vmatprep.subr.mxu0 0.0
    %1485 = vmatpush1.msra.mxu0 0.0
    %1486 = vmatprep.subr.mxu0 0.0
    %1487 = vmatpush1.msra.mxu0 0.0
    %1488 = vmatprep.subr.mxu0 0.0
    %1489 = vmatpush1.msra.mxu0 0.0
    %1490 = vmatprep.subr.mxu0 0.0
    %1491 = vmatpush1.msra.mxu0 0.0
    %1492 = vmatprep.subr.mxu0 0.0
    %1493 = vmatpush1.msra.mxu0 0.0
    %1494 = vmatprep.subr.mxu0 0.0
    %1495 = vmatpush1.msra.mxu0 0.0
    %1496 = vmatprep.subr.mxu0 0.0
    %1497 = vmatpush1.msra.mxu0 0.0
    %1498 = vmatprep.subr.mxu0 0.0
    %1499 = vmatpush1.msra.mxu0 0.0
    %1500 = vmatprep.subr.mxu0 0.0
    %1501 = vmatpush1.msra.mxu0 0.0
    %1502 = vmatprep.subr.mxu0 0.0
    %1503 = vmatpush1.msra.mxu0 0.0
    %1504 = vmatprep.subr.mxu0 0.0
    %1505 = vmatpush1.msra.mxu0 0.0
    %1506 = vmatprep.subr.mxu0 0.0
    %1507 = vmatpush1.msra.mxu0 0.0
    %1508 = vmatprep.subr.mxu0 0.0
    %1509 = vmatpush1.msra.mxu0 0.0
    %1510 = vmatprep.subr.mxu0 0.0
    %1511 = vmatpush1.msra.mxu0 0.0
    %1512 = vmatprep.subr.mxu0 0.0
    %1513 = vmatpush1.msra.mxu0 0.0
    %1514 = vmatprep.subr.mxu0 0.0
    %1515 = vmatpush1.msra.mxu0 0.0
    %1516 = vmatprep.subr.mxu0 0.0
    %1517 = vmatpush1.msra.mxu0 0.0
    %1518 = vmatprep.subr.mxu0 0.0
    %1519 = vmatpush1.msra.mxu0 0.0
    %1520 = vmatprep.subr.mxu0 0.0
    %1521 = vmatpush1.msra.mxu0 0.0
    %1522 = vmatprep.subr.mxu0 0.0
    %1523 = vmatpush1.msra.mxu0 0.0
    %1524 = vmatprep.subr.mxu0 0.0
    %1525 = vmatpush1.msra.mxu0 0.0
    %1526 = vmatprep.subr.mxu0 0.0
    %1527 = vmatpush1.msra.mxu0 0.0
    %1528 = vmatprep.subr.mxu0 0.0
    %1529 = vmatpush1.msra.mxu0 0.0
    %1530 = vmatprep.mubr.f32.mxu0 0.0
    %1531 = vmatmul.mubr.f32.gmra.mrb[0].mxu0 %v1464
    %v1532 = vpop.f32.mrb[0].mxu0
    %v1533 = vadd.f32 0.0, %v1532
    %v1534 = vpop.f32.mrb[0].mxu0
    %1535 = vdwg.mxu0
    %v1536 = vld [vmem:[#allocation11] sm:$0xff]
    %v1537 = vld [vmem:[#allocation11 + $0x8] sm:$0xff]
    %v1538 = vld [vmem:[#allocation11 + $0x10] sm:$0xff]
    %v1539 = vld [vmem:[#allocation11 + $0x18] sm:$0xff]
    %v1541 = vsel %vm136, %v1366, 0
    %1543 = vmatprep.subr.mxu0 0.0
    %1544 = vmatpush1.msra.mxu0 %v1536
    %1545 = vmatprep.subr.mxu0 0.0
    %1546 = vmatpush1.msra.mxu0 %v1537
    %1547 = vmatprep.subr.mxu0 0.0
    %1548 = vmatpush1.msra.mxu0 %v1538
    %1549 = vmatprep.subr.mxu0 0.0
    %1550 = vmatpush1.msra.mxu0 %v1539
    %1551 = vmatprep.subr.mxu0 0.0
    %1552 = vmatpush1.msra.mxu0 0.0
    %1553 = vmatprep.subr.mxu0 0.0
    %1554 = vmatpush1.msra.mxu0 0.0
    %1555 = vmatprep.subr.mxu0 0.0
    %1556 = vmatpush1.msra.mxu0 0.0
    %1557 = vmatprep.subr.mxu0 0.0
    %1558 = vmatpush1.msra.mxu0 0.0
    %1559 = vmatprep.subr.mxu0 0.0
    %1560 = vmatpush1.msra.mxu0 0.0
    %1561 = vmatprep.subr.mxu0 0.0
    %1562 = vmatpush1.msra.mxu0 0.0
    %1563 = vmatprep.subr.mxu0 0.0
    %1564 = vmatpush1.msra.mxu0 0.0
    %1565 = vmatprep.subr.mxu0 0.0
    %1566 = vmatpush1.msra.mxu0 0.0
    %1567 = vmatprep.subr.mxu0 0.0
    %1568 = vmatpush1.msra.mxu0 0.0
    %1569 = vmatprep.subr.mxu0 0.0
    %1570 = vmatpush1.msra.mxu0 0.0
    %1571 = vmatprep.subr.mxu0 0.0
    %1572 = vmatpush1.msra.mxu0 0.0
    %1573 = vmatprep.subr.mxu0 0.0
    %1574 = vmatpush1.msra.mxu0 0.0
    %1575 = vmatprep.subr.mxu0 0.0
    %1576 = vmatpush1.msra.mxu0 0.0
    %1577 = vmatprep.subr.mxu0 0.0
    %1578 = vmatpush1.msra.mxu0 0.0
    %1579 = vmatprep.subr.mxu0 0.0
    %1580 = vmatpush1.msra.mxu0 0.0
    %1581 = vmatprep.subr.mxu0 0.0
    %1582 = vmatpush1.msra.mxu0 0.0
    %1583 = vmatprep.subr.mxu0 0.0
    %1584 = vmatpush1.msra.mxu0 0.0
    %1585 = vmatprep.subr.mxu0 0.0
    %1586 = vmatpush1.msra.mxu0 0.0
    %1587 = vmatprep.subr.mxu0 0.0
    %1588 = vmatpush1.msra.mxu0 0.0
    %1589 = vmatprep.subr.mxu0 0.0
    %1590 = vmatpush1.msra.mxu0 0.0
    %1591 = vmatprep.subr.mxu0 0.0
    %1592 = vmatpush1.msra.mxu0 0.0
    %1593 = vmatprep.subr.mxu0 0.0
    %1594 = vmatpush1.msra.mxu0 0.0
    %1595 = vmatprep.subr.mxu0 0.0
    %1596 = vmatpush1.msra.mxu0 0.0
    %1597 = vmatprep.subr.mxu0 0.0
    %1598 = vmatpush1.msra.mxu0 0.0
    %1599 = vmatprep.subr.mxu0 0.0
    %1600 = vmatpush1.msra.mxu0 0.0
    %1601 = vmatprep.subr.mxu0 0.0
    %1602 = vmatpush1.msra.mxu0 0.0
    %1603 = vmatprep.subr.mxu0 0.0
    %1604 = vmatpush1.msra.mxu0 0.0
    %1605 = vmatprep.subr.mxu0 0.0
    %1606 = vmatpush1.msra.mxu0 0.0
    %1607 = vmatprep.mubr.f32.mxu0 0.0
    %1608 = vmatmul.mubr.f32.gmra.mrb[0].mxu0 %v1541
    %v1609 = vpop.f32.mrb[0].mxu0
    %v1610 = vadd.f32 0.0, %v1609
    %v1611 = vpop.f32.mrb[0].mxu0
    %1612 = vdwg.mxu0
    %v1614 = vsel %vm396, %v1456, 0
    %v1617 = vsel %vm396, %v1533, 0
    %1619 = vmatprep.subr.mxu0 0.0
    %1620 = vmatpush1.xpose.msra.mxu0 %v1617
    %1621 = vmatprep.subr.mxu0 0.0
    %1622 = vmatpush1.xpose.msra.mxu0 0.0
    %1623 = vmatprep.subr.mxu0 0.0
    %1624 = vmatpush1.xpose.msra.mxu0 0.0
    %1625 = vmatprep.subr.mxu0 0.0
    %1626 = vmatpush1.xpose.msra.mxu0 0.0
    %1627 = vmatprep.subr.mxu0 0.0
    %1628 = vmatpush1.xpose.msra.mxu0 0.0
    %1629 = vmatprep.subr.mxu0 0.0
    %1630 = vmatpush1.xpose.msra.mxu0 0.0
    %1631 = vmatprep.subr.mxu0 0.0
    %1632 = vmatpush1.xpose.msra.mxu0 0.0
    %1633 = vmatprep.subr.mxu0 0.0
    %1634 = vmatpush1.xpose.msra.mxu0 0.0
    %1635 = vmatprep.subr.mxu0 0.0
    %1636 = vmatpush1.xpose.msra.mxu0 0.0
    %1637 = vmatprep.subr.mxu0 0.0
    %1638 = vmatpush1.xpose.msra.mxu0 0.0
    %1639 = vmatprep.subr.mxu0 0.0
    %1640 = vmatpush1.xpose.msra.mxu0 0.0
    %1641 = vmatprep.subr.mxu0 0.0
    %1642 = vmatpush1.xpose.msra.mxu0 0.0
    %1643 = vmatprep.subr.mxu0 0.0
    %1644 = vmatpush1.xpose.msra.mxu0 0.0
    %1645 = vmatprep.subr.mxu0 0.0
    %1646 = vmatpush1.xpose.msra.mxu0 0.0
    %1647 = vmatprep.subr.mxu0 0.0
    %1648 = vmatpush1.xpose.msra.mxu0 0.0
    %1649 = vmatprep.subr.mxu0 0.0
    %1650 = vmatpush1.xpose.msra.mxu0 0.0
    %1651 = vmatprep.subr.mxu0 0.0
    %1652 = vmatpush1.xpose.msra.mxu0 0.0
    %1653 = vmatprep.subr.mxu0 0.0
    %1654 = vmatpush1.xpose.msra.mxu0 0.0
    %1655 = vmatprep.subr.mxu0 0.0
    %1656 = vmatpush1.xpose.msra.mxu0 0.0
    %1657 = vmatprep.subr.mxu0 0.0
    %1658 = vmatpush1.xpose.msra.mxu0 0.0
    %1659 = vmatprep.subr.mxu0 0.0
    %1660 = vmatpush1.xpose.msra.mxu0 0.0
    %1661 = vmatprep.subr.mxu0 0.0
    %1662 = vmatpush1.xpose.msra.mxu0 0.0
    %1663 = vmatprep.subr.mxu0 0.0
    %1664 = vmatpush1.xpose.msra.mxu0 0.0
    %1665 = vmatprep.subr.mxu0 0.0
    %1666 = vmatpush1.xpose.msra.mxu0 0.0
    %1667 = vmatprep.subr.mxu0 0.0
    %1668 = vmatpush1.xpose.msra.mxu0 0.0
    %1669 = vmatprep.subr.mxu0 0.0
    %1670 = vmatpush1.xpose.msra.mxu0 0.0
    %1671 = vmatprep.subr.mxu0 0.0
    %1672 = vmatpush1.xpose.msra.mxu0 0.0
    %1673 = vmatprep.subr.mxu0 0.0
    %1674 = vmatpush1.xpose.msra.mxu0 0.0
    %1675 = vmatprep.subr.mxu0 0.0
    %1676 = vmatpush1.xpose.msra.mxu0 0.0
    %1677 = vmatprep.subr.mxu0 0.0
    %1678 = vmatpush1.xpose.msra.mxu0 0.0
    %1679 = vmatprep.subr.mxu0 0.0
    %1680 = vmatpush1.xpose.msra.mxu0 0.0
    %1681 = vmatprep.subr.mxu0 0.0
    %1682 = vmatpush1.xpose.msra.mxu0 0.0
    %1683 = vmatprep.mubr.f32.mxu0 0.0
    %1684 = vmatmul.mubr.f32.gmra.mrb[0].mxu0 %v1614
    %v1685 = vpop.f32.mrb[0].mxu0
    %v1686 = vadd.f32 0.0, %v1685
    %v1687 = vpop.f32.mrb[0].mxu0
    %1688 = vdwg.mxu0
    %v1689 = vsel %vm396, %v1686, -inf
    %1690 = vmax.xlane.f32.xlu0 %v1689
    %v1691 = vpop.xlane.xlu0 %1690
    %v1692 = vsub.f32 %v1686, %v1691
    %v1693 = vmul.f32 %v1692, 1.442695
    %v1694 = vpow.pop %v1693
    %v1695 = vsel %vm396, %v1694, 0.0
    %1696 = vadd.xlane.f32.xlu0 %v1695
    %v1697 = vpop.xlane.xlu0 %1696
    %v1698 = vrcp.pop %v1697
    %v1699 = vmul.f32 %v1694, %v1698
    %s1700 = scalar_lea.vmem [#allocation15], 32
    %1701 = vst.msk [vmem:[%s1700] sm:$0xff] %vm396, %v1699
    %v1703 = vsel %vm396, %v1699, 0
    %1705 = vmatprep.subr.mxu0 0.0
    %1706 = vmatpush1.msra.mxu0 %v1610
    %1707 = vmatprep.subr.mxu0 0.0
    %1708 = vmatpush1.msra.mxu0 0.0
    %1709 = vmatprep.subr.mxu0 0.0
    %1710 = vmatpush1.msra.mxu0 0.0
    %1711 = vmatprep.subr.mxu0 0.0
    %1712 = vmatpush1.msra.mxu0 0.0
    %1713 = vmatprep.subr.mxu0 0.0
    %1714 = vmatpush1.msra.mxu0 0.0
    %1715 = vmatprep.subr.mxu0 0.0
    %1716 = vmatpush1.msra.mxu0 0.0
    %1717 = vmatprep.subr.mxu0 0.0
    %1718 = vmatpush1.msra.mxu0 0.0
    %1719 = vmatprep.subr.mxu0 0.0
    %1720 = vmatpush1.msra.mxu0 0.0
    %1721 = vmatprep.subr.mxu0 0.0
    %1722 = vmatpush1.msra.mxu0 0.0
    %1723 = vmatprep.subr.mxu0 0.0
    %1724 = vmatpush1.msra.mxu0 0.0
    %1725 = vmatprep.subr.mxu0 0.0
    %1726 = vmatpush1.msra.mxu0 0.0
    %1727 = vmatprep.subr.mxu0 0.0
    %1728 = vmatpush1.msra.mxu0 0.0
    %1729 = vmatprep.subr.mxu0 0.0
    %1730 = vmatpush1.msra.mxu0 0.0
    %1731 = vmatprep.subr.mxu0 0.0
    %1732 = vmatpush1.msra.mxu0 0.0
    %1733 = vmatprep.subr.mxu0 0.0
    %1734 = vmatpush1.msra.mxu0 0.0
    %1735 = vmatprep.subr.mxu0 0.0
    %1736 = vmatpush1.msra.mxu0 0.0
    %1737 = vmatprep.subr.mxu0 0.0
    %1738 = vmatpush1.msra.mxu0 0.0
    %1739 = vmatprep.subr.mxu0 0.0
    %1740 = vmatpush1.msra.mxu0 0.0
    %1741 = vmatprep.subr.mxu0 0.0
    %1742 = vmatpush1.msra.mxu0 0.0
    %1743 = vmatprep.subr.mxu0 0.0
    %1744 = vmatpush1.msra.mxu0 0.0
    %1745 = vmatprep.subr.mxu0 0.0
    %1746 = vmatpush1.msra.mxu0 0.0
    %1747 = vmatprep.subr.mxu0 0.0
    %1748 = vmatpush1.msra.mxu0 0.0
    %1749 = vmatprep.subr.mxu0 0.0
    %1750 = vmatpush1.msra.mxu0 0.0
    %1751 = vmatprep.subr.mxu0 0.0
    %1752 = vmatpush1.msra.mxu0 0.0
    %1753 = vmatprep.subr.mxu0 0.0
    %1754 = vmatpush1.msra.mxu0 0.0
    %1755 = vmatprep.subr.mxu0 0.0
    %1756 = vmatpush1.msra.mxu0 0.0
    %1757 = vmatprep.subr.mxu0 0.0
    %1758 = vmatpush1.msra.mxu0 0.0
    %1759 = vmatprep.subr.mxu0 0.0
    %1760 = vmatpush1.msra.mxu0 0.0
    %1761 = vmatprep.subr.mxu0 0.0
    %1762 = vmatpush1.msra.mxu0 0.0
    %1763 = vmatprep.subr.mxu0 0.0
    %1764 = vmatpush1.msra.mxu0 0.0
    %1765 = vmatprep.subr.mxu0 0.0
    %1766 = vmatpush1.msra.mxu0 0.0
    %1767 = vmatprep.subr.mxu0 0.0
    %1768 = vmatpush1.msra.mxu0 0.0
    %1769 = vmatprep.mubr.f32.mxu0 0.0
    %1770 = vmatmul.mubr.f32.gmra.mrb[0].mxu0 %v1703
    %v1771 = vpop.f32.mrb[0].mxu0
    %v1772 = vadd.f32 0.0, %v1771
    %v1773 = vpop.f32.mrb[0].mxu0
    %1774 = vdwg.mxu0
    %v1775 = vld [vmem:[#allocation13] sm:$0xff]
    %v1777 = vsel %vm396, %v1772, 0
    %1779 = vmatprep.subr.mxu0 0.0
    %1780 = vmatpush1.msra.mxu0 %v1775
    %1781 = vmatprep.subr.mxu0 0.0
    %1782 = vmatpush1.msra.mxu0 0.0
    %1783 = vmatprep.subr.mxu0 0.0
    %1784 = vmatpush1.msra.mxu0 0.0
    %1785 = vmatprep.subr.mxu0 0.0
    %1786 = vmatpush1.msra.mxu0 0.0
    %1787 = vmatprep.subr.mxu0 0.0
    %1788 = vmatpush1.msra.mxu0 0.0
    %1789 = vmatprep.subr.mxu0 0.0
    %1790 = vmatpush1.msra.mxu0 0.0
    %1791 = vmatprep.subr.mxu0 0.0
    %1792 = vmatpush1.msra.mxu0 0.0
    %1793 = vmatprep.subr.mxu0 0.0
    %1794 = vmatpush1.msra.mxu0 0.0
    %1795 = vmatprep.subr.mxu0 0.0
    %1796 = vmatpush1.msra.mxu0 0.0
    %1797 = vmatprep.subr.mxu0 0.0
    %1798 = vmatpush1.msra.mxu0 0.0
    %1799 = vmatprep.subr.mxu0 0.0
    %1800 = vmatpush1.msra.mxu0 0.0
    %1801 = vmatprep.subr.mxu0 0.0
    %1802 = vmatpush1.msra.mxu0 0.0
    %1803 = vmatprep.subr.mxu0 0.0
    %1804 = vmatpush1.msra.mxu0 0.0
    %1805 = vmatprep.subr.mxu0 0.0
    %1806 = vmatpush1.msra.mxu0 0.0
    %1807 = vmatprep.subr.mxu0 0.0
    %1808 = vmatpush1.msra.mxu0 0.0
    %1809 = vmatprep.subr.mxu0 0.0
    %1810 = vmatpush1.msra.mxu0 0.0
    %1811 = vmatprep.subr.mxu0 0.0
    %1812 = vmatpush1.msra.mxu0 0.0
    %1813 = vmatprep.subr.mxu0 0.0
    %1814 = vmatpush1.msra.mxu0 0.0
    %1815 = vmatprep.subr.mxu0 0.0
    %1816 = vmatpush1.msra.mxu0 0.0
    %1817 = vmatprep.subr.mxu0 0.0
    %1818 = vmatpush1.msra.mxu0 0.0
    %1819 = vmatprep.subr.mxu0 0.0
    %1820 = vmatpush1.msra.mxu0 0.0
    %1821 = vmatprep.subr.mxu0 0.0
    %1822 = vmatpush1.msra.mxu0 0.0
    %1823 = vmatprep.subr.mxu0 0.0
    %1824 = vmatpush1.msra.mxu0 0.0
    %1825 = vmatprep.subr.mxu0 0.0
    %1826 = vmatpush1.msra.mxu0 0.0
    %1827 = vmatprep.subr.mxu0 0.0
    %1828 = vmatpush1.msra.mxu0 0.0
    %1829 = vmatprep.subr.mxu0 0.0
    %1830 = vmatpush1.msra.mxu0 0.0
    %1831 = vmatprep.subr.mxu0 0.0
    %1832 = vmatpush1.msra.mxu0 0.0
    %1833 = vmatprep.subr.mxu0 0.0
    %1834 = vmatpush1.msra.mxu0 0.0
    %1835 = vmatprep.subr.mxu0 0.0
    %1836 = vmatpush1.msra.mxu0 0.0
    %1837 = vmatprep.subr.mxu0 0.0
    %1838 = vmatpush1.msra.mxu0 0.0
    %1839 = vmatprep.subr.mxu0 0.0
    %1840 = vmatpush1.msra.mxu0 0.0
    %1841 = vmatprep.subr.mxu0 0.0
    %1842 = vmatpush1.msra.mxu0 0.0
    %1843 = vmatprep.mubr.f32.mxu0 0.0
    %1844 = vmatmul.mubr.f32.gmra.mrb[0].mxu0 %v1777
    %v1845 = vpop.f32.mrb[0].mxu0
    %v1846 = vadd.f32 0.0, %v1845
    %v1847 = vpop.f32.mrb[0].mxu0
    %1848 = vdwg.mxu0
    %v1849 = vadd.f32 %v1362, %v1846
    %1850 = vrot.lane.b32.xlu0 %v1456, 120
    %v1851 = vpop.permute.xlu0 %1850
    %1852 = vrot.lane.b32.xlu0 %v1533, 120
    %v1853 = vpop.permute.xlu0 %1852
    %v1854 = vsel %vm396, %v1851, 0
    %v1856 = vsel %vm396, %v1853, 0
    %1858 = vmatprep.subr.mxu0 0.0
    %1859 = vmatpush1.xpose.msra.mxu0 %v1856
    %1860 = vmatprep.subr.mxu0 0.0
    %1861 = vmatpush1.xpose.msra.mxu0 0.0
    %1862 = vmatprep.subr.mxu0 0.0
    %1863 = vmatpush1.xpose.msra.mxu0 0.0
    %1864 = vmatprep.subr.mxu0 0.0
    %1865 = vmatpush1.xpose.msra.mxu0 0.0
    %1866 = vmatprep.subr.mxu0 0.0
    %1867 = vmatpush1.xpose.msra.mxu0 0.0
    %1868 = vmatprep.subr.mxu0 0.0
    %1869 = vmatpush1.xpose.msra.mxu0 0.0
    %1870 = vmatprep.subr.mxu0 0.0
    %1871 = vmatpush1.xpose.msra.mxu0 0.0
    %1872 = vmatprep.subr.mxu0 0.0
    %1873 = vmatpush1.xpose.msra.mxu0 0.0
    %1874 = vmatprep.subr.mxu0 0.0
    %1875 = vmatpush1.xpose.msra.mxu0 0.0
    %1876 = vmatprep.subr.mxu0 0.0
    %1877 = vmatpush1.xpose.msra.mxu0 0.0
    %1878 = vmatprep.subr.mxu0 0.0
    %1879 = vmatpush1.xpose.msra.mxu0 0.0
    %1880 = vmatprep.subr.mxu0 0.0
    %1881 = vmatpush1.xpose.msra.mxu0 0.0
    %1882 = vmatprep.subr.mxu0 0.0
    %1883 = vmatpush1.xpose.msra.mxu0 0.0
    %1884 = vmatprep.subr.mxu0 0.0
    %1885 = vmatpush1.xpose.msra.mxu0 0.0
    %1886 = vmatprep.subr.mxu0 0.0
    %1887 = vmatpush1.xpose.msra.mxu0 0.0
    %1888 = vmatprep.subr.mxu0 0.0
    %1889 = vmatpush1.xpose.msra.mxu0 0.0
    %1890 = vmatprep.subr.mxu0 0.0
    %1891 = vmatpush1.xpose.msra.mxu0 0.0
    %1892 = vmatprep.subr.mxu0 0.0
    %1893 = vmatpush1.xpose.msra.mxu0 0.0
    %1894 = vmatprep.subr.mxu0 0.0
    %1895 = vmatpush1.xpose.msra.mxu0 0.0
    %1896 = vmatprep.subr.mxu0 0.0
    %1897 = vmatpush1.xpose.msra.mxu0 0.0
    %1898 = vmatprep.subr.mxu0 0.0
    %1899 = vmatpush1.xpose.msra.mxu0 0.0
    %1900 = vmatprep.subr.mxu0 0.0
    %1901 = vmatpush1.xpose.msra.mxu0 0.0
    %1902 = vmatprep.subr.mxu0 0.0
    %1903 = vmatpush1.xpose.msra.mxu0 0.0
    %1904 = vmatprep.subr.mxu0 0.0
    %1905 = vmatpush1.xpose.msra.mxu0 0.0
    %1906 = vmatprep.subr.mxu0 0.0
    %1907 = vmatpush1.xpose.msra.mxu0 0.0
    %1908 = vmatprep.subr.mxu0 0.0
    %1909 = vmatpush1.xpose.msra.mxu0 0.0
    %1910 = vmatprep.subr.mxu0 0.0
    %1911 = vmatpush1.xpose.msra.mxu0 0.0
    %1912 = vmatprep.subr.mxu0 0.0
    %1913 = vmatpush1.xpose.msra.mxu0 0.0
    %1914 = vmatprep.subr.mxu0 0.0
    %1915 = vmatpush1.xpose.msra.mxu0 0.0
    %1916 = vmatprep.subr.mxu0 0.0
    %1917 = vmatpush1.xpose.msra.mxu0 0.0
    %1918 = vmatprep.subr.mxu0 0.0
    %1919 = vmatpush1.xpose.msra.mxu0 0.0
    %1920 = vmatprep.subr.mxu0 0.0
    %1921 = vmatpush1.xpose.msra.mxu0 0.0
    %1922 = vmatprep.mubr.f32.mxu0 0.0
    %1923 = vmatmul.mubr.f32.gmra.mrb[0].mxu0 %v1854
    %v1924 = vpop.f32.mrb[0].mxu0
    %v1925 = vadd.f32 0.0, %v1924
    %v1926 = vpop.f32.mrb[0].mxu0
    %1927 = vdwg.mxu0
    %v1928 = vsel %vm396, %v1925, -inf
    %1929 = vmax.xlane.f32.xlu0 %v1928
    %v1930 = vpop.xlane.xlu0 %1929
    %v1931 = vsub.f32 %v1925, %v1930
    %v1932 = vmul.f32 %v1931, 1.442695
    %v1933 = vpow.pop %v1932
    %v1934 = vsel %vm396, %v1933, 0.0
    %1935 = vadd.xlane.f32.xlu0 %v1934
    %v1936 = vpop.xlane.xlu0 %1935
    %v1937 = vrcp.pop %v1936
    %v1938 = vmul.f32 %v1933, %v1937
    %s1939 = scalar_lea.vmem [#allocation15], 40
    %1940 = vst.msk [vmem:[%s1939] sm:$0xff] %vm396, %v1938
    %1942 = vrot.lane.b32.xlu0 %v1610, 120
    %v1943 = vpop.permute.xlu0 %1942
    %v1946 = vsel %vm396, %v1938, 0
    %1948 = vmatprep.subr.mxu0 0.0
    %1949 = vmatpush1.msra.mxu0 %v1943
    %1950 = vmatprep.subr.mxu0 0.0
    %1951 = vmatpush1.msra.mxu0 0.0
    %1952 = vmatprep.subr.mxu0 0.0
    %1953 = vmatpush1.msra.mxu0 0.0
    %1954 = vmatprep.subr.mxu0 0.0
    %1955 = vmatpush1.msra.mxu0 0.0
    %1956 = vmatprep.subr.mxu0 0.0
    %1957 = vmatpush1.msra.mxu0 0.0
    %1958 = vmatprep.subr.mxu0 0.0
    %1959 = vmatpush1.msra.mxu0 0.0
    %1960 = vmatprep.subr.mxu0 0.0
    %1961 = vmatpush1.msra.mxu0 0.0
    %1962 = vmatprep.subr.mxu0 0.0
    %1963 = vmatpush1.msra.mxu0 0.0
    %1964 = vmatprep.subr.mxu0 0.0
    %1965 = vmatpush1.msra.mxu0 0.0
    %1966 = vmatprep.subr.mxu0 0.0
    %1967 = vmatpush1.msra.mxu0 0.0
    %1968 = vmatprep.subr.mxu0 0.0
    %1969 = vmatpush1.msra.mxu0 0.0
    %1970 = vmatprep.subr.mxu0 0.0
    %1971 = vmatpush1.msra.mxu0 0.0
    %1972 = vmatprep.subr.mxu0 0.0
    %1973 = vmatpush1.msra.mxu0 0.0
    %1974 = vmatprep.subr.mxu0 0.0
    %1975 = vmatpush1.msra.mxu0 0.0
    %1976 = vmatprep.subr.mxu0 0.0
    %1977 = vmatpush1.msra.mxu0 0.0
    %1978 = vmatprep.subr.mxu0 0.0
    %1979 = vmatpush1.msra.mxu0 0.0
    %1980 = vmatprep.subr.mxu0 0.0
    %1981 = vmatpush1.msra.mxu0 0.0
    %1982 = vmatprep.subr.mxu0 0.0
    %1983 = vmatpush1.msra.mxu0 0.0
    %1984 = vmatprep.subr.mxu0 0.0
    %1985 = vmatpush1.msra.mxu0 0.0
    %1986 = vmatprep.subr.mxu0 0.0
    %1987 = vmatpush1.msra.mxu0 0.0
    %1988 = vmatprep.subr.mxu0 0.0
    %1989 = vmatpush1.msra.mxu0 0.0
    %1990 = vmatprep.subr.mxu0 0.0
    %1991 = vmatpush1.msra.mxu0 0.0
    %1992 = vmatprep.subr.mxu0 0.0
    %1993 = vmatpush1.msra.mxu0 0.0
    %1994 = vmatprep.subr.mxu0 0.0
    %1995 = vmatpush1.msra.mxu0 0.0
    %1996 = vmatprep.subr.mxu0 0.0
    %1997 = vmatpush1.msra.mxu0 0.0
    %1998 = vmatprep.subr.mxu0 0.0
    %1999 = vmatpush1.msra.mxu0 0.0
    %2000 = vmatprep.subr.mxu0 0.0
    %2001 = vmatpush1.msra.mxu0 0.0
    %2002 = vmatprep.subr.mxu0 0.0
    %2003 = vmatpush1.msra.mxu0 0.0
    %2004 = vmatprep.subr.mxu0 0.0
    %2005 = vmatpush1.msra.mxu0 0.0
    %2006 = vmatprep.subr.mxu0 0.0
    %2007 = vmatpush1.msra.mxu0 0.0
    %2008 = vmatprep.subr.mxu0 0.0
    %2009 = vmatpush1.msra.mxu0 0.0
    %2010 = vmatprep.subr.mxu0 0.0
    %2011 = vmatpush1.msra.mxu0 0.0
    %2012 = vmatprep.mubr.f32.mxu0 0.0
    %2013 = vmatmul.mubr.f32.gmra.mrb[0].mxu0 %v1946
    %v2014 = vpop.f32.mrb[0].mxu0
    %v2015 = vadd.f32 0.0, %v2014
    %v2016 = vpop.f32.mrb[0].mxu0
    %2017 = vdwg.mxu0
    %v2018 = vld [vmem:[#allocation13 + $0x8] sm:$0xff]
    %v2020 = vsel %vm396, %v2015, 0
    %2022 = vmatprep.subr.mxu0 0.0
    %2023 = vmatpush1.msra.mxu0 %v2018
    %2024 = vmatprep.subr.mxu0 0.0
    %2025 = vmatpush1.msra.mxu0 0.0
    %2026 = vmatprep.subr.mxu0 0.0
    %2027 = vmatpush1.msra.mxu0 0.0
    %2028 = vmatprep.subr.mxu0 0.0
    %2029 = vmatpush1.msra.mxu0 0.0
    %2030 = vmatprep.subr.mxu0 0.0
    %2031 = vmatpush1.msra.mxu0 0.0
    %2032 = vmatprep.subr.mxu0 0.0
    %2033 = vmatpush1.msra.mxu0 0.0
    %2034 = vmatprep.subr.mxu0 0.0
    %2035 = vmatpush1.msra.mxu0 0.0
    %2036 = vmatprep.subr.mxu0 0.0
    %2037 = vmatpush1.msra.mxu0 0.0
    %2038 = vmatprep.subr.mxu0 0.0
    %2039 = vmatpush1.msra.mxu0 0.0
    %2040 = vmatprep.subr.mxu0 0.0
    %2041 = vmatpush1.msra.mxu0 0.0
    %2042 = vmatprep.subr.mxu0 0.0
    %2043 = vmatpush1.msra.mxu0 0.0
    %2044 = vmatprep.subr.mxu0 0.0
    %2045 = vmatpush1.msra.mxu0 0.0
    %2046 = vmatprep.subr.mxu0 0.0
    %2047 = vmatpush1.msra.mxu0 0.0
    %2048 = vmatprep.subr.mxu0 0.0
    %2049 = vmatpush1.msra.mxu0 0.0
    %2050 = vmatprep.subr.mxu0 0.0
    %2051 = vmatpush1.msra.mxu0 0.0
    %2052 = vmatprep.subr.mxu0 0.0
    %2053 = vmatpush1.msra.mxu0 0.0
    %2054 = vmatprep.subr.mxu0 0.0
    %2055 = vmatpush1.msra.mxu0 0.0
    %2056 = vmatprep.subr.mxu0 0.0
    %2057 = vmatpush1.msra.mxu0 0.0
    %2058 = vmatprep.subr.mxu0 0.0
    %2059 = vmatpush1.msra.mxu0 0.0
    %2060 = vmatprep.subr.mxu0 0.0
    %2061 = vmatpush1.msra.mxu0 0.0
    %2062 = vmatprep.subr.mxu0 0.0
    %2063 = vmatpush1.msra.mxu0 0.0
    %2064 = vmatprep.subr.mxu0 0.0
    %2065 = vmatpush1.msra.mxu0 0.0
    %2066 = vmatprep.subr.mxu0 0.0
    %2067 = vmatpush1.msra.mxu0 0.0
    %2068 = vmatprep.subr.mxu0 0.0
    %2069 = vmatpush1.msra.mxu0 0.0
    %2070 = vmatprep.subr.mxu0 0.0
    %2071 = vmatpush1.msra.mxu0 0.0
    %2072 = vmatprep.subr.mxu0 0.0
    %2073 = vmatpush1.msra.mxu0 0.0
    %2074 = vmatprep.subr.mxu0 0.0
    %2075 = vmatpush1.msra.mxu0 0.0
    %2076 = vmatprep.subr.mxu0 0.0
    %2077 = vmatpush1.msra.mxu0 0.0
    %2078 = vmatprep.subr.mxu0 0.0
    %2079 = vmatpush1.msra.mxu0 0.0
    %2080 = vmatprep.subr.mxu0 0.0
    %2081 = vmatpush1.msra.mxu0 0.0
    %2082 = vmatprep.subr.mxu0 0.0
    %2083 = vmatpush1.msra.mxu0 0.0
    %2084 = vmatprep.subr.mxu0 0.0
    %2085 = vmatpush1.msra.mxu0 0.0
    %2086 = vmatprep.mubr.f32.mxu0 0.0
    %2087 = vmatmul.mubr.f32.gmra.mrb[0].mxu0 %v2020
    %v2088 = vpop.f32.mrb[0].mxu0
    %v2089 = vadd.f32 0.0, %v2088
    %v2090 = vpop.f32.mrb[0].mxu0
    %2091 = vdwg.mxu0
    %v2092 = vadd.f32 %v1849, %v2089
    %2093 = vrot.lane.b32.xlu0 %v1456, 112
    %v2094 = vpop.permute.xlu0 %2093
    %2095 = vrot.lane.b32.xlu0 %v1533, 112
    %v2096 = vpop.permute.xlu0 %2095
    %v2097 = vsel %vm396, %v2094, 0
    %v2099 = vsel %vm396, %v2096, 0
    %2101 = vmatprep.subr.mxu0 0.0
    %2102 = vmatpush1.xpose.msra.mxu0 %v2099
    %2103 = vmatprep.subr.mxu0 0.0
    %2104 = vmatpush1.xpose.msra.mxu0 0.0
    %2105 = vmatprep.subr.mxu0 0.0
    %2106 = vmatpush1.xpose.msra.mxu0 0.0
    %2107 = vmatprep.subr.mxu0 0.0
    %2108 = vmatpush1.xpose.msra.mxu0 0.0
    %2109 = vmatprep.subr.mxu0 0.0
    %2110 = vmatpush1.xpose.msra.mxu0 0.0
    %2111 = vmatprep.subr.mxu0 0.0
    %2112 = vmatpush1.xpose.msra.mxu0 0.0
    %2113 = vmatprep.subr.mxu0 0.0
    %2114 = vmatpush1.xpose.msra.mxu0 0.0
    %2115 = vmatprep.subr.mxu0 0.0
    %2116 = vmatpush1.xpose.msra.mxu0 0.0
    %2117 = vmatprep.subr.mxu0 0.0
    %2118 = vmatpush1.xpose.msra.mxu0 0.0
    %2119 = vmatprep.subr.mxu0 0.0
    %2120 = vmatpush1.xpose.msra.mxu0 0.0
    %2121 = vmatprep.subr.mxu0 0.0
    %2122 = vmatpush1.xpose.msra.mxu0 0.0
    %2123 = vmatprep.subr.mxu0 0.0
    %2124 = vmatpush1.xpose.msra.mxu0 0.0
    %2125 = vmatprep.subr.mxu0 0.0
    %2126 = vmatpush1.xpose.msra.mxu0 0.0
    %2127 = vmatprep.subr.mxu0 0.0
    %2128 = vmatpush1.xpose.msra.mxu0 0.0
    %2129 = vmatprep.subr.mxu0 0.0
    %2130 = vmatpush1.xpose.msra.mxu0 0.0
    %2131 = vmatprep.subr.mxu0 0.0
    %2132 = vmatpush1.xpose.msra.mxu0 0.0
    %2133 = vmatprep.subr.mxu0 0.0
    %2134 = vmatpush1.xpose.msra.mxu0 0.0
    %2135 = vmatprep.subr.mxu0 0.0
    %2136 = vmatpush1.xpose.msra.mxu0 0.0
    %2137 = vmatprep.subr.mxu0 0.0
    %2138 = vmatpush1.xpose.msra.mxu0 0.0
    %2139 = vmatprep.subr.mxu0 0.0
    %2140 = vmatpush1.xpose.msra.mxu0 0.0
    %2141 = vmatprep.subr.mxu0 0.0
    %2142 = vmatpush1.xpose.msra.mxu0 0.0
    %2143 = vmatprep.subr.mxu0 0.0
    %2144 = vmatpush1.xpose.msra.mxu0 0.0
    %2145 = vmatprep.subr.mxu0 0.0
    %2146 = vmatpush1.xpose.msra.mxu0 0.0
    %2147 = vmatprep.subr.mxu0 0.0
    %2148 = vmatpush1.xpose.msra.mxu0 0.0
    %2149 = vmatprep.subr.mxu0 0.0
    %2150 = vmatpush1.xpose.msra.mxu0 0.0
    %2151 = vmatprep.subr.mxu0 0.0
    %2152 = vmatpush1.xpose.msra.mxu0 0.0
    %2153 = vmatprep.subr.mxu0 0.0
    %2154 = vmatpush1.xpose.msra.mxu0 0.0
    %2155 = vmatprep.subr.mxu0 0.0
    %2156 = vmatpush1.xpose.msra.mxu0 0.0
    %2157 = vmatprep.subr.mxu0 0.0
    %2158 = vmatpush1.xpose.msra.mxu0 0.0
    %2159 = vmatprep.subr.mxu0 0.0
    %2160 = vmatpush1.xpose.msra.mxu0 0.0
    %2161 = vmatprep.subr.mxu0 0.0
    %2162 = vmatpush1.xpose.msra.mxu0 0.0
    %2163 = vmatprep.subr.mxu0 0.0
    %2164 = vmatpush1.xpose.msra.mxu0 0.0
    %2165 = vmatprep.mubr.f32.mxu0 0.0
    %2166 = vmatmul.mubr.f32.gmra.mrb[0].mxu0 %v2097
    %v2167 = vpop.f32.mrb[0].mxu0
    %v2168 = vadd.f32 0.0, %v2167
    %v2169 = vpop.f32.mrb[0].mxu0
    %2170 = vdwg.mxu0
    %v2171 = vsel %vm396, %v2168, -inf
    %2172 = vmax.xlane.f32.xlu0 %v2171
    %v2173 = vpop.xlane.xlu0 %2172
    %v2174 = vsub.f32 %v2168, %v2173
    %v2175 = vmul.f32 %v2174, 1.442695
    %v2176 = vpow.pop %v2175
    %v2177 = vsel %vm396, %v2176, 0.0
    %2178 = vadd.xlane.f32.xlu0 %v2177
    %v2179 = vpop.xlane.xlu0 %2178
    %v2180 = vrcp.pop %v2179
    %v2181 = vmul.f32 %v2176, %v2180
    %s2182 = scalar_lea.vmem [#allocation15], 48
    %2183 = vst.msk [vmem:[%s2182] sm:$0xff] %vm396, %v2181
    %2184 = vrot.lane.b32.xlu0 %v1610, 112
    %v2185 = vpop.permute.xlu0 %2184
    %v2188 = vsel %vm396, %v2181, 0
    %2190 = vmatprep.subr.mxu0 0.0
    %2191 = vmatpush1.msra.mxu0 %v2185
    %2192 = vmatprep.subr.mxu0 0.0
    %2193 = vmatpush1.msra.mxu0 0.0
    %2194 = vmatprep.subr.mxu0 0.0
    %2195 = vmatpush1.msra.mxu0 0.0
    %2196 = vmatprep.subr.mxu0 0.0
    %2197 = vmatpush1.msra.mxu0 0.0
    %2198 = vmatprep.subr.mxu0 0.0
    %2199 = vmatpush1.msra.mxu0 0.0
    %2200 = vmatprep.subr.mxu0 0.0
    %2201 = vmatpush1.msra.mxu0 0.0
    %2202 = vmatprep.subr.mxu0 0.0
    %2203 = vmatpush1.msra.mxu0 0.0
    %2204 = vmatprep.subr.mxu0 0.0
    %2205 = vmatpush1.msra.mxu0 0.0
    %2206 = vmatprep.subr.mxu0 0.0
    %2207 = vmatpush1.msra.mxu0 0.0
    %2208 = vmatprep.subr.mxu0 0.0
    %2209 = vmatpush1.msra.mxu0 0.0
    %2210 = vmatprep.subr.mxu0 0.0
    %2211 = vmatpush1.msra.mxu0 0.0
    %2212 = vmatprep.subr.mxu0 0.0
    %2213 = vmatpush1.msra.mxu0 0.0
    %2214 = vmatprep.subr.mxu0 0.0
    %2215 = vmatpush1.msra.mxu0 0.0
    %2216 = vmatprep.subr.mxu0 0.0
    %2217 = vmatpush1.msra.mxu0 0.0
    %2218 = vmatprep.subr.mxu0 0.0
    %2219 = vmatpush1.msra.mxu0 0.0
    %2220 = vmatprep.subr.mxu0 0.0
    %2221 = vmatpush1.msra.mxu0 0.0
    %2222 = vmatprep.subr.mxu0 0.0
    %2223 = vmatpush1.msra.mxu0 0.0
    %2224 = vmatprep.subr.mxu0 0.0
    %2225 = vmatpush1.msra.mxu0 0.0
    %2226 = vmatprep.subr.mxu0 0.0
    %2227 = vmatpush1.msra.mxu0 0.0
    %2228 = vmatprep.subr.mxu0 0.0
    %2229 = vmatpush1.msra.mxu0 0.0
    %2230 = vmatprep.subr.mxu0 0.0
    %2231 = vmatpush1.msra.mxu0 0.0
    %2232 = vmatprep.subr.mxu0 0.0
    %2233 = vmatpush1.msra.mxu0 0.0
    %2234 = vmatprep.subr.mxu0 0.0
    %2235 = vmatpush1.msra.mxu0 0.0
    %2236 = vmatprep.subr.mxu0 0.0
    %2237 = vmatpush1.msra.mxu0 0.0
    %2238 = vmatprep.subr.mxu0 0.0
    %2239 = vmatpush1.msra.mxu0 0.0
    %2240 = vmatprep.subr.mxu0 0.0
    %2241 = vmatpush1.msra.mxu0 0.0
    %2242 = vmatprep.subr.mxu0 0.0
    %2243 = vmatpush1.msra.mxu0 0.0
    %2244 = vmatprep.subr.mxu0 0.0
    %2245 = vmatpush1.msra.mxu0 0.0
    %2246 = vmatprep.subr.mxu0 0.0
    %2247 = vmatpush1.msra.mxu0 0.0
    %2248 = vmatprep.subr.mxu0 0.0
    %2249 = vmatpush1.msra.mxu0 0.0
    %2250 = vmatprep.subr.mxu0 0.0
    %2251 = vmatpush1.msra.mxu0 0.0
    %2252 = vmatprep.subr.mxu0 0.0
    %2253 = vmatpush1.msra.mxu0 0.0
    %2254 = vmatprep.mubr.f32.mxu0 0.0
    %2255 = vmatmul.mubr.f32.gmra.mrb[0].mxu0 %v2188
    %v2256 = vpop.f32.mrb[0].mxu0
    %v2257 = vadd.f32 0.0, %v2256
    %v2258 = vpop.f32.mrb[0].mxu0
    %2259 = vdwg.mxu0
    %v2260 = vld [vmem:[#allocation13 + $0x10] sm:$0xff]
    %v2262 = vsel %vm396, %v2257, 0
    %2264 = vmatprep.subr.mxu0 0.0
    %2265 = vmatpush1.msra.mxu0 %v2260
    %2266 = vmatprep.subr.mxu0 0.0
    %2267 = vmatpush1.msra.mxu0 0.0
    %2268 = vmatprep.subr.mxu0 0.0
    %2269 = vmatpush1.msra.mxu0 0.0
    %2270 = vmatprep.subr.mxu0 0.0
    %2271 = vmatpush1.msra.mxu0 0.0
    %2272 = vmatprep.subr.mxu0 0.0
    %2273 = vmatpush1.msra.mxu0 0.0
    %2274 = vmatprep.subr.mxu0 0.0
    %2275 = vmatpush1.msra.mxu0 0.0
    %2276 = vmatprep.subr.mxu0 0.0
    %2277 = vmatpush1.msra.mxu0 0.0
    %2278 = vmatprep.subr.mxu0 0.0
    %2279 = vmatpush1.msra.mxu0 0.0
    %2280 = vmatprep.subr.mxu0 0.0
    %2281 = vmatpush1.msra.mxu0 0.0
    %2282 = vmatprep.subr.mxu0 0.0
    %2283 = vmatpush1.msra.mxu0 0.0
    %2284 = vmatprep.subr.mxu0 0.0
    %2285 = vmatpush1.msra.mxu0 0.0
    %2286 = vmatprep.subr.mxu0 0.0
    %2287 = vmatpush1.msra.mxu0 0.0
    %2288 = vmatprep.subr.mxu0 0.0
    %2289 = vmatpush1.msra.mxu0 0.0
    %2290 = vmatprep.subr.mxu0 0.0
    %2291 = vmatpush1.msra.mxu0 0.0
    %2292 = vmatprep.subr.mxu0 0.0
    %2293 = vmatpush1.msra.mxu0 0.0
    %2294 = vmatprep.subr.mxu0 0.0
    %2295 = vmatpush1.msra.mxu0 0.0
    %2296 = vmatprep.subr.mxu0 0.0
    %2297 = vmatpush1.msra.mxu0 0.0
    %2298 = vmatprep.subr.mxu0 0.0
    %2299 = vmatpush1.msra.mxu0 0.0
    %2300 = vmatprep.subr.mxu0 0.0
    %2301 = vmatpush1.msra.mxu0 0.0
    %2302 = vmatprep.subr.mxu0 0.0
    %2303 = vmatpush1.msra.mxu0 0.0
    %2304 = vmatprep.subr.mxu0 0.0
    %2305 = vmatpush1.msra.mxu0 0.0
    %2306 = vmatprep.subr.mxu0 0.0
    %2307 = vmatpush1.msra.mxu0 0.0
    %2308 = vmatprep.subr.mxu0 0.0
    %2309 = vmatpush1.msra.mxu0 0.0
    %2310 = vmatprep.subr.mxu0 0.0
    %2311 = vmatpush1.msra.mxu0 0.0
    %2312 = vmatprep.subr.mxu0 0.0
    %2313 = vmatpush1.msra.mxu0 0.0
    %2314 = vmatprep.subr.mxu0 0.0
    %2315 = vmatpush1.msra.mxu0 0.0
    %2316 = vmatprep.subr.mxu0 0.0
    %2317 = vmatpush1.msra.mxu0 0.0
    %2318 = vmatprep.subr.mxu0 0.0
    %2319 = vmatpush1.msra.mxu0 0.0
    %2320 = vmatprep.subr.mxu0 0.0
    %2321 = vmatpush1.msra.mxu0 0.0
    %2322 = vmatprep.subr.mxu0 0.0
    %2323 = vmatpush1.msra.mxu0 0.0
    %2324 = vmatprep.subr.mxu0 0.0
    %2325 = vmatpush1.msra.mxu0 0.0
    %2326 = vmatprep.subr.mxu0 0.0
    %2327 = vmatpush1.msra.mxu0 0.0
    %2328 = vmatprep.mubr.f32.mxu0 0.0
    %2329 = vmatmul.mubr.f32.gmra.mrb[0].mxu0 %v2262
    %v2330 = vpop.f32.mrb[0].mxu0
    %v2331 = vadd.f32 0.0, %v2330
    %v2332 = vpop.f32.mrb[0].mxu0
    %2333 = vdwg.mxu0
    %v2334 = vadd.f32 %v2092, %v2331
    %2335 = vrot.lane.b32.xlu0 %v1456, 104
    %v2336 = vpop.permute.xlu0 %2335
    %2337 = vrot.lane.b32.xlu0 %v1533, 104
    %v2338 = vpop.permute.xlu0 %2337
    %v2339 = vsel %vm396, %v2336, 0
    %v2341 = vsel %vm396, %v2338, 0
    %2343 = vmatprep.subr.mxu0 0.0
    %2344 = vmatpush1.xpose.msra.mxu0 %v2341
    %2345 = vmatprep.subr.mxu0 0.0
    %2346 = vmatpush1.xpose.msra.mxu0 0.0
    %2347 = vmatprep.subr.mxu0 0.0
    %2348 = vmatpush1.xpose.msra.mxu0 0.0
    %2349 = vmatprep.subr.mxu0 0.0
    %2350 = vmatpush1.xpose.msra.mxu0 0.0
    %2351 = vmatprep.subr.mxu0 0.0
    %2352 = vmatpush1.xpose.msra.mxu0 0.0
    %2353 = vmatprep.subr.mxu0 0.0
    %2354 = vmatpush1.xpose.msra.mxu0 0.0
    %2355 = vmatprep.subr.mxu0 0.0
    %2356 = vmatpush1.xpose.msra.mxu0 0.0
    %2357 = vmatprep.subr.mxu0 0.0
    %2358 = vmatpush1.xpose.msra.mxu0 0.0
    %2359 = vmatprep.subr.mxu0 0.0
    %2360 = vmatpush1.xpose.msra.mxu0 0.0
    %2361 = vmatprep.subr.mxu0 0.0
    %2362 = vmatpush1.xpose.msra.mxu0 0.0
    %2363 = vmatprep.subr.mxu0 0.0
    %2364 = vmatpush1.xpose.msra.mxu0 0.0
    %2365 = vmatprep.subr.mxu0 0.0
    %2366 = vmatpush1.xpose.msra.mxu0 0.0
    %2367 = vmatprep.subr.mxu0 0.0
    %2368 = vmatpush1.xpose.msra.mxu0 0.0
    %2369 = vmatprep.subr.mxu0 0.0
    %2370 = vmatpush1.xpose.msra.mxu0 0.0
    %2371 = vmatprep.subr.mxu0 0.0
    %2372 = vmatpush1.xpose.msra.mxu0 0.0
    %2373 = vmatprep.subr.mxu0 0.0
    %2374 = vmatpush1.xpose.msra.mxu0 0.0
    %2375 = vmatprep.subr.mxu0 0.0
    %2376 = vmatpush1.xpose.msra.mxu0 0.0
    %2377 = vmatprep.subr.mxu0 0.0
    %2378 = vmatpush1.xpose.msra.mxu0 0.0
    %2379 = vmatprep.subr.mxu0 0.0
    %2380 = vmatpush1.xpose.msra.mxu0 0.0
    %2381 = vmatprep.subr.mxu0 0.0
    %2382 = vmatpush1.xpose.msra.mxu0 0.0
    %2383 = vmatprep.subr.mxu0 0.0
    %2384 = vmatpush1.xpose.msra.mxu0 0.0
    %2385 = vmatprep.subr.mxu0 0.0
    %2386 = vmatpush1.xpose.msra.mxu0 0.0
    %2387 = vmatprep.subr.mxu0 0.0
    %2388 = vmatpush1.xpose.msra.mxu0 0.0
    %2389 = vmatprep.subr.mxu0 0.0
    %2390 = vmatpush1.xpose.msra.mxu0 0.0
    %2391 = vmatprep.subr.mxu0 0.0
    %2392 = vmatpush1.xpose.msra.mxu0 0.0
    %2393 = vmatprep.subr.mxu0 0.0
    %2394 = vmatpush1.xpose.msra.mxu0 0.0
    %2395 = vmatprep.subr.mxu0 0.0
    %2396 = vmatpush1.xpose.msra.mxu0 0.0
    %2397 = vmatprep.subr.mxu0 0.0
    %2398 = vmatpush1.xpose.msra.mxu0 0.0
    %2399 = vmatprep.subr.mxu0 0.0
    %2400 = vmatpush1.xpose.msra.mxu0 0.0
    %2401 = vmatprep.subr.mxu0 0.0
    %2402 = vmatpush1.xpose.msra.mxu0 0.0
    %2403 = vmatprep.subr.mxu0 0.0
    %2404 = vmatpush1.xpose.msra.mxu0 0.0
    %2405 = vmatprep.subr.mxu0 0.0
    %2406 = vmatpush1.xpose.msra.mxu0 0.0
    %2407 = vmatprep.mubr.f32.mxu0 0.0
    %2408 = vmatmul.mubr.f32.gmra.mrb[0].mxu0 %v2339
    %v2409 = vpop.f32.mrb[0].mxu0
    %v2410 = vadd.f32 0.0, %v2409
    %v2411 = vpop.f32.mrb[0].mxu0
    %2412 = vdwg.mxu0
    %v2413 = vsel %vm396, %v2410, -inf
    %2414 = vmax.xlane.f32.xlu0 %v2413
    %v2415 = vpop.xlane.xlu0 %2414
    %v2416 = vsub.f32 %v2410, %v2415
    %v2417 = vmul.f32 %v2416, 1.442695
    %v2418 = vpow.pop %v2417
    %v2419 = vsel %vm396, %v2418, 0.0
    %2420 = vadd.xlane.f32.xlu0 %v2419
    %v2421 = vpop.xlane.xlu0 %2420
    %v2422 = vrcp.pop %v2421
    %v2423 = vmul.f32 %v2418, %v2422
    %s2424 = scalar_lea.vmem [#allocation15], 56
    %2425 = vst.msk [vmem:[%s2424] sm:$0xff] %vm396, %v2423
    %2426 = vrot.lane.b32.xlu0 %v1610, 104
    %v2427 = vpop.permute.xlu0 %2426
    %v2430 = vsel %vm396, %v2423, 0
    %2432 = vmatprep.subr.mxu0 0.0
    %2433 = vmatpush1.msra.mxu0 %v2427
    %2434 = vmatprep.subr.mxu0 0.0
    %2435 = vmatpush1.msra.mxu0 0.0
    %2436 = vmatprep.subr.mxu0 0.0
    %2437 = vmatpush1.msra.mxu0 0.0
    %2438 = vmatprep.subr.mxu0 0.0
    %2439 = vmatpush1.msra.mxu0 0.0
    %2440 = vmatprep.subr.mxu0 0.0
    %2441 = vmatpush1.msra.mxu0 0.0
    %2442 = vmatprep.subr.mxu0 0.0
    %2443 = vmatpush1.msra.mxu0 0.0
    %2444 = vmatprep.subr.mxu0 0.0
    %2445 = vmatpush1.msra.mxu0 0.0
    %2446 = vmatprep.subr.mxu0 0.0
    %2447 = vmatpush1.msra.mxu0 0.0
    %2448 = vmatprep.subr.mxu0 0.0
    %2449 = vmatpush1.msra.mxu0 0.0
    %2450 = vmatprep.subr.mxu0 0.0
    %2451 = vmatpush1.msra.mxu0 0.0
    %2452 = vmatprep.subr.mxu0 0.0
    %2453 = vmatpush1.msra.mxu0 0.0
    %2454 = vmatprep.subr.mxu0 0.0
    %2455 = vmatpush1.msra.mxu0 0.0
    %2456 = vmatprep.subr.mxu0 0.0
    %2457 = vmatpush1.msra.mxu0 0.0
    %2458 = vmatprep.subr.mxu0 0.0
    %2459 = vmatpush1.msra.mxu0 0.0
    %2460 = vmatprep.subr.mxu0 0.0
    %2461 = vmatpush1.msra.mxu0 0.0
    %2462 = vmatprep.subr.mxu0 0.0
    %2463 = vmatpush1.msra.mxu0 0.0
    %2464 = vmatprep.subr.mxu0 0.0
    %2465 = vmatpush1.msra.mxu0 0.0
    %2466 = vmatprep.subr.mxu0 0.0
    %2467 = vmatpush1.msra.mxu0 0.0
    %2468 = vmatprep.subr.mxu0 0.0
    %2469 = vmatpush1.msra.mxu0 0.0
    %2470 = vmatprep.subr.mxu0 0.0
    %2471 = vmatpush1.msra.mxu0 0.0
    %2472 = vmatprep.subr.mxu0 0.0
    %2473 = vmatpush1.msra.mxu0 0.0
    %2474 = vmatprep.subr.mxu0 0.0
    %2475 = vmatpush1.msra.mxu0 0.0
    %2476 = vmatprep.subr.mxu0 0.0
    %2477 = vmatpush1.msra.mxu0 0.0
    %2478 = vmatprep.subr.mxu0 0.0
    %2479 = vmatpush1.msra.mxu0 0.0
    %2480 = vmatprep.subr.mxu0 0.0
    %2481 = vmatpush1.msra.mxu0 0.0
    %2482 = vmatprep.subr.mxu0 0.0
    %2483 = vmatpush1.msra.mxu0 0.0
    %2484 = vmatprep.subr.mxu0 0.0
    %2485 = vmatpush1.msra.mxu0 0.0
    %2486 = vmatprep.subr.mxu0 0.0
    %2487 = vmatpush1.msra.mxu0 0.0
    %2488 = vmatprep.subr.mxu0 0.0
    %2489 = vmatpush1.msra.mxu0 0.0
    %2490 = vmatprep.subr.mxu0 0.0
    %2491 = vmatpush1.msra.mxu0 0.0
    %2492 = vmatprep.subr.mxu0 0.0
    %2493 = vmatpush1.msra.mxu0 0.0
    %2494 = vmatprep.subr.mxu0 0.0
    %2495 = vmatpush1.msra.mxu0 0.0
    %2496 = vmatprep.mubr.f32.mxu0 0.0
    %2497 = vmatmul.mubr.f32.gmra.mrb[0].mxu0 %v2430
    %v2498 = vpop.f32.mrb[0].mxu0
    %v2499 = vadd.f32 0.0, %v2498
    %v2500 = vpop.f32.mrb[0].mxu0
    %2501 = vdwg.mxu0
    %v2502 = vld [vmem:[#allocation13 + $0x18] sm:$0xff]
    %v2504 = vsel %vm396, %v2499, 0
    %2506 = vmatprep.subr.mxu0 0.0
    %2507 = vmatpush1.msra.mxu0 %v2502
    %2508 = vmatprep.subr.mxu0 0.0
    %2509 = vmatpush1.msra.mxu0 0.0
    %2510 = vmatprep.subr.mxu0 0.0
    %2511 = vmatpush1.msra.mxu0 0.0
    %2512 = vmatprep.subr.mxu0 0.0
    %2513 = vmatpush1.msra.mxu0 0.0
    %2514 = vmatprep.subr.mxu0 0.0
    %2515 = vmatpush1.msra.mxu0 0.0
    %2516 = vmatprep.subr.mxu0 0.0
    %2517 = vmatpush1.msra.mxu0 0.0
    %2518 = vmatprep.subr.mxu0 0.0
    %2519 = vmatpush1.msra.mxu0 0.0
    %2520 = vmatprep.subr.mxu0 0.0
    %2521 = vmatpush1.msra.mxu0 0.0
    %2522 = vmatprep.subr.mxu0 0.0
    %2523 = vmatpush1.msra.mxu0 0.0
    %2524 = vmatprep.subr.mxu0 0.0
    %2525 = vmatpush1.msra.mxu0 0.0
    %2526 = vmatprep.subr.mxu0 0.0
    %2527 = vmatpush1.msra.mxu0 0.0
    %2528 = vmatprep.subr.mxu0 0.0
    %2529 = vmatpush1.msra.mxu0 0.0
    %2530 = vmatprep.subr.mxu0 0.0
    %2531 = vmatpush1.msra.mxu0 0.0
    %2532 = vmatprep.subr.mxu0 0.0
    %2533 = vmatpush1.msra.mxu0 0.0
    %2534 = vmatprep.subr.mxu0 0.0
    %2535 = vmatpush1.msra.mxu0 0.0
    %2536 = vmatprep.subr.mxu0 0.0
    %2537 = vmatpush1.msra.mxu0 0.0
    %2538 = vmatprep.subr.mxu0 0.0
    %2539 = vmatpush1.msra.mxu0 0.0
    %2540 = vmatprep.subr.mxu0 0.0
    %2541 = vmatpush1.msra.mxu0 0.0
    %2542 = vmatprep.subr.mxu0 0.0
    %2543 = vmatpush1.msra.mxu0 0.0
    %2544 = vmatprep.subr.mxu0 0.0
    %2545 = vmatpush1.msra.mxu0 0.0
    %2546 = vmatprep.subr.mxu0 0.0
    %2547 = vmatpush1.msra.mxu0 0.0
    %2548 = vmatprep.subr.mxu0 0.0
    %2549 = vmatpush1.msra.mxu0 0.0
    %2550 = vmatprep.subr.mxu0 0.0
    %2551 = vmatpush1.msra.mxu0 0.0
    %2552 = vmatprep.subr.mxu0 0.0
    %2553 = vmatpush1.msra.mxu0 0.0
    %2554 = vmatprep.subr.mxu0 0.0
    %2555 = vmatpush1.msra.mxu0 0.0
    %2556 = vmatprep.subr.mxu0 0.0
    %2557 = vmatpush1.msra.mxu0 0.0
    %2558 = vmatprep.subr.mxu0 0.0
    %2559 = vmatpush1.msra.mxu0 0.0
    %2560 = vmatprep.subr.mxu0 0.0
    %2561 = vmatpush1.msra.mxu0 0.0
    %2562 = vmatprep.subr.mxu0 0.0
    %2563 = vmatpush1.msra.mxu0 0.0
    %2564 = vmatprep.subr.mxu0 0.0
    %2565 = vmatpush1.msra.mxu0 0.0
    %2566 = vmatprep.subr.mxu0 0.0
    %2567 = vmatpush1.msra.mxu0 0.0
    %2568 = vmatprep.subr.mxu0 0.0
    %2569 = vmatpush1.msra.mxu0 0.0
    %2570 = vmatprep.mubr.f32.mxu0 0.0
    %2571 = vmatmul.mubr.f32.gmra.mrb[0].mxu0 %v2504
    %v2572 = vpop.f32.mrb[0].mxu0
    %v2573 = vadd.f32 0.0, %v2572
    %v2574 = vpop.f32.mrb[0].mxu0
    %2575 = vdwg.mxu0
    %v2576 = vadd.f32 %v2334, %v2573
    %s2577 = scalar_lea.vmem [#allocation14], 8
    %2578 = vst.msk [vmem:[%s2577] sm:$0xff] %vm136, %v2576
    // Predicated region
    $region66: #{tpu_custom_call.1} parent=1 // pred_check
      _
    $region67: #{tpu_custom_call.1} parent=1 // pred_check_branch
      %2580 = sbr.rel (0) target = $region69
    $region68: #{tpu_custom_call.1} parent=1 // pred_region
      %s2582 = ssub.s32 256, 256
      %2583 = vsyncadd [#allocation4], %s2582
      %s2584 = sshll.u32 [#allocation14], 4
      %s2585 = int_to_ptr.vmem [resolvable:$true] %s2584
      %2590 = dma.vmem_to_hbm [thread:$0]  %s2585, 256, %s9, [#allocation4], 128, 128, 8
    $region69: #{tpu_custom_call.1} parent=1 // pred_fallthru
      _
    // Predicated region
    $region70: #{tpu_custom_call.1} parent=1 // pred_check
      _
    $region71: #{tpu_custom_call.1} parent=1 // pred_check_branch
      %2592 = sbr.rel (0) target = $region73
    $region72: #{tpu_custom_call.1} parent=1 // pred_region
      %s2594 = ssub.s32 1024, 1024
      %2595 = vsyncadd [#allocation16], %s2594
      %s2596 = sshll.u32 [#allocation15], 4
      %s2597 = int_to_ptr.vmem [resolvable:$true] %s2596
      %2602 = dma.vmem_to_hbm [thread:$0]  %s2597, 1024, %s10, [#allocation16], 128, 128, 8
    $region73: #{tpu_custom_call.1} parent=1 // pred_fallthru
      _
    // Predicated region
    $region74: #{tpu_custom_call.1} parent=1 // pred_check
      _
    $region75: #{tpu_custom_call.1} parent=1 // pred_check_branch
      %2604 = sbr.rel (0) target = $region77
    $region76: #{tpu_custom_call.1} parent=1 // pred_region
      %2605 = dma.done [#allocation4], 256
    $region77: #{tpu_custom_call.1} parent=1 // pred_fallthru
      _
    // Predicated region
    $region78: #{tpu_custom_call.1} parent=1 // pred_check
      _
    $region79: #{tpu_custom_call.1} parent=1 // pred_check_branch
      %2607 = sbr.rel (0) target = $region81
    $region80: #{tpu_custom_call.1} parent=1 // pred_region
      %2608 = dma.done [#allocation16], 1024
    $region81: #{tpu_custom_call.1} parent=1 // pred_fallthru
      _
    %2609 = vsyncpa [#allocation3], 1
    %2610 = vsyncpa [#allocation6], 1
    %2611 = vsyncpa [#allocation9], 1
    %2612 = vsyncpa [#allocation12], 1
    %2613 = vsyncpa [#allocation4], 1
    %2614 = vsyncpa [#allocation16], 1

</llo_original>
